<compile_context>
chip_gen: v5e
topology: v5e:2x2
jax: 0.10.0
libtpu: 0.0.40
codegen_flags: <defaults>
</compile_context>

<pallas_src>
import functools

import numpy as np
import jax
import jax.numpy as jnp
from jax import lax
from jax.experimental import pallas as pl
from jax.experimental.pallas import tpu as pltpu


# -----------------------------------------------------------------------------
# Fused kernel: conv1 + pool1 + conv2 + pool2 + MLP for one batch tile
# -----------------------------------------------------------------------------
def _lenet_kernel(xph_ref, w1e_ref, b1_ref, w2e_ref, e2_ref,
                  w1rr_ref, b1p_ref, w2p_ref, b2p_ref, w3p_ref, b3p_ref,
                  o_ref,
                  a1_scr, p1_scr, a2_scr, zc_scr):
    # xph_ref : (2, bt, 16, 32) bf16  row-parity phases of the 32x32 padded input
    # w1e_ref : (192, 336) bf16  conv1 Toeplitz weight
    #            rows  d*32 + x                (d = ry + kh, x = padded input col)
    #            cols  ry*168 + cx*84 + oc*14 + Xp   (pool parities ry,cx)
    # b1_ref  : (1, 84) f32      conv1 bias broadcast over columns oc*14 + Xp
    # w2e_ref : (420, 160) bf16  conv2 Toeplitz weight
    #            rows  kh*84 + ic*14 + X, cols cx*80 + oc*5 + Xp
    # e2_ref  : (1, 80) f32      conv2 bias broadcast over columns oc*5 + Xp
    # w1rr/... : MLP weights (bf16) / biases (f32), zero-padded to 128 lanes
    # o_ref   : (bt, 128) f32    logits (first 10 lanes valid)
    bt = o_ref.shape[0]
    f32, bf16 = jnp.float32, jnp.bfloat16

    # ---------------- stage 1: conv1 + ReLU + maxpool(2,2) on the MXU ----------
    # im2col: 6 wide rectangular copies.  a1[b, Y, d*32 + x] = xpad[b, 2Y + d, x]
    # (row 2Y+d of the padded input lives in phase d%2, row Y + d//2).
    for d in range(6):
        a1_scr[:, 0:14, d * 32:(d + 1) * 32] = xph_ref[d % 2, :, d // 2:d // 2 + 14, :]

    # One batched GEMM for the whole tile; the four 84-column blocks of the
    # result are the (ry, cx) parity candidates of the 2x2 max-pool window.
    z1 = jnp.dot(a1_scr[...].reshape(bt * 16, 192), w1e_ref[...],
                 preferred_element_type=f32).reshape(bt, 16, 336)
    m = jnp.maximum(jnp.maximum(z1[:, :, 0:84], z1[:, :, 84:168]),
                    jnp.maximum(z1[:, :, 168:252], z1[:, :, 252:336]))
    # bias + ReLU commute with the pooling max (bias is a per-channel constant)
    p1_scr[...] = jnp.maximum(m + b1_ref[...], 0.0)     # (bt, 16, 84), rows 0..13 valid

    # ---------------- stage 2: conv2 + ReLU + maxpool(2,2) on the MXU ----------
    # im2col: 5 full-width (84-lane) row-window copies.
    #   a2[b, y', kh*84 + c] = p1[b, y'+kh, c]
    for kh in range(5):
        a2_scr[:, 0:10, kh * 84:(kh + 1) * 84] = p1_scr[:, kh:kh + 10, :].astype(bf16)

    z2 = jnp.dot(a2_scr[...].reshape(bt * 16, 420), w2e_ref[...],
                 preferred_element_type=f32).reshape(bt, 16, 160)
    # pool over x parity: column halves are the even/odd x'' candidates
    zc_scr[...] = jnp.maximum(z2[:, :, 0:80], z2[:, :, 80:160])    # (bt, 16, 80)

    # pool over y parity (row pairs), bias + ReLU, and gather the flat features
    e2 = e2_ref[...]
    fparts = []
    for Y in range(5):
        mrow = jnp.maximum(zc_scr[:, 2 * Y, :], zc_scr[:, 2 * Y + 1, :])   # (bt, 80)
        fparts.append(jnp.maximum(mrow + e2, 0.0))
    f = jnp.concatenate(fparts, axis=-1)                                   # (bt, 400)

    # ---------------- stage 3: MLP 400 -> 120 -> 84 -> 10 (128-lane padded) ----
    h = jnp.maximum(jnp.dot(f.astype(bf16), w1rr_ref[...],
                            preferred_element_type=f32) + b1p_ref[...], 0.0)
    h = jnp.maximum(jnp.dot(h.astype(bf16), w2p_ref[...],
                            preferred_element_type=f32) + b2p_ref[...], 0.0)
    o_ref[...] = (jnp.dot(h.astype(bf16), w3p_ref[...],
                          preferred_element_type=f32) + b3p_ref[...])


# -----------------------------------------------------------------------------
# Weight preprocessing (tiny, one-time layout work; runs as plain XLA)
# -----------------------------------------------------------------------------
def _prep_weights(params):
    f32, bf16 = jnp.float32, jnp.bfloat16

    # ---- conv1 Toeplitz weight (192, 336) ----
    # W1e[d*32 + x, ry*168 + cx*84 + oc*14 + Xp]
    #     = w1[oc, d-ry, kw] * [x == 2*Xp + cx + kw]   (for 0 <= d-ry <= 4)
    w1 = params["conv1_w"].astype(f32)[:, 0]                       # (6, 5, 5)
    S1 = np.zeros((6, 32, 2, 2, 14, 5, 5), np.float32)             # [d,x,ry,cx,Xp,kh,kw]
    for d in range(6):
        for ry in range(2):
            kh = d - ry
            if not 0 <= kh <= 4:
                continue
            for cx in range(2):
                for Xp in range(14):
                    for kw in range(5):
                        S1[d, 2 * Xp + cx + kw, ry, cx, Xp, kh, kw] = 1.0
    w1e = jnp.einsum("dxrcphw,ohw->dxrcop", jnp.asarray(S1), w1)
    w1e = w1e.reshape(192, 336).astype(bf16)
    bias1 = jnp.repeat(params["conv1_b"].astype(f32), 14).reshape(1, 84)

    # ---- conv2 Toeplitz weight (420, 160) ----
    # W2e[kh*84 + ic*14 + X, cx*80 + oc*5 + Xp]
    #     = sum_kw w2[oc, ic, kh, kw] * [X == 2*Xp + cx + kw]
    w2 = params["conv2_w"].astype(f32)                             # (16, 6, 5, 5)
    S2 = np.zeros((14, 2, 5, 5), np.float32)                       # [X, cx, Xp, kw]
    for cx in range(2):
        for Xp in range(5):
            for kw in range(5):
                S2[2 * Xp + cx + kw, cx, Xp, kw] = 1.0
    w2e = jnp.einsum("Xcpw,oihw->hiXcop", jnp.asarray(S2), w2)
    w2e = w2e.reshape(420, 160).astype(bf16)
    e2 = jnp.repeat(params["conv2_b"].astype(f32), 5).reshape(1, 80)

    # ---- MLP: lin1 columns regrouped to match f's (Y2, oc, Xp) lane order ----
    w1rr = params["lin1_w"].astype(f32).reshape(120, 16, 5, 5).transpose(2, 1, 3, 0)
    w1rr = jnp.pad(w1rr.reshape(400, 120), ((0, 0), (0, 8))).astype(bf16)    # (400,128)
    b1p = jnp.zeros((1, 128), f32).at[0, :120].set(params["lin1_b"].astype(f32))
    w2p = jnp.zeros((128, 128), f32).at[:120, :84].set(
        params["lin2_w"].astype(f32).T).astype(bf16)
    b2p = jnp.zeros((1, 128), f32).at[0, :84].set(params["lin2_b"].astype(f32))
    w3p = jnp.zeros((128, 128), f32).at[:84, :10].set(
        params["lin3_w"].astype(f32).T).astype(bf16)
    b3p = jnp.zeros((1, 128), f32).at[0, :10].set(params["lin3_b"].astype(f32))
    return w1e, bias1, w2e, e2, w1rr, b1p, w2p, b2p, w3p, b3p


def _round_up(n, m):
    return ((n + m - 1) // m) * m


# -----------------------------------------------------------------------------
# Forward pass (single pallas_call over batch tiles)
# -----------------------------------------------------------------------------
@functools.partial(jax.jit, static_argnames=("block_batch",))
def lenet_forward(x, params, block_batch=64):
    N = x.shape[0]
    # bt is a multiple of 8; shrink for tiny batches to avoid pointless padding.
    # With block_batch=64 and a large batch the grid has >= 2 steps, so the
    # "parallel" axis shards across v7x's two TensorCores.
    bt = min(block_batch, _round_up(N, 8))
    npad = _round_up(N, bt)

    # zero-pad to 32x32 (conv1 padding=2), split rows into even/odd parity
    # phases so all in-kernel accesses are unit-stride, cast to bf16 (MXU-native)
    xpad = jnp.pad(x[:, 0].astype(jnp.float32), ((0, npad - N), (2, 2), (2, 2)))
    xph = jnp.stack([xpad[:, 0::2, :], xpad[:, 1::2, :]], axis=0).astype(jnp.bfloat16)

    weights = _prep_weights(params)

    out = pl.pallas_call(
        _lenet_kernel,
        out_shape=jax.ShapeDtypeStruct((npad, 128), jnp.float32),
        grid=(npad // bt,),
        in_specs=[
            pl.BlockSpec((2, bt, 16, 32), lambda i: (0, i, 0, 0)),   # input phases (bf16)
            pl.BlockSpec((192, 336), lambda i: (0, 0)),              # conv1 Toeplitz w
            pl.BlockSpec((1, 84), lambda i: (0, 0)),                 # conv1 bias cols
            pl.BlockSpec((420, 160), lambda i: (0, 0)),              # conv2 Toeplitz w
            pl.BlockSpec((1, 80), lambda i: (0, 0)),                 # conv2 bias cols
            pl.BlockSpec((400, 128), lambda i: (0, 0)),              # lin1 w
            pl.BlockSpec((1, 128), lambda i: (0, 0)),                # lin1 b
            pl.BlockSpec((128, 128), lambda i: (0, 0)),              # lin2 w
            pl.BlockSpec((1, 128), lambda i: (0, 0)),                # lin2 b
            pl.BlockSpec((128, 128), lambda i: (0, 0)),              # lin3 w
            pl.BlockSpec((1, 128), lambda i: (0, 0)),                # lin3 b
        ],
        out_specs=pl.BlockSpec((bt, 128), lambda i: (i, 0)),
        scratch_shapes=[
            pltpu.VMEM((bt, 16, 192), jnp.bfloat16),   # conv1 im2col (rows 0..13 used)
            pltpu.VMEM((bt, 16, 84), jnp.float32),     # p1: pooled+ReLU conv1, col=ic*14+X
            pltpu.VMEM((bt, 16, 420), jnp.bfloat16),   # conv2 im2col (rows 0..9 used)
            pltpu.VMEM((bt, 16, 80), jnp.float32),     # conv2 x-parity pooled
        ],
        compiler_params=pltpu.CompilerParams(
            dimension_semantics=("parallel",),
            vmem_limit_bytes=32 * 1024 * 1024),
    )(xph, *weights)

    return out[:N, :10]


# -----------------------------------------------------------------------------
# Pure-JAX reference (correctness check only)
# -----------------------------------------------------------------------------
def ref_forward(x, p):
    dn = ("NCHW", "OIHW", "NCHW")
    hp = lax.Precision.HIGHEST
    c1 = lax.conv_general_dilated(x, p["conv1_w"], (1, 1), ((2, 2), (2, 2)),
                                  dimension_numbers=dn, precision=hp)
    c1 = jnp.maximum(c1 + p["conv1_b"][None, :, None, None], 0.0)
    p1 = lax.reduce_window(c1, -jnp.inf, lax.max, (1, 1, 2, 2), (1, 1, 2, 2), "VALID")
    c2 = lax.conv_general_dilated(p1, p["conv2_w"], (1, 1), "VALID",
                                  dimension_numbers=dn, precision=hp)
    c2 = jnp.maximum(c2 + p["conv2_b"][None, :, None, None], 0.0)
    p2 = lax.reduce_window(c2, -jnp.inf, lax.max, (1, 1, 2, 2), (1, 1, 2, 2), "VALID")
    f = p2.reshape(p2.shape[0], -1)
    h = jnp.maximum(jnp.dot(f, p["lin1_w"].T, precision=hp) + p["lin1_b"], 0.0)
    h = jnp.maximum(jnp.dot(h, p["lin2_w"].T, precision=hp) + p["lin2_b"], 0.0)
    return jnp.dot(h, p["lin3_w"].T, precision=hp) + p["lin3_b"]


if __name__ == "__main__":
    key = jax.random.PRNGKey(0)
    ks = jax.random.split(key, 12)

    # LeNet requires 28x28 single-channel input so the flatten yields 400 features.
    x = jax.random.normal(ks[0], (2, 1, 28, 28), jnp.float32)

    params = {
        "conv1_w": 0.2 * jax.random.normal(ks[1], (6, 1, 5, 5), jnp.float32),
        "conv1_b": 0.1 * jax.random.normal(ks[2], (6,), jnp.float32),
        "conv2_w": 0.1 * jax.random.normal(ks[3], (16, 6, 5, 5), jnp.float32),
        "conv2_b": 0.1 * jax.random.normal(ks[4], (16,), jnp.float32),
        "lin1_w": 0.05 * jax.random.normal(ks[5], (120, 400), jnp.float32),
        "lin1_b": 0.05 * jax.random.normal(ks[6], (120,), jnp.float32),
        "lin2_w": 0.1 * jax.random.normal(ks[7], (84, 120), jnp.float32),
        "lin2_b": 0.1 * jax.random.normal(ks[8], (84,), jnp.float32),
        "lin3_w": 0.1 * jax.random.normal(ks[9], (10, 84), jnp.float32),
        "lin3_b": 0.1 * jax.random.normal(ks[10], (10,), jnp.float32),
    }

    out = lenet_forward(x, params)
    out = jax.block_until_ready(out)
    assert out.shape == (2, 10) and out.dtype == jnp.float32

    # bf16 MXU operands with f32 accumulation (per review); tolerance sized for
    # bf16 input rounding accumulated over 5 layers.
    ref = ref_forward(x, params)
    np.testing.assert_allclose(np.asarray(out), np.asarray(ref), rtol=5e-2, atol=8e-2)

    print("KERNEL_OK")
</pallas_src>

<mosaic_0001>
module attributes {stable_mosaic.version = 11 : i64} {
  func.func @_lenet_kernel(%arg0: i32, %arg1: memref<2x8x16x32xbf16, #tpu.memory_space<vmem>>, %arg2: memref<192x336xbf16, #tpu.memory_space<vmem>>, %arg3: memref<1x84xf32, #tpu.memory_space<vmem>>, %arg4: memref<420x160xbf16, #tpu.memory_space<vmem>>, %arg5: memref<1x80xf32, #tpu.memory_space<vmem>>, %arg6: memref<400x128xbf16, #tpu.memory_space<vmem>>, %arg7: memref<1x128xf32, #tpu.memory_space<vmem>>, %arg8: memref<128x128xbf16, #tpu.memory_space<vmem>>, %arg9: memref<1x128xf32, #tpu.memory_space<vmem>>, %arg10: memref<128x128xbf16, #tpu.memory_space<vmem>>, %arg11: memref<1x128xf32, #tpu.memory_space<vmem>>, %arg12: memref<8x128xf32, #tpu.memory_space<vmem>>, %arg13: memref<8x16x192xbf16, #tpu.memory_space<vmem>>, %arg14: memref<8x16x84xf32, #tpu.memory_space<vmem>>, %arg15: memref<8x16x420xbf16, #tpu.memory_space<vmem>>, %arg16: memref<8x16x80xf32, #tpu.memory_space<vmem>>) attributes {dimension_semantics = [#tpu.dimension_semantics<parallel>], iteration_bounds = array<i64: 1>, scalar_prefetch = 0 : i64, scratch_operands = 4 : i64, tpu.core_type = #tpu.core_type<tc>, window_params = [{transform_indices = @transform_0, window_bounds = array<i64: 2, 8, 16, 32>}, {pipeline_mode = #tpu.pipeline_mode<synchronous>, transform_indices = @transform_1, window_bounds = array<i64: 192, 336>}, {pipeline_mode = #tpu.pipeline_mode<synchronous>, transform_indices = @transform_2, window_bounds = array<i64: 1, 84>}, {pipeline_mode = #tpu.pipeline_mode<synchronous>, transform_indices = @transform_3, window_bounds = array<i64: 420, 160>}, {pipeline_mode = #tpu.pipeline_mode<synchronous>, transform_indices = @transform_4, window_bounds = array<i64: 1, 80>}, {pipeline_mode = #tpu.pipeline_mode<synchronous>, transform_indices = @transform_5, window_bounds = array<i64: 400, 128>}, {pipeline_mode = #tpu.pipeline_mode<synchronous>, transform_indices = @transform_6, window_bounds = array<i64: 1, 128>}, {pipeline_mode = #tpu.pipeline_mode<synchronous>, transform_indices = @transform_7, window_bounds = array<i64: 128, 128>}, {pipeline_mode = #tpu.pipeline_mode<synchronous>, transform_indices = @transform_8, window_bounds = array<i64: 1, 128>}, {pipeline_mode = #tpu.pipeline_mode<synchronous>, transform_indices = @transform_9, window_bounds = array<i64: 128, 128>}, {pipeline_mode = #tpu.pipeline_mode<synchronous>, transform_indices = @transform_10, window_bounds = array<i64: 1, 128>}, {transform_indices = @transform_11, window_bounds = array<i64: 8, 128>}]} {
    %c0 = arith.constant 0 : index
    %c0_0 = arith.constant 0 : index
    %c0_1 = arith.constant 0 : index
    %c0_2 = arith.constant 0 : index
    %0 = vector.load %arg1[%c0, %c0_0, %c0_1, %c0_2] : memref<2x8x16x32xbf16, #tpu.memory_space<vmem>>, vector<1x8x14x32xbf16>
    %1 = vector.shape_cast %0 : vector<1x8x14x32xbf16> to vector<8x14x32xbf16>
    %c0_3 = arith.constant 0 : index
    %c0_4 = arith.constant 0 : index
    %c0_5 = arith.constant 0 : index
    %2 = vector.load %arg13[%c0_3, %c0_4, %c0_5] : memref<8x16x192xbf16, #tpu.memory_space<vmem>>, vector<8x14x32xbf16>
    tpu.vector_store %arg13[%c0_3, %c0_4, %c0_5], %1 {strides = array<i32>} : memref<8x16x192xbf16, #tpu.memory_space<vmem>>, vector<8x14x32xbf16>,
    %c1 = arith.constant 1 : index
    %c0_6 = arith.constant 0 : index
    %c0_7 = arith.constant 0 : index
    %c0_8 = arith.constant 0 : index
    %3 = vector.load %arg1[%c1, %c0_6, %c0_7, %c0_8] : memref<2x8x16x32xbf16, #tpu.memory_space<vmem>>, vector<1x8x14x32xbf16>
    %4 = vector.shape_cast %3 : vector<1x8x14x32xbf16> to vector<8x14x32xbf16>
    %c0_9 = arith.constant 0 : index
    %c0_10 = arith.constant 0 : index
    %c32 = arith.constant 32 : index
    %5 = vector.load %arg13[%c0_9, %c0_10, %c32] : memref<8x16x192xbf16, #tpu.memory_space<vmem>>, vector<8x14x32xbf16>
    tpu.vector_store %arg13[%c0_9, %c0_10, %c32], %4 {strides = array<i32>} : memref<8x16x192xbf16, #tpu.memory_space<vmem>>, vector<8x14x32xbf16>,
    %c0_11 = arith.constant 0 : index
    %c0_12 = arith.constant 0 : index
    %c1_13 = arith.constant 1 : index
    %c0_14 = arith.constant 0 : index
    %6 = vector.load %arg1[%c0_11, %c0_12, %c1_13, %c0_14] : memref<2x8x16x32xbf16, #tpu.memory_space<vmem>>, vector<1x8x14x32xbf16>
    %7 = vector.shape_cast %6 : vector<1x8x14x32xbf16> to vector<8x14x32xbf16>
    %c0_15 = arith.constant 0 : index
    %c0_16 = arith.constant 0 : index
    %c64 = arith.constant 64 : index
    %8 = vector.load %arg13[%c0_15, %c0_16, %c64] : memref<8x16x192xbf16, #tpu.memory_space<vmem>>, vector<8x14x32xbf16>
    tpu.vector_store %arg13[%c0_15, %c0_16, %c64], %7 {strides = array<i32>} : memref<8x16x192xbf16, #tpu.memory_space<vmem>>, vector<8x14x32xbf16>,
    %c1_17 = arith.constant 1 : index
    %c0_18 = arith.constant 0 : index
    %c1_19 = arith.constant 1 : index
    %c0_20 = arith.constant 0 : index
    %9 = vector.load %arg1[%c1_17, %c0_18, %c1_19, %c0_20] : memref<2x8x16x32xbf16, #tpu.memory_space<vmem>>, vector<1x8x14x32xbf16>
    %10 = vector.shape_cast %9 : vector<1x8x14x32xbf16> to vector<8x14x32xbf16>
    %c0_21 = arith.constant 0 : index
    %c0_22 = arith.constant 0 : index
    %c96 = arith.constant 96 : index
    %11 = vector.load %arg13[%c0_21, %c0_22, %c96] : memref<8x16x192xbf16, #tpu.memory_space<vmem>>, vector<8x14x32xbf16>
    tpu.vector_store %arg13[%c0_21, %c0_22, %c96], %10 {strides = array<i32>} : memref<8x16x192xbf16, #tpu.memory_space<vmem>>, vector<8x14x32xbf16>,
    %c0_23 = arith.constant 0 : index
    %c0_24 = arith.constant 0 : index
    %c2 = arith.constant 2 : index
    %c0_25 = arith.constant 0 : index
    %12 = vector.load %arg1[%c0_23, %c0_24, %c2, %c0_25] : memref<2x8x16x32xbf16, #tpu.memory_space<vmem>>, vector<1x8x14x32xbf16>
    %13 = vector.shape_cast %12 : vector<1x8x14x32xbf16> to vector<8x14x32xbf16>
    %c0_26 = arith.constant 0 : index
    %c0_27 = arith.constant 0 : index
    %c128 = arith.constant 128 : index
    %14 = vector.load %arg13[%c0_26, %c0_27, %c128] : memref<8x16x192xbf16, #tpu.memory_space<vmem>>, vector<8x14x32xbf16>
    tpu.vector_store %arg13[%c0_26, %c0_27, %c128], %13 {strides = array<i32>} : memref<8x16x192xbf16, #tpu.memory_space<vmem>>, vector<8x14x32xbf16>,
    %c1_28 = arith.constant 1 : index
    %c0_29 = arith.constant 0 : index
    %c2_30 = arith.constant 2 : index
    %c0_31 = arith.constant 0 : index
    %15 = vector.load %arg1[%c1_28, %c0_29, %c2_30, %c0_31] : memref<2x8x16x32xbf16, #tpu.memory_space<vmem>>, vector<1x8x14x32xbf16>
    %16 = vector.shape_cast %15 : vector<1x8x14x32xbf16> to vector<8x14x32xbf16>
    %c0_32 = arith.constant 0 : index
    %c0_33 = arith.constant 0 : index
    %c160 = arith.constant 160 : index
    %17 = vector.load %arg13[%c0_32, %c0_33, %c160] : memref<8x16x192xbf16, #tpu.memory_space<vmem>>, vector<8x14x32xbf16>
    tpu.vector_store %arg13[%c0_32, %c0_33, %c160], %16 {strides = array<i32>} : memref<8x16x192xbf16, #tpu.memory_space<vmem>>, vector<8x14x32xbf16>,
    %c0_34 = arith.constant 0 : index
    %c0_35 = arith.constant 0 : index
    %c0_36 = arith.constant 0 : index
    %18 = vector.load %arg13[%c0_34, %c0_35, %c0_36] : memref<8x16x192xbf16, #tpu.memory_space<vmem>>, vector<8x16x192xbf16>
    %19 = vector.shape_cast %18 : vector<8x16x192xbf16> to vector<128x192xbf16>
    %c0_37 = arith.constant 0 : index
    %c0_38 = arith.constant 0 : index
    %20 = vector.load %arg2[%c0_37, %c0_38] : memref<192x336xbf16, #tpu.memory_space<vmem>>, vector<192x336xbf16>
    %cst = arith.constant dense<0.000000e+00> : vector<128x336xf32>
    %21 = tpu.matmul %19, %20, %cst {dimension_numbers = #tpu.dot_dimension_numbers<[1], [0], [0], [1], [0, 0, 1, 1], [], []>} : vector<128x192xbf16>, vector<192x336xbf16>, vector<128x336xf32> -> vector<128x336xf32>
    %22 = vector.shape_cast %21 : vector<128x336xf32> to vector<8x16x336xf32>
    %23 = vector.extract_strided_slice %22 {offsets = [0, 0, 0], sizes = [8, 16, 84], strides = [1, 1, 1]} : vector<8x16x336xf32> to vector<8x16x84xf32>
    %24 = vector.extract_strided_slice %22 {offsets = [0, 0, 84], sizes = [8, 16, 84], strides = [1, 1, 1]} : vector<8x16x336xf32> to vector<8x16x84xf32>
    %25 = arith.maximumf %23, %24 : vector<8x16x84xf32>
    %26 = vector.extract_strided_slice %22 {offsets = [0, 0, 168], sizes = [8, 16, 84], strides = [1, 1, 1]} : vector<8x16x336xf32> to vector<8x16x84xf32>
    %27 = vector.extract_strided_slice %22 {offsets = [0, 0, 252], sizes = [8, 16, 84], strides = [1, 1, 1]} : vector<8x16x336xf32> to vector<8x16x84xf32>
    %28 = arith.maximumf %26, %27 : vector<8x16x84xf32>
    %29 = arith.maximumf %25, %28 : vector<8x16x84xf32>
    %c0_39 = arith.constant 0 : index
    %c0_40 = arith.constant 0 : index
    %30 = vector.load %arg3[%c0_39, %c0_40] : memref<1x84xf32, #tpu.memory_space<vmem>>, vector<1x84xf32>
    %31 = vector.shape_cast %30 : vector<1x84xf32> to vector<1x1x84xf32>
    %32 = vector.broadcast %31 : vector<1x1x84xf32> to vector<8x16x84xf32>
    %33 = arith.addf %29, %32 : vector<8x16x84xf32>
    %cst_41 = arith.constant 0.000000e+00 : f32
    %34 = vector.broadcast %cst_41 : f32 to vector<8x16x84xf32>
    %35 = arith.maximumf %33, %34 : vector<8x16x84xf32>
    %c0_42 = arith.constant 0 : index
    %c0_43 = arith.constant 0 : index
    %c0_44 = arith.constant 0 : index
    %36 = vector.load %arg14[%c0_42, %c0_43, %c0_44] : memref<8x16x84xf32, #tpu.memory_space<vmem>>, vector<8x16x84xf32>
    tpu.vector_store %arg14[%c0_42, %c0_43, %c0_44], %35 {strides = array<i32>} : memref<8x16x84xf32, #tpu.memory_space<vmem>>, vector<8x16x84xf32>,
    %c0_45 = arith.constant 0 : index
    %c0_46 = arith.constant 0 : index
    %c0_47 = arith.constant 0 : index
    %37 = vector.load %arg14[%c0_45, %c0_46, %c0_47] : memref<8x16x84xf32, #tpu.memory_space<vmem>>, vector<8x10x84xf32>
    %38 = arith.truncf %37 : vector<8x10x84xf32> to vector<8x10x84xbf16>
    %c0_48 = arith.constant 0 : index
    %c0_49 = arith.constant 0 : index
    %c0_50 = arith.constant 0 : index
    %39 = vector.load %arg15[%c0_48, %c0_49, %c0_50] : memref<8x16x420xbf16, #tpu.memory_space<vmem>>, vector<8x10x84xbf16>
    tpu.vector_store %arg15[%c0_48, %c0_49, %c0_50], %38 {strides = array<i32>} : memref<8x16x420xbf16, #tpu.memory_space<vmem>>, vector<8x10x84xbf16>,
    %c0_51 = arith.constant 0 : index
    %c1_52 = arith.constant 1 : index
    %c0_53 = arith.constant 0 : index
    %40 = vector.load %arg14[%c0_51, %c1_52, %c0_53] : memref<8x16x84xf32, #tpu.memory_space<vmem>>, vector<8x10x84xf32>
    %41 = arith.truncf %40 : vector<8x10x84xf32> to vector<8x10x84xbf16>
    %c0_54 = arith.constant 0 : index
    %c0_55 = arith.constant 0 : index
    %c84 = arith.constant 84 : index
    %42 = vector.load %arg15[%c0_54, %c0_55, %c84] : memref<8x16x420xbf16, #tpu.memory_space<vmem>>, vector<8x10x84xbf16>
    tpu.vector_store %arg15[%c0_54, %c0_55, %c84], %41 {strides = array<i32>} : memref<8x16x420xbf16, #tpu.memory_space<vmem>>, vector<8x10x84xbf16>,
    %c0_56 = arith.constant 0 : index
    %c2_57 = arith.constant 2 : index
    %c0_58 = arith.constant 0 : index
    %43 = vector.load %arg14[%c0_56, %c2_57, %c0_58] : memref<8x16x84xf32, #tpu.memory_space<vmem>>, vector<8x10x84xf32>
    %44 = arith.truncf %43 : vector<8x10x84xf32> to vector<8x10x84xbf16>
    %c0_59 = arith.constant 0 : index
    %c0_60 = arith.constant 0 : index
    %c168 = arith.constant 168 : index
    %45 = vector.load %arg15[%c0_59, %c0_60, %c168] : memref<8x16x420xbf16, #tpu.memory_space<vmem>>, vector<8x10x84xbf16>
    tpu.vector_store %arg15[%c0_59, %c0_60, %c168], %44 {strides = array<i32>} : memref<8x16x420xbf16, #tpu.memory_space<vmem>>, vector<8x10x84xbf16>,
    %c0_61 = arith.constant 0 : index
    %c3 = arith.constant 3 : index
    %c0_62 = arith.constant 0 : index
    %46 = vector.load %arg14[%c0_61, %c3, %c0_62] : memref<8x16x84xf32, #tpu.memory_space<vmem>>, vector<8x10x84xf32>
    %47 = arith.truncf %46 : vector<8x10x84xf32> to vector<8x10x84xbf16>
    %c0_63 = arith.constant 0 : index
    %c0_64 = arith.constant 0 : index
    %c252 = arith.constant 252 : index
    %48 = vector.load %arg15[%c0_63, %c0_64, %c252] : memref<8x16x420xbf16, #tpu.memory_space<vmem>>, vector<8x10x84xbf16>
    tpu.vector_store %arg15[%c0_63, %c0_64, %c252], %47 {strides = array<i32>} : memref<8x16x420xbf16, #tpu.memory_space<vmem>>, vector<8x10x84xbf16>,
    %c0_65 = arith.constant 0 : index
    %c4 = arith.constant 4 : index
    %c0_66 = arith.constant 0 : index
    %49 = vector.load %arg14[%c0_65, %c4, %c0_66] : memref<8x16x84xf32, #tpu.memory_space<vmem>>, vector<8x10x84xf32>
    %50 = arith.truncf %49 : vector<8x10x84xf32> to vector<8x10x84xbf16>
    %c0_67 = arith.constant 0 : index
    %c0_68 = arith.constant 0 : index
    %c336 = arith.constant 336 : index
    %51 = vector.load %arg15[%c0_67, %c0_68, %c336] : memref<8x16x420xbf16, #tpu.memory_space<vmem>>, vector<8x10x84xbf16>
    tpu.vector_store %arg15[%c0_67, %c0_68, %c336], %50 {strides = array<i32>} : memref<8x16x420xbf16, #tpu.memory_space<vmem>>, vector<8x10x84xbf16>,
    %c0_69 = arith.constant 0 : index
    %c0_70 = arith.constant 0 : index
    %c0_71 = arith.constant 0 : index
    %52 = vector.load %arg15[%c0_69, %c0_70, %c0_71] : memref<8x16x420xbf16, #tpu.memory_space<vmem>>, vector<8x16x420xbf16>
    %53 = vector.shape_cast %52 : vector<8x16x420xbf16> to vector<128x420xbf16>
    %c0_72 = arith.constant 0 : index
    %c0_73 = arith.constant 0 : index
    %54 = vector.load %arg4[%c0_72, %c0_73] : memref<420x160xbf16, #tpu.memory_space<vmem>>, vector<420x160xbf16>
    %cst_74 = arith.constant dense<0.000000e+00> : vector<128x160xf32>
    %55 = tpu.matmul %53, %54, %cst_74 {dimension_numbers = #tpu.dot_dimension_numbers<[1], [0], [0], [1], [0, 0, 1, 1], [], []>} : vector<128x420xbf16>, vector<420x160xbf16>, vector<128x160xf32> -> vector<128x160xf32>
    %56 = vector.shape_cast %55 : vector<128x160xf32> to vector<8x16x160xf32>
    %57 = vector.extract_strided_slice %56 {offsets = [0, 0, 0], sizes = [8, 16, 80], strides = [1, 1, 1]} : vector<8x16x160xf32> to vector<8x16x80xf32>
    %58 = vector.extract_strided_slice %56 {offsets = [0, 0, 80], sizes = [8, 16, 80], strides = [1, 1, 1]} : vector<8x16x160xf32> to vector<8x16x80xf32>
    %59 = arith.maximumf %57, %58 : vector<8x16x80xf32>
    %c0_75 = arith.constant 0 : index
    %c0_76 = arith.constant 0 : index
    %c0_77 = arith.constant 0 : index
    %60 = vector.load %arg16[%c0_75, %c0_76, %c0_77] : memref<8x16x80xf32, #tpu.memory_space<vmem>>, vector<8x16x80xf32>
    tpu.vector_store %arg16[%c0_75, %c0_76, %c0_77], %59 {strides = array<i32>} : memref<8x16x80xf32, #tpu.memory_space<vmem>>, vector<8x16x80xf32>,
    %c0_78 = arith.constant 0 : index
    %c0_79 = arith.constant 0 : index
    %61 = vector.load %arg5[%c0_78, %c0_79] : memref<1x80xf32, #tpu.memory_space<vmem>>, vector<1x80xf32>
    %c0_80 = arith.constant 0 : index
    %c0_81 = arith.constant 0 : index
    %c0_82 = arith.constant 0 : index
    %62 = vector.load %arg16[%c0_80, %c0_81, %c0_82] : memref<8x16x80xf32, #tpu.memory_space<vmem>>, vector<8x1x80xf32>
    %63 = vector.shape_cast %62 : vector<8x1x80xf32> to vector<8x80xf32>
    %c0_83 = arith.constant 0 : index
    %c1_84 = arith.constant 1 : index
    %c0_85 = arith.constant 0 : index
    %64 = vector.load %arg16[%c0_83, %c1_84, %c0_85] : memref<8x16x80xf32, #tpu.memory_space<vmem>>, vector<8x1x80xf32>
    %65 = vector.shape_cast %64 : vector<8x1x80xf32> to vector<8x80xf32>
    %66 = arith.maximumf %63, %65 : vector<8x80xf32>
    %67 = vector.broadcast %61 : vector<1x80xf32> to vector<8x80xf32>
    %68 = arith.addf %66, %67 : vector<8x80xf32>
    %cst_86 = arith.constant 0.000000e+00 : f32
    %69 = vector.broadcast %cst_86 : f32 to vector<8x80xf32>
    %70 = arith.maximumf %68, %69 : vector<8x80xf32>
    %c0_87 = arith.constant 0 : index
    %c2_88 = arith.constant 2 : index
    %c0_89 = arith.constant 0 : index
    %71 = vector.load %arg16[%c0_87, %c2_88, %c0_89] : memref<8x16x80xf32, #tpu.memory_space<vmem>>, vector<8x1x80xf32>
    %72 = vector.shape_cast %71 : vector<8x1x80xf32> to vector<8x80xf32>
    %c0_90 = arith.constant 0 : index
    %c3_91 = arith.constant 3 : index
    %c0_92 = arith.constant 0 : index
    %73 = vector.load %arg16[%c0_90, %c3_91, %c0_92] : memref<8x16x80xf32, #tpu.memory_space<vmem>>, vector<8x1x80xf32>
    %74 = vector.shape_cast %73 : vector<8x1x80xf32> to vector<8x80xf32>
    %75 = arith.maximumf %72, %74 : vector<8x80xf32>
    %76 = vector.broadcast %61 : vector<1x80xf32> to vector<8x80xf32>
    %77 = arith.addf %75, %76 : vector<8x80xf32>
    %cst_93 = arith.constant 0.000000e+00 : f32
    %78 = vector.broadcast %cst_93 : f32 to vector<8x80xf32>
    %79 = arith.maximumf %77, %78 : vector<8x80xf32>
    %c0_94 = arith.constant 0 : index
    %c4_95 = arith.constant 4 : index
    %c0_96 = arith.constant 0 : index
    %80 = vector.load %arg16[%c0_94, %c4_95, %c0_96] : memref<8x16x80xf32, #tpu.memory_space<vmem>>, vector<8x1x80xf32>
    %81 = vector.shape_cast %80 : vector<8x1x80xf32> to vector<8x80xf32>
    %c0_97 = arith.constant 0 : index
    %c5 = arith.constant 5 : index
    %c0_98 = arith.constant 0 : index
    %82 = vector.load %arg16[%c0_97, %c5, %c0_98] : memref<8x16x80xf32, #tpu.memory_space<vmem>>, vector<8x1x80xf32>
    %83 = vector.shape_cast %82 : vector<8x1x80xf32> to vector<8x80xf32>
    %84 = arith.maximumf %81, %83 : vector<8x80xf32>
    %85 = vector.broadcast %61 : vector<1x80xf32> to vector<8x80xf32>
    %86 = arith.addf %84, %85 : vector<8x80xf32>
    %cst_99 = arith.constant 0.000000e+00 : f32
    %87 = vector.broadcast %cst_99 : f32 to vector<8x80xf32>
    %88 = arith.maximumf %86, %87 : vector<8x80xf32>
    %c0_100 = arith.constant 0 : index
    %c6 = arith.constant 6 : index
    %c0_101 = arith.constant 0 : index
    %89 = vector.load %arg16[%c0_100, %c6, %c0_101] : memref<8x16x80xf32, #tpu.memory_space<vmem>>, vector<8x1x80xf32>
    %90 = vector.shape_cast %89 : vector<8x1x80xf32> to vector<8x80xf32>
    %c0_102 = arith.constant 0 : index
    %c7 = arith.constant 7 : index
    %c0_103 = arith.constant 0 : index
    %91 = vector.load %arg16[%c0_102, %c7, %c0_103] : memref<8x16x80xf32, #tpu.memory_space<vmem>>, vector<8x1x80xf32>
    %92 = vector.shape_cast %91 : vector<8x1x80xf32> to vector<8x80xf32>
    %93 = arith.maximumf %90, %92 : vector<8x80xf32>
    %94 = vector.broadcast %61 : vector<1x80xf32> to vector<8x80xf32>
    %95 = arith.addf %93, %94 : vector<8x80xf32>
    %cst_104 = arith.constant 0.000000e+00 : f32
    %96 = vector.broadcast %cst_104 : f32 to vector<8x80xf32>
    %97 = arith.maximumf %95, %96 : vector<8x80xf32>
    %c0_105 = arith.constant 0 : index
    %c8 = arith.constant 8 : index
    %c0_106 = arith.constant 0 : index
    %98 = vector.load %arg16[%c0_105, %c8, %c0_106] : memref<8x16x80xf32, #tpu.memory_space<vmem>>, vector<8x1x80xf32>
    %99 = vector.shape_cast %98 : vector<8x1x80xf32> to vector<8x80xf32>
    %c0_107 = arith.constant 0 : index
    %c9 = arith.constant 9 : index
    %c0_108 = arith.constant 0 : index
    %100 = vector.load %arg16[%c0_107, %c9, %c0_108] : memref<8x16x80xf32, #tpu.memory_space<vmem>>, vector<8x1x80xf32>
    %101 = vector.shape_cast %100 : vector<8x1x80xf32> to vector<8x80xf32>
    %102 = arith.maximumf %99, %101 : vector<8x80xf32>
    %103 = vector.broadcast %61 : vector<1x80xf32> to vector<8x80xf32>
    %104 = arith.addf %102, %103 : vector<8x80xf32>
    %cst_109 = arith.constant 0.000000e+00 : f32
    %105 = vector.broadcast %cst_109 : f32 to vector<8x80xf32>
    %106 = arith.maximumf %104, %105 : vector<8x80xf32>
    %107 = tpu.concatenate %70, %79, %88, %97, %106 in 1 : vector<8x80xf32>, vector<8x80xf32>, vector<8x80xf32>, vector<8x80xf32>, vector<8x80xf32> -> vector<8x400xf32>
    %108 = arith.truncf %107 : vector<8x400xf32> to vector<8x400xbf16>
    %c0_110 = arith.constant 0 : index
    %c0_111 = arith.constant 0 : index
    %109 = vector.load %arg6[%c0_110, %c0_111] : memref<400x128xbf16, #tpu.memory_space<vmem>>, vector<400x128xbf16>
    %cst_112 = arith.constant dense<0.000000e+00> : vector<8x128xf32>
    %110 = tpu.matmul %108, %109, %cst_112 {dimension_numbers = #tpu.dot_dimension_numbers<[1], [0], [0], [1], [0, 0, 1, 1], [], []>} : vector<8x400xbf16>, vector<400x128xbf16>, vector<8x128xf32> -> vector<8x128xf32>
    %c0_113 = arith.constant 0 : index
    %c0_114 = arith.constant 0 : index
    %111 = vector.load %arg7[%c0_113, %c0_114] : memref<1x128xf32, #tpu.memory_space<vmem>>, vector<1x128xf32>
    %112 = vector.broadcast %111 : vector<1x128xf32> to vector<8x128xf32>
    %113 = arith.addf %110, %112 : vector<8x128xf32>
    %cst_115 = arith.constant 0.000000e+00 : f32
    %114 = vector.broadcast %cst_115 : f32 to vector<8x128xf32>
    %115 = arith.maximumf %113, %114 : vector<8x128xf32>
    %116 = arith.truncf %115 : vector<8x128xf32> to vector<8x128xbf16>
    %c0_116 = arith.constant 0 : index
    %c0_117 = arith.constant 0 : index
    %117 = vector.load %arg8[%c0_116, %c0_117] : memref<128x128xbf16, #tpu.memory_space<vmem>>, vector<128x128xbf16>
    %cst_118 = arith.constant dense<0.000000e+00> : vector<8x128xf32>
    %118 = tpu.matmul %116, %117, %cst_118 {dimension_numbers = #tpu.dot_dimension_numbers<[1], [0], [0], [1], [0, 0, 1, 1], [], []>} : vector<8x128xbf16>, vector<128x128xbf16>, vector<8x128xf32> -> vector<8x128xf32>
    %c0_119 = arith.constant 0 : index
    %c0_120 = arith.constant 0 : index
    %119 = vector.load %arg9[%c0_119, %c0_120] : memref<1x128xf32, #tpu.memory_space<vmem>>, vector<1x128xf32>
    %120 = vector.broadcast %119 : vector<1x128xf32> to vector<8x128xf32>
    %121 = arith.addf %118, %120 : vector<8x128xf32>
    %cst_121 = arith.constant 0.000000e+00 : f32
    %122 = vector.broadcast %cst_121 : f32 to vector<8x128xf32>
    %123 = arith.maximumf %121, %122 : vector<8x128xf32>
    %124 = arith.truncf %123 : vector<8x128xf32> to vector<8x128xbf16>
    %c0_122 = arith.constant 0 : index
    %c0_123 = arith.constant 0 : index
    %125 = vector.load %arg10[%c0_122, %c0_123] : memref<128x128xbf16, #tpu.memory_space<vmem>>, vector<128x128xbf16>
    %cst_124 = arith.constant dense<0.000000e+00> : vector<8x128xf32>
    %126 = tpu.matmul %124, %125, %cst_124 {dimension_numbers = #tpu.dot_dimension_numbers<[1], [0], [0], [1], [0, 0, 1, 1], [], []>} : vector<8x128xbf16>, vector<128x128xbf16>, vector<8x128xf32> -> vector<8x128xf32>
    %c0_125 = arith.constant 0 : index
    %c0_126 = arith.constant 0 : index
    %127 = vector.load %arg11[%c0_125, %c0_126] : memref<1x128xf32, #tpu.memory_space<vmem>>, vector<1x128xf32>
    %128 = vector.broadcast %127 : vector<1x128xf32> to vector<8x128xf32>
    %129 = arith.addf %126, %128 : vector<8x128xf32>
    %c0_127 = arith.constant 0 : index
    %c0_128 = arith.constant 0 : index
    %130 = vector.load %arg12[%c0_127, %c0_128] : memref<8x128xf32, #tpu.memory_space<vmem>>, vector<8x128xf32>
    tpu.vector_store %arg12[%c0_127, %c0_128], %129 {strides = array<i32>} : memref<8x128xf32, #tpu.memory_space<vmem>>, vector<8x128xf32>,
    return
  }
  func.func @transform_0(%arg0: i32) -> (i32, i32, i32, i32) {
    %c0_i32 = arith.constant 0 : i32
    %c0_i32_0 = arith.constant 0 : i32
    %c0_i32_1 = arith.constant 0 : i32
    %c0_i32_2 = arith.constant 0 : i32
    return %c0_i32, %arg0, %c0_i32_0, %c0_i32_1 : i32, i32, i32, i32
  }
  func.func @transform_1(%arg0: i32) -> (i32, i32) {
    %c0_i32 = arith.constant 0 : i32
    %c0_i32_0 = arith.constant 0 : i32
    %c0_i32_1 = arith.constant 0 : i32
    return %c0_i32, %c0_i32_0 : i32, i32
  }
  func.func @transform_2(%arg0: i32) -> (i32, i32) {
    %c0_i32 = arith.constant 0 : i32
    %c0_i32_0 = arith.constant 0 : i32
    %c0_i32_1 = arith.constant 0 : i32
    return %c0_i32, %c0_i32_0 : i32, i32
  }
  func.func @transform_3(%arg0: i32) -> (i32, i32) {
    %c0_i32 = arith.constant 0 : i32
    %c0_i32_0 = arith.constant 0 : i32
    %c0_i32_1 = arith.constant 0 : i32
    return %c0_i32, %c0_i32_0 : i32, i32
  }
  func.func @transform_4(%arg0: i32) -> (i32, i32) {
    %c0_i32 = arith.constant 0 : i32
    %c0_i32_0 = arith.constant 0 : i32
    %c0_i32_1 = arith.constant 0 : i32
    return %c0_i32, %c0_i32_0 : i32, i32
  }
  func.func @transform_5(%arg0: i32) -> (i32, i32) {
    %c0_i32 = arith.constant 0 : i32
    %c0_i32_0 = arith.constant 0 : i32
    %c0_i32_1 = arith.constant 0 : i32
    return %c0_i32, %c0_i32_0 : i32, i32
  }
  func.func @transform_6(%arg0: i32) -> (i32, i32) {
    %c0_i32 = arith.constant 0 : i32
    %c0_i32_0 = arith.constant 0 : i32
    %c0_i32_1 = arith.constant 0 : i32
    return %c0_i32, %c0_i32_0 : i32, i32
  }
  func.func @transform_7(%arg0: i32) -> (i32, i32) {
    %c0_i32 = arith.constant 0 : i32
    %c0_i32_0 = arith.constant 0 : i32
    %c0_i32_1 = arith.constant 0 : i32
    return %c0_i32, %c0_i32_0 : i32, i32
  }
  func.func @transform_8(%arg0: i32) -> (i32, i32) {
    %c0_i32 = arith.constant 0 : i32
    %c0_i32_0 = arith.constant 0 : i32
    %c0_i32_1 = arith.constant 0 : i32
    return %c0_i32, %c0_i32_0 : i32, i32
  }
  func.func @transform_9(%arg0: i32) -> (i32, i32) {
    %c0_i32 = arith.constant 0 : i32
    %c0_i32_0 = arith.constant 0 : i32
    %c0_i32_1 = arith.constant 0 : i32
    return %c0_i32, %c0_i32_0 : i32, i32
  }
  func.func @transform_10(%arg0: i32) -> (i32, i32) {
    %c0_i32 = arith.constant 0 : i32
    %c0_i32_0 = arith.constant 0 : i32
    %c0_i32_1 = arith.constant 0 : i32
    return %c0_i32, %c0_i32_0 : i32, i32
  }
  func.func @transform_11(%arg0: i32) -> (i32, i32) {
    %c0_i32 = arith.constant 0 : i32
    %c0_i32_0 = arith.constant 0 : i32
    return %arg0, %c0_i32 : i32, i32
  }
}

</mosaic_0001>

<llo_original>
// kernel: lenet_forward.1
$region0: #{lenet_forward.1}
  #allocation0 [shape = 'u32[]', space=smem, size = 0x4, offset = 0x4, fixed_abs, tag = 'smem constant byte address 0x4 - core index']
  #allocation1 [shape = 'u32[72,128]{1,0:T(1,128)}', space=vmem, size = 0x9000, scoped, tag = 'internal scratch']
  #allocation2 [shape = 'bf16[8,16,192]{2,1,0:T(8,128)(2,1)}', space=vmem, size = 0x10000, scoped, tag = 'scratch operand']
  #allocation3 [shape = 'f32[8,16,84]{2,1,0:T(8,128)}', space=vmem, size = 0x10000, scoped, tag = 'scratch operand']
  #allocation4 [shape = 'bf16[8,16,420]{2,1,0:T(8,128)(2,1)}', space=vmem, size = 0x20000, scoped, tag = 'scratch operand']
  #allocation5 [shape = 'f32[8,16,80]{2,1,0:T(8,128)}', space=vmem, size = 0x10000, scoped, tag = 'scratch operand']
  %s0 = inlined_call_operand.vmem [shape: bf16[2,8,16,32], index: 0, kind: input, shape index: {}]
  %s1 = inlined_call_operand.vmem [shape: bf16[192,336], index: 1, kind: input, shape index: {}]
  %s2 = inlined_call_operand.vmem [shape: f32[1,84], index: 2, kind: input, shape index: {}]
  %s3 = inlined_call_operand.vmem [shape: bf16[420,160], index: 3, kind: input, shape index: {}]
  %s4 = inlined_call_operand.vmem [shape: f32[1,80], index: 4, kind: input, shape index: {}]
  %s5 = inlined_call_operand.vmem [shape: bf16[400,128], index: 5, kind: input, shape index: {}]
  %s6 = inlined_call_operand.vmem [shape: f32[1,128], index: 6, kind: input, shape index: {}]
  %s7 = inlined_call_operand.vmem [shape: bf16[128,128], index: 7, kind: input, shape index: {}]
  %s8 = inlined_call_operand.vmem [shape: f32[1,128], index: 8, kind: input, shape index: {}]
  %s9 = inlined_call_operand.vmem [shape: bf16[128,128], index: 9, kind: input, shape index: {}]
  %s10 = inlined_call_operand.vmem [shape: f32[1,128], index: 10, kind: input, shape index: {}]
  %s11 = inlined_call_operand.vmem [shape: f32[8,128], index: 11, kind: output, shape index: {}]
  %s12 = sld [smem:[#allocation0]]
  $region54: #{lenet_forward.1} parent=0
    _
  %s14 = ssub.s32 1, %s12
  %s15 = scalar_select 0, %s14, %s12
  // Predicated region
  $region2: #{lenet_forward.1} parent=0 // pred_check
    _
  $region3: #{lenet_forward.1} parent=0 // pred_check_branch
    %17 = sbr.rel (0) target = $region5
  $region4: #{lenet_forward.1} parent=0 // pred_region
    _
  $region5: #{lenet_forward.1} parent=0 // pred_fallthru
    _
  // Predicated region
  $region6: #{lenet_forward.1} parent=0 // pred_check
    _
  $region7: #{lenet_forward.1} parent=0 // pred_check_branch
    %19 = sbr.rel (0) target = $region9
  $region8: #{lenet_forward.1} parent=0 // pred_region
    _
  $region9: #{lenet_forward.1} parent=0 // pred_fallthru
    _
  // Predicated region
  $region10: #{lenet_forward.1} parent=0 // pred_check
    _
  $region11: #{lenet_forward.1} parent=0 // pred_check_branch
    %21 = sbr.rel (0) target = $region13
  $region12: #{lenet_forward.1} parent=0 // pred_region
    _
  $region13: #{lenet_forward.1} parent=0 // pred_fallthru
    _
  // Predicated region
  $region14: #{lenet_forward.1} parent=0 // pred_check
    _
  $region15: #{lenet_forward.1} parent=0 // pred_check_branch
    %23 = sbr.rel (0) target = $region17
  $region16: #{lenet_forward.1} parent=0 // pred_region
    _
  $region17: #{lenet_forward.1} parent=0 // pred_fallthru
    _
  // Predicated region
  $region18: #{lenet_forward.1} parent=0 // pred_check
    _
  $region19: #{lenet_forward.1} parent=0 // pred_check_branch
    %25 = sbr.rel (0) target = $region21
  $region20: #{lenet_forward.1} parent=0 // pred_region
    _
  $region21: #{lenet_forward.1} parent=0 // pred_fallthru
    _
  // Predicated region
  $region22: #{lenet_forward.1} parent=0 // pred_check
    _
  $region23: #{lenet_forward.1} parent=0 // pred_check_branch
    %27 = sbr.rel (0) target = $region25
  $region24: #{lenet_forward.1} parent=0 // pred_region
    _
  $region25: #{lenet_forward.1} parent=0 // pred_fallthru
    _
  // Predicated region
  $region26: #{lenet_forward.1} parent=0 // pred_check
    _
  $region27: #{lenet_forward.1} parent=0 // pred_check_branch
    %29 = sbr.rel (0) target = $region29
  $region28: #{lenet_forward.1} parent=0 // pred_region
    _
  $region29: #{lenet_forward.1} parent=0 // pred_fallthru
    _
  // Predicated region
  $region30: #{lenet_forward.1} parent=0 // pred_check
    _
  $region31: #{lenet_forward.1} parent=0 // pred_check_branch
    %31 = sbr.rel (0) target = $region33
  $region32: #{lenet_forward.1} parent=0 // pred_region
    _
  $region33: #{lenet_forward.1} parent=0 // pred_fallthru
    _
  // Predicated region
  $region34: #{lenet_forward.1} parent=0 // pred_check
    _
  $region35: #{lenet_forward.1} parent=0 // pred_check_branch
    %33 = sbr.rel (0) target = $region37
  $region36: #{lenet_forward.1} parent=0 // pred_region
    _
  $region37: #{lenet_forward.1} parent=0 // pred_fallthru
    _
  // Predicated region
  $region38: #{lenet_forward.1} parent=0 // pred_check
    _
  $region39: #{lenet_forward.1} parent=0 // pred_check_branch
    %35 = sbr.rel (0) target = $region41
  $region40: #{lenet_forward.1} parent=0 // pred_region
    _
  $region41: #{lenet_forward.1} parent=0 // pred_fallthru
    _
  // Predicated region
  $region42: #{lenet_forward.1} parent=0 // pred_check
    _
  $region43: #{lenet_forward.1} parent=0 // pred_check_branch
    %37 = sbr.rel (0) target = $region45
  $region44: #{lenet_forward.1} parent=0 // pred_region
    _
  $region45: #{lenet_forward.1} parent=0 // pred_fallthru
    _
  %v39 = vld [vmem:[%s0] sm:$0xf]
  %v40 = vld [vmem:[%s0 + $0x4] sm:$0x7]
  %v41 = vld [vmem:[%s0 + $0x8] sm:$0xf]
  %v42 = vld [vmem:[%s0 + $0xc] sm:$0x7]
  %v43 = vld [vmem:[%s0 + $0x10] sm:$0xf]
  %v44 = vld [vmem:[%s0 + $0x14] sm:$0x7]
  %v45 = vld [vmem:[%s0 + $0x18] sm:$0xf]
  %v46 = vld [vmem:[%s0 + $0x1c] sm:$0x7]
  %v47 = vld [vmem:[%s0 + $0x20] sm:$0xf]
  %v48 = vld [vmem:[%s0 + $0x24] sm:$0x7]
  %v49 = vld [vmem:[%s0 + $0x28] sm:$0xf]
  %v50 = vld [vmem:[%s0 + $0x2c] sm:$0x7]
  %v51 = vld [vmem:[%s0 + $0x30] sm:$0xf]
  %v52 = vld [vmem:[%s0 + $0x34] sm:$0x7]
  %v53 = vld [vmem:[%s0 + $0x38] sm:$0xf]
  %v54 = vld [vmem:[%s0 + $0x3c] sm:$0x7]
  %vm55 = vcmask 257024
  %56 = vst.msk [vmem:[#allocation2] sm:$0xf] %vm55, %v39
  %vm57 = vcmask 256000
  %58 = vst.msk [vmem:[#allocation2 + $0x8] sm:$0x7] %vm57, %v40
  %59 = vst.msk [vmem:[#allocation2 + $0x10] sm:$0xf] %vm55, %v41
  %60 = vst.msk [vmem:[#allocation2 + $0x18] sm:$0x7] %vm57, %v42
  %61 = vst.msk [vmem:[#allocation2 + $0x20] sm:$0xf] %vm55, %v43
  %62 = vst.msk [vmem:[#allocation2 + $0x28] sm:$0x7] %vm57, %v44
  %63 = vst.msk [vmem:[#allocation2 + $0x30] sm:$0xf] %vm55, %v45
  %64 = vst.msk [vmem:[#allocation2 + $0x38] sm:$0x7] %vm57, %v46
  %65 = vst.msk [vmem:[#allocation2 + $0x40] sm:$0xf] %vm55, %v47
  %66 = vst.msk [vmem:[#allocation2 + $0x48] sm:$0x7] %vm57, %v48
  %67 = vst.msk [vmem:[#allocation2 + $0x50] sm:$0xf] %vm55, %v49
  %68 = vst.msk [vmem:[#allocation2 + $0x58] sm:$0x7] %vm57, %v50
  %69 = vst.msk [vmem:[#allocation2 + $0x60] sm:$0xf] %vm55, %v51
  %70 = vst.msk [vmem:[#allocation2 + $0x68] sm:$0x7] %vm57, %v52
  %71 = vst.msk [vmem:[#allocation2 + $0x70] sm:$0xf] %vm55, %v53
  %72 = vst.msk [vmem:[#allocation2 + $0x78] sm:$0x7] %vm57, %v54
  %s73 = scalar_lea.vmem %s0, 64
  %v74 = vld [vmem:[%s73] sm:$0xf]
  %v75 = vld [vmem:[%s73 + $0x4] sm:$0x7]
  %v76 = vld [vmem:[%s73 + $0x8] sm:$0xf]
  %v77 = vld [vmem:[%s73 + $0xc] sm:$0x7]
  %v78 = vld [vmem:[%s73 + $0x10] sm:$0xf]
  %v79 = vld [vmem:[%s73 + $0x14] sm:$0x7]
  %v80 = vld [vmem:[%s73 + $0x18] sm:$0xf]
  %v81 = vld [vmem:[%s73 + $0x1c] sm:$0x7]
  %v82 = vld [vmem:[%s73 + $0x20] sm:$0xf]
  %v83 = vld [vmem:[%s73 + $0x24] sm:$0x7]
  %v84 = vld [vmem:[%s73 + $0x28] sm:$0xf]
  %v85 = vld [vmem:[%s73 + $0x2c] sm:$0x7]
  %v86 = vld [vmem:[%s73 + $0x30] sm:$0xf]
  %v87 = vld [vmem:[%s73 + $0x34] sm:$0x7]
  %v88 = vld [vmem:[%s73 + $0x38] sm:$0xf]
  %v89 = vld [vmem:[%s73 + $0x3c] sm:$0x7]
  %106 = vrot.lane.b32.xlu0 %v74, 32
  %v107 = vpop.permute.xlu0 %106
  %108 = vrot.lane.b32.xlu0 %v75, 32
  %v109 = vpop.permute.xlu0 %108
  %110 = vrot.lane.b32.xlu0 %v76, 32
  %v111 = vpop.permute.xlu0 %110
  %112 = vrot.lane.b32.xlu0 %v77, 32
  %v113 = vpop.permute.xlu0 %112
  %114 = vrot.lane.b32.xlu0 %v78, 32
  %v115 = vpop.permute.xlu0 %114
  %116 = vrot.lane.b32.xlu0 %v79, 32
  %v117 = vpop.permute.xlu0 %116
  %118 = vrot.lane.b32.xlu0 %v80, 32
  %v119 = vpop.permute.xlu0 %118
  %120 = vrot.lane.b32.xlu0 %v81, 32
  %v121 = vpop.permute.xlu0 %120
  %122 = vrot.lane.b32.xlu0 %v82, 32
  %v123 = vpop.permute.xlu0 %122
  %124 = vrot.lane.b32.xlu0 %v83, 32
  %v125 = vpop.permute.xlu0 %124
  %126 = vrot.lane.b32.xlu0 %v84, 32
  %v127 = vpop.permute.xlu0 %126
  %128 = vrot.lane.b32.xlu0 %v85, 32
  %v129 = vpop.permute.xlu0 %128
  %130 = vrot.lane.b32.xlu0 %v86, 32
  %v131 = vpop.permute.xlu0 %130
  %132 = vrot.lane.b32.xlu0 %v87, 32
  %v133 = vpop.permute.xlu0 %132
  %134 = vrot.lane.b32.xlu0 %v88, 32
  %v135 = vpop.permute.xlu0 %134
  %136 = vrot.lane.b32.xlu0 %v89, 32
  %v137 = vpop.permute.xlu0 %136
  %vm154 = vcmask 519424
  %155 = vst.msk [vmem:[#allocation2] sm:$0xf] %vm154, %v107
  %vm156 = vcmask 518400
  %157 = vst.msk [vmem:[#allocation2 + $0x8] sm:$0x7] %vm156, %v109
  %158 = vst.msk [vmem:[#allocation2 + $0x10] sm:$0xf] %vm154, %v111
  %159 = vst.msk [vmem:[#allocation2 + $0x18] sm:$0x7] %vm156, %v113
  %160 = vst.msk [vmem:[#allocation2 + $0x20] sm:$0xf] %vm154, %v115
  %161 = vst.msk [vmem:[#allocation2 + $0x28] sm:$0x7] %vm156, %v117
  %162 = vst.msk [vmem:[#allocation2 + $0x30] sm:$0xf] %vm154, %v119
  %163 = vst.msk [vmem:[#allocation2 + $0x38] sm:$0x7] %vm156, %v121
  %164 = vst.msk [vmem:[#allocation2 + $0x40] sm:$0xf] %vm154, %v123
  %165 = vst.msk [vmem:[#allocation2 + $0x48] sm:$0x7] %vm156, %v125
  %166 = vst.msk [vmem:[#allocation2 + $0x50] sm:$0xf] %vm154, %v127
  %167 = vst.msk [vmem:[#allocation2 + $0x58] sm:$0x7] %vm156, %v129
  %168 = vst.msk [vmem:[#allocation2 + $0x60] sm:$0xf] %vm154, %v131
  %169 = vst.msk [vmem:[#allocation2 + $0x68] sm:$0x7] %vm156, %v133
  %170 = vst.msk [vmem:[#allocation2 + $0x70] sm:$0xf] %vm154, %v135
  %171 = vst.msk [vmem:[#allocation2 + $0x78] sm:$0x7] %vm156, %v137
  %v172 = vld [vmem:[%s0] sm:$0xf]
  %v173 = vld [vmem:[%s0 + $0x4] sm:$0xf]
  %v174 = vld [vmem:[%s0 + $0x8] sm:$0xf]
  %v175 = vld [vmem:[%s0 + $0xc] sm:$0xf]
  %v176 = vld [vmem:[%s0 + $0x10] sm:$0xf]
  %v177 = vld [vmem:[%s0 + $0x14] sm:$0xf]
  %v178 = vld [vmem:[%s0 + $0x18] sm:$0xf]
  %v179 = vld [vmem:[%s0 + $0x1c] sm:$0xf]
  %v180 = vld [vmem:[%s0 + $0x20] sm:$0xf]
  %v181 = vld [vmem:[%s0 + $0x24] sm:$0xf]
  %v182 = vld [vmem:[%s0 + $0x28] sm:$0xf]
  %v183 = vld [vmem:[%s0 + $0x2c] sm:$0xf]
  %v184 = vld [vmem:[%s0 + $0x30] sm:$0xf]
  %v185 = vld [vmem:[%s0 + $0x34] sm:$0xf]
  %v186 = vld [vmem:[%s0 + $0x38] sm:$0xf]
  %v187 = vld [vmem:[%s0 + $0x3c] sm:$0xf]
  %vm188 = vsmask.f32 3328
  %vm189 = vsmask.f32 7440
  %vm190 = vmor %vm188, %vm189
  %v192 = vshrl.u32 %v172, 16
  %v194 = vrot.slane %v192, 4
  %v195 = vshll.u32 %v172, 16
  %v197 = vrot.slane %v195, 5
  %v198 = vor.u32 %v194, %v197
  %v199 = vrot.slane %v198, 4
  %v201 = vshll.u32 %v173, 16
  %v203 = vrot.slane %v201, 5
  %v204 = vsel %vm190, %v199, %v203
  %v205 = vshrl.u32 %v173, 16
  %v207 = vrot.slane %v205, 4
  %v208 = vor.u32 %v207, %v203
  %v209 = vrot.slane %v208, 4
  %v211 = vshrl.u32 %v174, 16
  %v213 = vrot.slane %v211, 4
  %v214 = vshll.u32 %v174, 16
  %v216 = vrot.slane %v214, 5
  %v217 = vor.u32 %v213, %v216
  %v218 = vrot.slane %v217, 4
  %v220 = vshll.u32 %v175, 16
  %v222 = vrot.slane %v220, 5
  %v223 = vsel %vm190, %v218, %v222
  %v224 = vshrl.u32 %v175, 16
  %v226 = vrot.slane %v224, 4
  %v227 = vor.u32 %v226, %v222
  %v228 = vrot.slane %v227, 4
  %v230 = vshrl.u32 %v176, 16
  %v232 = vrot.slane %v230, 4
  %v233 = vshll.u32 %v176, 16
  %v235 = vrot.slane %v233, 5
  %v236 = vor.u32 %v232, %v235
  %v237 = vrot.slane %v236, 4
  %v239 = vshll.u32 %v177, 16
  %v241 = vrot.slane %v239, 5
  %v242 = vsel %vm190, %v237, %v241
  %v243 = vshrl.u32 %v177, 16
  %v245 = vrot.slane %v243, 4
  %v246 = vor.u32 %v245, %v241
  %v247 = vrot.slane %v246, 4
  %v249 = vshrl.u32 %v178, 16
  %v251 = vrot.slane %v249, 4
  %v252 = vshll.u32 %v178, 16
  %v254 = vrot.slane %v252, 5
  %v255 = vor.u32 %v251, %v254
  %v256 = vrot.slane %v255, 4
  %v258 = vshll.u32 %v179, 16
  %v260 = vrot.slane %v258, 5
  %v261 = vsel %vm190, %v256, %v260
  %v262 = vshrl.u32 %v179, 16
  %v264 = vrot.slane %v262, 4
  %v265 = vor.u32 %v264, %v260
  %v266 = vrot.slane %v265, 4
  %v268 = vshrl.u32 %v180, 16
  %v270 = vrot.slane %v268, 4
  %v271 = vshll.u32 %v180, 16
  %v273 = vrot.slane %v271, 5
  %v274 = vor.u32 %v270, %v273
  %v275 = vrot.slane %v274, 4
  %v277 = vshll.u32 %v181, 16
  %v279 = vrot.slane %v277, 5
  %v280 = vsel %vm190, %v275, %v279
  %v281 = vshrl.u32 %v181, 16
  %v283 = vrot.slane %v281, 4
  %v284 = vor.u32 %v283, %v279
  %v285 = vrot.slane %v284, 4
  %v287 = vshrl.u32 %v182, 16
  %v289 = vrot.slane %v287, 4
  %v290 = vshll.u32 %v182, 16
  %v292 = vrot.slane %v290, 5
  %v293 = vor.u32 %v289, %v292
  %v294 = vrot.slane %v293, 4
  %v296 = vshll.u32 %v183, 16
  %v298 = vrot.slane %v296, 5
  %v299 = vsel %vm190, %v294, %v298
  %v300 = vshrl.u32 %v183, 16
  %v302 = vrot.slane %v300, 4
  %v303 = vor.u32 %v302, %v298
  %v304 = vrot.slane %v303, 4
  %v306 = vshrl.u32 %v184, 16
  %v308 = vrot.slane %v306, 4
  %v309 = vshll.u32 %v184, 16
  %v311 = vrot.slane %v309, 5
  %v312 = vor.u32 %v308, %v311
  %v313 = vrot.slane %v312, 4
  %v315 = vshll.u32 %v185, 16
  %v317 = vrot.slane %v315, 5
  %v318 = vsel %vm190, %v313, %v317
  %v319 = vshrl.u32 %v185, 16
  %v321 = vrot.slane %v319, 4
  %v322 = vor.u32 %v321, %v317
  %v323 = vrot.slane %v322, 4
  %v325 = vshrl.u32 %v186, 16
  %v327 = vrot.slane %v325, 4
  %v328 = vshll.u32 %v186, 16
  %v330 = vrot.slane %v328, 5
  %v331 = vor.u32 %v327, %v330
  %v332 = vrot.slane %v331, 4
  %v334 = vshll.u32 %v187, 16
  %v336 = vrot.slane %v334, 5
  %v337 = vsel %vm190, %v332, %v336
  %v338 = vshrl.u32 %v187, 16
  %v340 = vrot.slane %v338, 4
  %v341 = vor.u32 %v340, %v336
  %v342 = vrot.slane %v341, 4
  %343 = vrot.lane.b32.xlu0 %v204, 64
  %v344 = vpop.permute.xlu0 %343
  %345 = vrot.lane.b32.xlu0 %v209, 64
  %v346 = vpop.permute.xlu0 %345
  %347 = vrot.lane.b32.xlu0 %v223, 64
  %v348 = vpop.permute.xlu0 %347
  %349 = vrot.lane.b32.xlu0 %v228, 64
  %v350 = vpop.permute.xlu0 %349
  %351 = vrot.lane.b32.xlu0 %v242, 64
  %v352 = vpop.permute.xlu0 %351
  %353 = vrot.lane.b32.xlu0 %v247, 64
  %v354 = vpop.permute.xlu0 %353
  %355 = vrot.lane.b32.xlu0 %v261, 64
  %v356 = vpop.permute.xlu0 %355
  %357 = vrot.lane.b32.xlu0 %v266, 64
  %v358 = vpop.permute.xlu0 %357
  %359 = vrot.lane.b32.xlu0 %v280, 64
  %v360 = vpop.permute.xlu0 %359
  %361 = vrot.lane.b32.xlu0 %v285, 64
  %v362 = vpop.permute.xlu0 %361
  %363 = vrot.lane.b32.xlu0 %v299, 64
  %v364 = vpop.permute.xlu0 %363
  %365 = vrot.lane.b32.xlu0 %v304, 64
  %v366 = vpop.permute.xlu0 %365
  %367 = vrot.lane.b32.xlu0 %v318, 64
  %v368 = vpop.permute.xlu0 %367
  %369 = vrot.lane.b32.xlu0 %v323, 64
  %v370 = vpop.permute.xlu0 %369
  %371 = vrot.lane.b32.xlu0 %v337, 64
  %v372 = vpop.permute.xlu0 %371
  %373 = vrot.lane.b32.xlu0 %v342, 64
  %v374 = vpop.permute.xlu0 %373
  %vm391 = vcmask 781824
  %392 = vst.msk [vmem:[#allocation2] sm:$0xf] %vm391, %v344
  %vm393 = vcmask 780800
  %394 = vst.msk [vmem:[#allocation2 + $0x8] sm:$0x7] %vm393, %v346
  %395 = vst.msk [vmem:[#allocation2 + $0x10] sm:$0xf] %vm391, %v348
  %396 = vst.msk [vmem:[#allocation2 + $0x18] sm:$0x7] %vm393, %v350
  %397 = vst.msk [vmem:[#allocation2 + $0x20] sm:$0xf] %vm391, %v352
  %398 = vst.msk [vmem:[#allocation2 + $0x28] sm:$0x7] %vm393, %v354
  %399 = vst.msk [vmem:[#allocation2 + $0x30] sm:$0xf] %vm391, %v356
  %400 = vst.msk [vmem:[#allocation2 + $0x38] sm:$0x7] %vm393, %v358
  %401 = vst.msk [vmem:[#allocation2 + $0x40] sm:$0xf] %vm391, %v360
  %402 = vst.msk [vmem:[#allocation2 + $0x48] sm:$0x7] %vm393, %v362
  %403 = vst.msk [vmem:[#allocation2 + $0x50] sm:$0xf] %vm391, %v364
  %404 = vst.msk [vmem:[#allocation2 + $0x58] sm:$0x7] %vm393, %v366
  %405 = vst.msk [vmem:[#allocation2 + $0x60] sm:$0xf] %vm391, %v368
  %406 = vst.msk [vmem:[#allocation2 + $0x68] sm:$0x7] %vm393, %v370
  %407 = vst.msk [vmem:[#allocation2 + $0x70] sm:$0xf] %vm391, %v372
  %408 = vst.msk [vmem:[#allocation2 + $0x78] sm:$0x7] %vm393, %v374
  %v409 = vld [vmem:[%s73] sm:$0xf]
  %v410 = vld [vmem:[%s73 + $0x4] sm:$0xf]
  %v411 = vld [vmem:[%s73 + $0x8] sm:$0xf]
  %v412 = vld [vmem:[%s73 + $0xc] sm:$0xf]
  %v413 = vld [vmem:[%s73 + $0x10] sm:$0xf]
  %v414 = vld [vmem:[%s73 + $0x14] sm:$0xf]
  %v415 = vld [vmem:[%s73 + $0x18] sm:$0xf]
  %v416 = vld [vmem:[%s73 + $0x1c] sm:$0xf]
  %v417 = vld [vmem:[%s73 + $0x20] sm:$0xf]
  %v418 = vld [vmem:[%s73 + $0x24] sm:$0xf]
  %v419 = vld [vmem:[%s73 + $0x28] sm:$0xf]
  %v420 = vld [vmem:[%s73 + $0x2c] sm:$0xf]
  %v421 = vld [vmem:[%s73 + $0x30] sm:$0xf]
  %v422 = vld [vmem:[%s73 + $0x34] sm:$0xf]
  %v423 = vld [vmem:[%s73 + $0x38] sm:$0xf]
  %v424 = vld [vmem:[%s73 + $0x3c] sm:$0xf]
  %v426 = vshrl.u32 %v409, 16
  %v428 = vrot.slane %v426, 4
  %v429 = vshll.u32 %v409, 16
  %v431 = vrot.slane %v429, 5
  %v432 = vor.u32 %v428, %v431
  %v433 = vrot.slane %v432, 4
  %v435 = vshll.u32 %v410, 16
  %v437 = vrot.slane %v435, 5
  %v438 = vsel %vm190, %v433, %v437
  %v439 = vshrl.u32 %v410, 16
  %v441 = vrot.slane %v439, 4
  %v442 = vor.u32 %v441, %v437
  %v443 = vrot.slane %v442, 4
  %v445 = vshrl.u32 %v411, 16
  %v447 = vrot.slane %v445, 4
  %v448 = vshll.u32 %v411, 16
  %v450 = vrot.slane %v448, 5
  %v451 = vor.u32 %v447, %v450
  %v452 = vrot.slane %v451, 4
  %v454 = vshll.u32 %v412, 16
  %v456 = vrot.slane %v454, 5
  %v457 = vsel %vm190, %v452, %v456
  %v458 = vshrl.u32 %v412, 16
  %v460 = vrot.slane %v458, 4
  %v461 = vor.u32 %v460, %v456
  %v462 = vrot.slane %v461, 4
  %v464 = vshrl.u32 %v413, 16
  %v466 = vrot.slane %v464, 4
  %v467 = vshll.u32 %v413, 16
  %v469 = vrot.slane %v467, 5
  %v470 = vor.u32 %v466, %v469
  %v471 = vrot.slane %v470, 4
  %v473 = vshll.u32 %v414, 16
  %v475 = vrot.slane %v473, 5
  %v476 = vsel %vm190, %v471, %v475
  %v477 = vshrl.u32 %v414, 16
  %v479 = vrot.slane %v477, 4
  %v480 = vor.u32 %v479, %v475
  %v481 = vrot.slane %v480, 4
  %v483 = vshrl.u32 %v415, 16
  %v485 = vrot.slane %v483, 4
  %v486 = vshll.u32 %v415, 16
  %v488 = vrot.slane %v486, 5
  %v489 = vor.u32 %v485, %v488
  %v490 = vrot.slane %v489, 4
  %v492 = vshll.u32 %v416, 16
  %v494 = vrot.slane %v492, 5
  %v495 = vsel %vm190, %v490, %v494
  %v496 = vshrl.u32 %v416, 16
  %v498 = vrot.slane %v496, 4
  %v499 = vor.u32 %v498, %v494
  %v500 = vrot.slane %v499, 4
  %v502 = vshrl.u32 %v417, 16
  %v504 = vrot.slane %v502, 4
  %v505 = vshll.u32 %v417, 16
  %v507 = vrot.slane %v505, 5
  %v508 = vor.u32 %v504, %v507
  %v509 = vrot.slane %v508, 4
  %v511 = vshll.u32 %v418, 16
  %v513 = vrot.slane %v511, 5
  %v514 = vsel %vm190, %v509, %v513
  %v515 = vshrl.u32 %v418, 16
  %v517 = vrot.slane %v515, 4
  %v518 = vor.u32 %v517, %v513
  %v519 = vrot.slane %v518, 4
  %v521 = vshrl.u32 %v419, 16
  %v523 = vrot.slane %v521, 4
  %v524 = vshll.u32 %v419, 16
  %v526 = vrot.slane %v524, 5
  %v527 = vor.u32 %v523, %v526
  %v528 = vrot.slane %v527, 4
  %v530 = vshll.u32 %v420, 16
  %v532 = vrot.slane %v530, 5
  %v533 = vsel %vm190, %v528, %v532
  %v534 = vshrl.u32 %v420, 16
  %v536 = vrot.slane %v534, 4
  %v537 = vor.u32 %v536, %v532
  %v538 = vrot.slane %v537, 4
  %v540 = vshrl.u32 %v421, 16
  %v542 = vrot.slane %v540, 4
  %v543 = vshll.u32 %v421, 16
  %v545 = vrot.slane %v543, 5
  %v546 = vor.u32 %v542, %v545
  %v547 = vrot.slane %v546, 4
  %v549 = vshll.u32 %v422, 16
  %v551 = vrot.slane %v549, 5
  %v552 = vsel %vm190, %v547, %v551
  %v553 = vshrl.u32 %v422, 16
  %v555 = vrot.slane %v553, 4
  %v556 = vor.u32 %v555, %v551
  %v557 = vrot.slane %v556, 4
  %v559 = vshrl.u32 %v423, 16
  %v561 = vrot.slane %v559, 4
  %v562 = vshll.u32 %v423, 16
  %v564 = vrot.slane %v562, 5
  %v565 = vor.u32 %v561, %v564
  %v566 = vrot.slane %v565, 4
  %v568 = vshll.u32 %v424, 16
  %v570 = vrot.slane %v568, 5
  %v571 = vsel %vm190, %v566, %v570
  %v572 = vshrl.u32 %v424, 16
  %v574 = vrot.slane %v572, 4
  %v575 = vor.u32 %v574, %v570
  %v576 = vrot.slane %v575, 4
  %577 = vrot.lane.b32.xlu0 %v438, 96
  %v578 = vpop.permute.xlu0 %577
  %579 = vrot.lane.b32.xlu0 %v443, 96
  %v580 = vpop.permute.xlu0 %579
  %581 = vrot.lane.b32.xlu0 %v457, 96
  %v582 = vpop.permute.xlu0 %581
  %583 = vrot.lane.b32.xlu0 %v462, 96
  %v584 = vpop.permute.xlu0 %583
  %585 = vrot.lane.b32.xlu0 %v476, 96
  %v586 = vpop.permute.xlu0 %585
  %587 = vrot.lane.b32.xlu0 %v481, 96
  %v588 = vpop.permute.xlu0 %587
  %589 = vrot.lane.b32.xlu0 %v495, 96
  %v590 = vpop.permute.xlu0 %589
  %591 = vrot.lane.b32.xlu0 %v500, 96
  %v592 = vpop.permute.xlu0 %591
  %593 = vrot.lane.b32.xlu0 %v514, 96
  %v594 = vpop.permute.xlu0 %593
  %595 = vrot.lane.b32.xlu0 %v519, 96
  %v596 = vpop.permute.xlu0 %595
  %597 = vrot.lane.b32.xlu0 %v533, 96
  %v598 = vpop.permute.xlu0 %597
  %599 = vrot.lane.b32.xlu0 %v538, 96
  %v600 = vpop.permute.xlu0 %599
  %601 = vrot.lane.b32.xlu0 %v552, 96
  %v602 = vpop.permute.xlu0 %601
  %603 = vrot.lane.b32.xlu0 %v557, 96
  %v604 = vpop.permute.xlu0 %603
  %605 = vrot.lane.b32.xlu0 %v571, 96
  %v606 = vpop.permute.xlu0 %605
  %607 = vrot.lane.b32.xlu0 %v576, 96
  %v608 = vpop.permute.xlu0 %607
  %vm625 = vcmask 1044224
  %626 = vst.msk [vmem:[#allocation2] sm:$0xf] %vm625, %v578
  %vm627 = vcmask 1043200
  %628 = vst.msk [vmem:[#allocation2 + $0x8] sm:$0x7] %vm627, %v580
  %629 = vst.msk [vmem:[#allocation2 + $0x10] sm:$0xf] %vm625, %v582
  %630 = vst.msk [vmem:[#allocation2 + $0x18] sm:$0x7] %vm627, %v584
  %631 = vst.msk [vmem:[#allocation2 + $0x20] sm:$0xf] %vm625, %v586
  %632 = vst.msk [vmem:[#allocation2 + $0x28] sm:$0x7] %vm627, %v588
  %633 = vst.msk [vmem:[#allocation2 + $0x30] sm:$0xf] %vm625, %v590
  %634 = vst.msk [vmem:[#allocation2 + $0x38] sm:$0x7] %vm627, %v592
  %635 = vst.msk [vmem:[#allocation2 + $0x40] sm:$0xf] %vm625, %v594
  %636 = vst.msk [vmem:[#allocation2 + $0x48] sm:$0x7] %vm627, %v596
  %637 = vst.msk [vmem:[#allocation2 + $0x50] sm:$0xf] %vm625, %v598
  %638 = vst.msk [vmem:[#allocation2 + $0x58] sm:$0x7] %vm627, %v600
  %639 = vst.msk [vmem:[#allocation2 + $0x60] sm:$0xf] %vm625, %v602
  %640 = vst.msk [vmem:[#allocation2 + $0x68] sm:$0x7] %vm627, %v604
  %641 = vst.msk [vmem:[#allocation2 + $0x70] sm:$0xf] %vm625, %v606
  %642 = vst.msk [vmem:[#allocation2 + $0x78] sm:$0x7] %vm627, %v608
  %v643 = vld [vmem:[%s0] sm:$0xe]
  %v644 = vld [vmem:[%s0 + $0x4] sm:$0xf]
  %v645 = vld [vmem:[%s0 + $0x8] sm:$0xe]
  %v646 = vld [vmem:[%s0 + $0xc] sm:$0xf]
  %v647 = vld [vmem:[%s0 + $0x10] sm:$0xe]
  %v648 = vld [vmem:[%s0 + $0x14] sm:$0xf]
  %v649 = vld [vmem:[%s0 + $0x18] sm:$0xe]
  %v650 = vld [vmem:[%s0 + $0x1c] sm:$0xf]
  %v651 = vld [vmem:[%s0 + $0x20] sm:$0xe]
  %v652 = vld [vmem:[%s0 + $0x24] sm:$0xf]
  %v653 = vld [vmem:[%s0 + $0x28] sm:$0xe]
  %v654 = vld [vmem:[%s0 + $0x2c] sm:$0xf]
  %v655 = vld [vmem:[%s0 + $0x30] sm:$0xe]
  %v656 = vld [vmem:[%s0 + $0x34] sm:$0xf]
  %v657 = vld [vmem:[%s0 + $0x38] sm:$0xe]
  %v658 = vld [vmem:[%s0 + $0x3c] sm:$0xf]
  %vm675 = vcmask 1042432
  %vm676 = vcmask 1046532
  %vm677 = vmor %vm675, %vm676
  %v678 = vrot.slane %v643, 5
  %v679 = vrot.slane %v678, 4
  %v680 = vrot.slane %v644, 5
  %v681 = vsel %vm677, %v679, %v680
  %v682 = vrot.slane %v680, 4
  %v683 = vrot.slane %v645, 5
  %v684 = vrot.slane %v683, 4
  %v685 = vrot.slane %v646, 5
  %v686 = vsel %vm677, %v684, %v685
  %v687 = vrot.slane %v685, 4
  %v688 = vrot.slane %v647, 5
  %v689 = vrot.slane %v688, 4
  %v690 = vrot.slane %v648, 5
  %v691 = vsel %vm677, %v689, %v690
  %v692 = vrot.slane %v690, 4
  %v693 = vrot.slane %v649, 5
  %v694 = vrot.slane %v693, 4
  %v695 = vrot.slane %v650, 5
  %v696 = vsel %vm677, %v694, %v695
  %v697 = vrot.slane %v695, 4
  %v698 = vrot.slane %v651, 5
  %v699 = vrot.slane %v698, 4
  %v700 = vrot.slane %v652, 5
  %v701 = vsel %vm677, %v699, %v700
  %v702 = vrot.slane %v700, 4
  %v703 = vrot.slane %v653, 5
  %v704 = vrot.slane %v703, 4
  %v705 = vrot.slane %v654, 5
  %v706 = vsel %vm677, %v704, %v705
  %v707 = vrot.slane %v705, 4
  %v708 = vrot.slane %v655, 5
  %v709 = vrot.slane %v708, 4
  %v710 = vrot.slane %v656, 5
  %v711 = vsel %vm677, %v709, %v710
  %v712 = vrot.slane %v710, 4
  %v713 = vrot.slane %v657, 5
  %v714 = vrot.slane %v713, 4
  %v715 = vrot.slane %v658, 5
  %v716 = vsel %vm677, %v714, %v715
  %v717 = vrot.slane %v715, 4
  %734 = vst.msk [vmem:[#allocation2 + $0x4] sm:$0xf] %vm55, %v681
  %735 = vst.msk [vmem:[#allocation2 + $0xc] sm:$0x7] %vm57, %v682
  %736 = vst.msk [vmem:[#allocation2 + $0x14] sm:$0xf] %vm55, %v686
  %737 = vst.msk [vmem:[#allocation2 + $0x1c] sm:$0x7] %vm57, %v687
  %738 = vst.msk [vmem:[#allocation2 + $0x24] sm:$0xf] %vm55, %v691
  %739 = vst.msk [vmem:[#allocation2 + $0x2c] sm:$0x7] %vm57, %v692
  %740 = vst.msk [vmem:[#allocation2 + $0x34] sm:$0xf] %vm55, %v696
  %741 = vst.msk [vmem:[#allocation2 + $0x3c] sm:$0x7] %vm57, %v697
  %742 = vst.msk [vmem:[#allocation2 + $0x44] sm:$0xf] %vm55, %v701
  %743 = vst.msk [vmem:[#allocation2 + $0x4c] sm:$0x7] %vm57, %v702
  %744 = vst.msk [vmem:[#allocation2 + $0x54] sm:$0xf] %vm55, %v706
  %745 = vst.msk [vmem:[#allocation2 + $0x5c] sm:$0x7] %vm57, %v707
  %746 = vst.msk [vmem:[#allocation2 + $0x64] sm:$0xf] %vm55, %v711
  %747 = vst.msk [vmem:[#allocation2 + $0x6c] sm:$0x7] %vm57, %v712
  %748 = vst.msk [vmem:[#allocation2 + $0x74] sm:$0xf] %vm55, %v716
  %749 = vst.msk [vmem:[#allocation2 + $0x7c] sm:$0x7] %vm57, %v717
  %v750 = vld [vmem:[%s73] sm:$0xe]
  %v751 = vld [vmem:[%s73 + $0x4] sm:$0xf]
  %v752 = vld [vmem:[%s73 + $0x8] sm:$0xe]
  %v753 = vld [vmem:[%s73 + $0xc] sm:$0xf]
  %v754 = vld [vmem:[%s73 + $0x10] sm:$0xe]
  %v755 = vld [vmem:[%s73 + $0x14] sm:$0xf]
  %v756 = vld [vmem:[%s73 + $0x18] sm:$0xe]
  %v757 = vld [vmem:[%s73 + $0x1c] sm:$0xf]
  %v758 = vld [vmem:[%s73 + $0x20] sm:$0xe]
  %v759 = vld [vmem:[%s73 + $0x24] sm:$0xf]
  %v760 = vld [vmem:[%s73 + $0x28] sm:$0xe]
  %v761 = vld [vmem:[%s73 + $0x2c] sm:$0xf]
  %v762 = vld [vmem:[%s73 + $0x30] sm:$0xe]
  %v763 = vld [vmem:[%s73 + $0x34] sm:$0xf]
  %v764 = vld [vmem:[%s73 + $0x38] sm:$0xe]
  %v765 = vld [vmem:[%s73 + $0x3c] sm:$0xf]
  %v782 = vrot.slane %v750, 5
  %v783 = vrot.slane %v782, 4
  %v784 = vrot.slane %v751, 5
  %v785 = vsel %vm677, %v783, %v784
  %v786 = vrot.slane %v784, 4
  %v787 = vrot.slane %v752, 5
  %v788 = vrot.slane %v787, 4
  %v789 = vrot.slane %v753, 5
  %v790 = vsel %vm677, %v788, %v789
  %v791 = vrot.slane %v789, 4
  %v792 = vrot.slane %v754, 5
  %v793 = vrot.slane %v792, 4
  %v794 = vrot.slane %v755, 5
  %v795 = vsel %vm677, %v793, %v794
  %v796 = vrot.slane %v794, 4
  %v797 = vrot.slane %v756, 5
  %v798 = vrot.slane %v797, 4
  %v799 = vrot.slane %v757, 5
  %v800 = vsel %vm677, %v798, %v799
  %v801 = vrot.slane %v799, 4
  %v802 = vrot.slane %v758, 5
  %v803 = vrot.slane %v802, 4
  %v804 = vrot.slane %v759, 5
  %v805 = vsel %vm677, %v803, %v804
  %v806 = vrot.slane %v804, 4
  %v807 = vrot.slane %v760, 5
  %v808 = vrot.slane %v807, 4
  %v809 = vrot.slane %v761, 5
  %v810 = vsel %vm677, %v808, %v809
  %v811 = vrot.slane %v809, 4
  %v812 = vrot.slane %v762, 5
  %v813 = vrot.slane %v812, 4
  %v814 = vrot.slane %v763, 5
  %v815 = vsel %vm677, %v813, %v814
  %v816 = vrot.slane %v814, 4
  %v817 = vrot.slane %v764, 5
  %v818 = vrot.slane %v817, 4
  %v819 = vrot.slane %v765, 5
  %v820 = vsel %vm677, %v818, %v819
  %v821 = vrot.slane %v819, 4
  %822 = vrot.lane.b32.xlu0 %v785, 32
  %v823 = vpop.permute.xlu0 %822
  %824 = vrot.lane.b32.xlu0 %v786, 32
  %v825 = vpop.permute.xlu0 %824
  %826 = vrot.lane.b32.xlu0 %v790, 32
  %v827 = vpop.permute.xlu0 %826
  %828 = vrot.lane.b32.xlu0 %v791, 32
  %v829 = vpop.permute.xlu0 %828
  %830 = vrot.lane.b32.xlu0 %v795, 32
  %v831 = vpop.permute.xlu0 %830
  %832 = vrot.lane.b32.xlu0 %v796, 32
  %v833 = vpop.permute.xlu0 %832
  %834 = vrot.lane.b32.xlu0 %v800, 32
  %v835 = vpop.permute.xlu0 %834
  %836 = vrot.lane.b32.xlu0 %v801, 32
  %v837 = vpop.permute.xlu0 %836
  %838 = vrot.lane.b32.xlu0 %v805, 32
  %v839 = vpop.permute.xlu0 %838
  %840 = vrot.lane.b32.xlu0 %v806, 32
  %v841 = vpop.permute.xlu0 %840
  %842 = vrot.lane.b32.xlu0 %v810, 32
  %v843 = vpop.permute.xlu0 %842
  %844 = vrot.lane.b32.xlu0 %v811, 32
  %v845 = vpop.permute.xlu0 %844
  %846 = vrot.lane.b32.xlu0 %v815, 32
  %v847 = vpop.permute.xlu0 %846
  %848 = vrot.lane.b32.xlu0 %v816, 32
  %v849 = vpop.permute.xlu0 %848
  %850 = vrot.lane.b32.xlu0 %v820, 32
  %v851 = vpop.permute.xlu0 %850
  %852 = vrot.lane.b32.xlu0 %v821, 32
  %v853 = vpop.permute.xlu0 %852
  %870 = vst.msk [vmem:[#allocation2 + $0x4] sm:$0xf] %vm154, %v823
  %871 = vst.msk [vmem:[#allocation2 + $0xc] sm:$0x7] %vm156, %v825
  %872 = vst.msk [vmem:[#allocation2 + $0x14] sm:$0xf] %vm154, %v827
  %873 = vst.msk [vmem:[#allocation2 + $0x1c] sm:$0x7] %vm156, %v829
  %874 = vst.msk [vmem:[#allocation2 + $0x24] sm:$0xf] %vm154, %v831
  %875 = vst.msk [vmem:[#allocation2 + $0x2c] sm:$0x7] %vm156, %v833
  %876 = vst.msk [vmem:[#allocation2 + $0x34] sm:$0xf] %vm154, %v835
  %877 = vst.msk [vmem:[#allocation2 + $0x3c] sm:$0x7] %vm156, %v837
  %878 = vst.msk [vmem:[#allocation2 + $0x44] sm:$0xf] %vm154, %v839
  %879 = vst.msk [vmem:[#allocation2 + $0x4c] sm:$0x7] %vm156, %v841
  %880 = vst.msk [vmem:[#allocation2 + $0x54] sm:$0xf] %vm154, %v843
  %881 = vst.msk [vmem:[#allocation2 + $0x5c] sm:$0x7] %vm156, %v845
  %882 = vst.msk [vmem:[#allocation2 + $0x64] sm:$0xf] %vm154, %v847
  %883 = vst.msk [vmem:[#allocation2 + $0x6c] sm:$0x7] %vm156, %v849
  %884 = vst.msk [vmem:[#allocation2 + $0x74] sm:$0xf] %vm154, %v851
  %885 = vst.msk [vmem:[#allocation2 + $0x7c] sm:$0x7] %vm156, %v853
  %v886 = vld [vmem:[#allocation2] sm:$0xff]
  %v887 = vld [vmem:[#allocation2 + $0x8] sm:$0xff]
  %v888 = vld [vmem:[#allocation2 + $0x10] sm:$0xff]
  %v889 = vld [vmem:[#allocation2 + $0x18] sm:$0xff]
  %v890 = vld [vmem:[#allocation2 + $0x20] sm:$0xff]
  %v891 = vld [vmem:[#allocation2 + $0x28] sm:$0xff]
  %v892 = vld [vmem:[#allocation2 + $0x30] sm:$0xff]
  %v893 = vld [vmem:[#allocation2 + $0x38] sm:$0xff]
  %v894 = vld [vmem:[#allocation2 + $0x40] sm:$0xff]
  %v895 = vld [vmem:[#allocation2 + $0x48] sm:$0xff]
  %v896 = vld [vmem:[#allocation2 + $0x50] sm:$0xff]
  %v897 = vld [vmem:[#allocation2 + $0x58] sm:$0xff]
  %v898 = vld [vmem:[#allocation2 + $0x60] sm:$0xff]
  %v899 = vld [vmem:[#allocation2 + $0x68] sm:$0xff]
  %v900 = vld [vmem:[#allocation2 + $0x70] sm:$0xff]
  %v901 = vld [vmem:[#allocation2 + $0x78] sm:$0xff]
  %v902 = vld [vmem:[%s1] sm:$0xff]
  %v903 = vld [vmem:[%s1 + $0x8] sm:$0xf]
  %v904 = vld [vmem:[%s1 + $0xc] sm:$0xff]
  %v905 = vld [vmem:[%s1 + $0x14] sm:$0xf]
  %v906 = vld [vmem:[%s1 + $0x18] sm:$0xff]
  %v907 = vld [vmem:[%s1 + $0x20] sm:$0xf]
  %v908 = vld [vmem:[%s1 + $0x24] sm:$0xff]
  %v909 = vld [vmem:[%s1 + $0x2c] sm:$0xf]
  %v910 = vld [vmem:[%s1 + $0x30] sm:$0xff]
  %v911 = vld [vmem:[%s1 + $0x38] sm:$0xf]
  %v912 = vld [vmem:[%s1 + $0x3c] sm:$0xff]
  %v913 = vld [vmem:[%s1 + $0x44] sm:$0xf]
  %v914 = vld [vmem:[%s1 + $0x48] sm:$0xff]
  %v915 = vld [vmem:[%s1 + $0x50] sm:$0xf]
  %v916 = vld [vmem:[%s1 + $0x54] sm:$0xff]
  %v917 = vld [vmem:[%s1 + $0x5c] sm:$0xf]
  %v918 = vld [vmem:[%s1 + $0x60] sm:$0xff]
  %v919 = vld [vmem:[%s1 + $0x68] sm:$0xf]
  %v920 = vld [vmem:[%s1 + $0x6c] sm:$0xff]
  %v921 = vld [vmem:[%s1 + $0x74] sm:$0xf]
  %v922 = vld [vmem:[%s1 + $0x78] sm:$0xff]
  %v923 = vld [vmem:[%s1 + $0x80] sm:$0xf]
  %v924 = vld [vmem:[%s1 + $0x84] sm:$0xff]
  %v925 = vld [vmem:[%s1 + $0x8c] sm:$0xf]
  %v926 = vld [vmem:[%s1 + $0x90] sm:$0xff]
  %v927 = vld [vmem:[%s1 + $0x98] sm:$0xf]
  %v928 = vld [vmem:[%s1 + $0x9c] sm:$0xff]
  %v929 = vld [vmem:[%s1 + $0xa4] sm:$0xf]
  %v930 = vld [vmem:[%s1 + $0xa8] sm:$0xff]
  %v931 = vld [vmem:[%s1 + $0xb0] sm:$0xf]
  %v932 = vld [vmem:[%s1 + $0xb4] sm:$0xff]
  %v933 = vld [vmem:[%s1 + $0xbc] sm:$0xf]
  %v934 = vld [vmem:[%s1 + $0xc0] sm:$0xff]
  %v935 = vld [vmem:[%s1 + $0xc8] sm:$0xf]
  %v936 = vld [vmem:[%s1 + $0xcc] sm:$0xff]
  %v937 = vld [vmem:[%s1 + $0xd4] sm:$0xf]
  %v938 = vld [vmem:[%s1 + $0xd8] sm:$0xff]
  %v939 = vld [vmem:[%s1 + $0xe0] sm:$0xf]
  %v940 = vld [vmem:[%s1 + $0xe4] sm:$0xff]
  %v941 = vld [vmem:[%s1 + $0xec] sm:$0xf]
  %v942 = vld [vmem:[%s1 + $0xf0] sm:$0xff]
  %v943 = vld [vmem:[%s1 + $0xf8] sm:$0xf]
  %v944 = vld [vmem:[%s1 + $0xfc] sm:$0xff]
  %v945 = vld [vmem:[%s1 + $0x104] sm:$0xf]
  %v946 = vld [vmem:[%s1 + $0x108] sm:$0xff]
  %v947 = vld [vmem:[%s1 + $0x110] sm:$0xf]
  %v948 = vld [vmem:[%s1 + $0x114] sm:$0xff]
  %v949 = vld [vmem:[%s1 + $0x11c] sm:$0xf]
  %v966 = vunpack.c.l.b16 %v886
  %v967 = vunpack.c.h.b16 %v886
  %v968 = vunpack.c.l.b16 %v887
  %v969 = vunpack.c.h.b16 %v887
  %v970 = vunpack.c.l.b16 %v888
  %v971 = vunpack.c.h.b16 %v888
  %v972 = vunpack.c.l.b16 %v889
  %v973 = vunpack.c.h.b16 %v889
  %v974 = vunpack.c.l.b16 %v890
  %v975 = vunpack.c.h.b16 %v890
  %v976 = vunpack.c.l.b16 %v891
  %v977 = vunpack.c.h.b16 %v891
  %v978 = vunpack.c.l.b16 %v892
  %v979 = vunpack.c.h.b16 %v892
  %v980 = vunpack.c.l.b16 %v893
  %v981 = vunpack.c.h.b16 %v893
  %v982 = vunpack.c.l.b16 %v894
  %v983 = vunpack.c.h.b16 %v894
  %v984 = vunpack.c.l.b16 %v895
  %v985 = vunpack.c.h.b16 %v895
  %v986 = vunpack.c.l.b16 %v896
  %v987 = vunpack.c.h.b16 %v896
  %v988 = vunpack.c.l.b16 %v897
  %v989 = vunpack.c.h.b16 %v897
  %v990 = vunpack.c.l.b16 %v898
  %v991 = vunpack.c.h.b16 %v898
  %v992 = vunpack.c.l.b16 %v899
  %v993 = vunpack.c.h.b16 %v899
  %v994 = vunpack.c.l.b16 %v900
  %v995 = vunpack.c.h.b16 %v900
  %v996 = vunpack.c.l.b16 %v901
  %v997 = vunpack.c.h.b16 %v901
  %v998 = vpack.c.b16 %v968, %v966
  %v999 = vpack.c.b16 %v969, %v967
  %v1000 = vpack.c.b16 %v972, %v970
  %v1001 = vpack.c.b16 %v973, %v971
  %v1002 = vpack.c.b16 %v976, %v974
  %v1003 = vpack.c.b16 %v977, %v975
  %v1004 = vpack.c.b16 %v980, %v978
  %v1005 = vpack.c.b16 %v981, %v979
  %v1006 = vpack.c.b16 %v984, %v982
  %v1007 = vpack.c.b16 %v985, %v983
  %v1008 = vpack.c.b16 %v988, %v986
  %v1009 = vpack.c.b16 %v989, %v987
  %v1010 = vpack.c.b16 %v992, %v990
  %v1011 = vpack.c.b16 %v993, %v991
  %v1012 = vpack.c.b16 %v996, %v994
  %v1013 = vpack.c.b16 %v997, %v995
  %v1070 = vunpack.c.l.b16 %v902
  %v1071 = vunpack.c.h.b16 %v902
  %v1072 = vunpack.c.l.b16 %v903
  %v1073 = vunpack.c.l.b16 %v904
  %v1074 = vunpack.c.h.b16 %v904
  %v1075 = vunpack.c.l.b16 %v905
  %v1076 = vunpack.c.l.b16 %v906
  %v1077 = vunpack.c.h.b16 %v906
  %v1078 = vunpack.c.l.b16 %v907
  %v1079 = vunpack.c.l.b16 %v908
  %v1080 = vunpack.c.h.b16 %v908
  %v1081 = vunpack.c.l.b16 %v909
  %v1082 = vunpack.c.l.b16 %v910
  %v1083 = vunpack.c.h.b16 %v910
  %v1084 = vunpack.c.l.b16 %v911
  %v1085 = vunpack.c.l.b16 %v912
  %v1086 = vunpack.c.h.b16 %v912
  %v1087 = vunpack.c.l.b16 %v913
  %v1088 = vunpack.c.l.b16 %v914
  %v1089 = vunpack.c.h.b16 %v914
  %v1090 = vunpack.c.l.b16 %v915
  %v1091 = vunpack.c.l.b16 %v916
  %v1092 = vunpack.c.h.b16 %v916
  %v1093 = vunpack.c.l.b16 %v917
  %v1094 = vunpack.c.l.b16 %v918
  %v1095 = vunpack.c.h.b16 %v918
  %v1096 = vunpack.c.l.b16 %v919
  %v1097 = vunpack.c.l.b16 %v920
  %v1098 = vunpack.c.h.b16 %v920
  %v1099 = vunpack.c.l.b16 %v921
  %v1100 = vunpack.c.l.b16 %v922
  %v1101 = vunpack.c.h.b16 %v922
  %v1102 = vunpack.c.l.b16 %v923
  %v1103 = vunpack.c.l.b16 %v924
  %v1104 = vunpack.c.h.b16 %v924
  %v1105 = vunpack.c.l.b16 %v925
  %v1106 = vunpack.c.l.b16 %v926
  %v1107 = vunpack.c.h.b16 %v926
  %v1108 = vunpack.c.l.b16 %v927
  %v1109 = vunpack.c.l.b16 %v928
  %v1110 = vunpack.c.h.b16 %v928
  %v1111 = vunpack.c.l.b16 %v929
  %v1112 = vunpack.c.l.b16 %v930
  %v1113 = vunpack.c.h.b16 %v930
  %v1114 = vunpack.c.l.b16 %v931
  %v1115 = vunpack.c.l.b16 %v932
  %v1116 = vunpack.c.h.b16 %v932
  %v1117 = vunpack.c.l.b16 %v933
  %v1118 = vunpack.c.l.b16 %v934
  %v1119 = vunpack.c.h.b16 %v934
  %v1120 = vunpack.c.l.b16 %v935
  %v1121 = vunpack.c.l.b16 %v936
  %v1122 = vunpack.c.h.b16 %v936
  %v1123 = vunpack.c.l.b16 %v937
  %v1124 = vunpack.c.l.b16 %v938
  %v1125 = vunpack.c.h.b16 %v938
  %v1126 = vunpack.c.l.b16 %v939
  %v1127 = vunpack.c.l.b16 %v940
  %v1128 = vunpack.c.h.b16 %v940
  %v1129 = vunpack.c.l.b16 %v941
  %v1130 = vunpack.c.l.b16 %v942
  %v1131 = vunpack.c.h.b16 %v942
  %v1132 = vunpack.c.l.b16 %v943
  %v1133 = vunpack.c.l.b16 %v944
  %v1134 = vunpack.c.h.b16 %v944
  %v1135 = vunpack.c.l.b16 %v945
  %v1136 = vunpack.c.l.b16 %v946
  %v1137 = vunpack.c.h.b16 %v946
  %v1138 = vunpack.c.l.b16 %v947
  %v1139 = vunpack.c.l.b16 %v948
  %v1140 = vunpack.c.h.b16 %v948
  %v1141 = vunpack.c.l.b16 %v949
  %v1142 = vpack.c.b16 %v1073, %v1070
  %v1143 = vpack.c.b16 %v1074, %v1071
  %v1144 = vpack.c.b16 %v1075, %v1072
  %v1145 = vpack.c.b16 %v1079, %v1076
  %v1146 = vpack.c.b16 %v1080, %v1077
  %v1147 = vpack.c.b16 %v1081, %v1078
  %v1148 = vpack.c.b16 %v1085, %v1082
  %v1149 = vpack.c.b16 %v1086, %v1083
  %v1150 = vpack.c.b16 %v1087, %v1084
  %v1151 = vpack.c.b16 %v1091, %v1088
  %v1152 = vpack.c.b16 %v1092, %v1089
  %v1153 = vpack.c.b16 %v1093, %v1090
  %v1154 = vpack.c.b16 %v1097, %v1094
  %v1155 = vpack.c.b16 %v1098, %v1095
  %v1156 = vpack.c.b16 %v1099, %v1096
  %v1157 = vpack.c.b16 %v1103, %v1100
  %v1158 = vpack.c.b16 %v1104, %v1101
  %v1159 = vpack.c.b16 %v1105, %v1102
  %v1160 = vpack.c.b16 %v1109, %v1106
  %v1161 = vpack.c.b16 %v1110, %v1107
  %v1162 = vpack.c.b16 %v1111, %v1108
  %v1163 = vpack.c.b16 %v1115, %v1112
  %v1164 = vpack.c.b16 %v1116, %v1113
  %v1165 = vpack.c.b16 %v1117, %v1114
  %v1166 = vpack.c.b16 %v1121, %v1118
  %v1167 = vpack.c.b16 %v1122, %v1119
  %v1168 = vpack.c.b16 %v1123, %v1120
  %v1169 = vpack.c.b16 %v1127, %v1124
  %v1170 = vpack.c.b16 %v1128, %v1125
  %v1171 = vpack.c.b16 %v1129, %v1126
  %v1172 = vpack.c.b16 %v1133, %v1130
  %v1173 = vpack.c.b16 %v1134, %v1131
  %v1174 = vpack.c.b16 %v1135, %v1132
  %v1175 = vpack.c.b16 %v1139, %v1136
  %v1176 = vpack.c.b16 %v1140, %v1137
  %v1177 = vpack.c.b16 %v1141, %v1138
  %vm1214 = vcmask 523264
  %v1216 = vsel %vm1214, %v999, 0
  %v1219 = vsel %vm1214, %v1001, 0
  %v1222 = vsel %vm1214, %v1003, 0
  %v1225 = vsel %vm1214, %v1005, 0
  %v1228 = vsel %vm1214, %v1007, 0
  %v1231 = vsel %vm1214, %v1009, 0
  %v1234 = vsel %vm1214, %v1011, 0
  %v1237 = vsel %vm1214, %v1013, 0
  %1239 = vmatpush.bf16.msra.mxu0 %v1163
  %1240 = vmatpush.bf16.msra.mxu0 %v1160
  %1241 = vmatpush.bf16.msra.mxu0 %v1157
  %1242 = vmatpush.bf16.msra.mxu0 %v1154
  %1243 = vmatpush.bf16.msra.mxu0 %v1151
  %1244 = vmatpush.bf16.msra.mxu0 %v1148
  %1245 = vmatpush.bf16.msra.mxu0 %v1145
  %1246 = vmatpush.bf16.msra.mxu0 %v1142
  %1247 = vmatmul.bf16.gmra.mxu0 %v998
  %v1248 = vpop.f32.mrf.mxu0
  %v1249 = vadd.f32 0.0, %v1248
  %v1250 = vpop.f32.mrf.mxu0
  %v1251 = vadd.f32 0.0, %v1250
  %1252 = vmatmul.bf16.gmra.mxu0 %v1000
  %v1253 = vpop.f32.mrf.mxu0
  %v1254 = vadd.f32 0.0, %v1253
  %v1255 = vpop.f32.mrf.mxu0
  %v1256 = vadd.f32 0.0, %v1255
  %1257 = vmatmul.bf16.gmra.mxu0 %v1002
  %v1258 = vpop.f32.mrf.mxu0
  %v1259 = vadd.f32 0.0, %v1258
  %v1260 = vpop.f32.mrf.mxu0
  %v1261 = vadd.f32 0.0, %v1260
  %1262 = vmatmul.bf16.gmra.mxu0 %v1004
  %v1263 = vpop.f32.mrf.mxu0
  %v1264 = vadd.f32 0.0, %v1263
  %v1265 = vpop.f32.mrf.mxu0
  %v1266 = vadd.f32 0.0, %v1265
  %1267 = vmatmul.bf16.gmra.mxu0 %v1006
  %v1268 = vpop.f32.mrf.mxu0
  %v1269 = vadd.f32 0.0, %v1268
  %v1270 = vpop.f32.mrf.mxu0
  %v1271 = vadd.f32 0.0, %v1270
  %1272 = vmatmul.bf16.gmra.mxu0 %v1008
  %v1273 = vpop.f32.mrf.mxu0
  %v1274 = vadd.f32 0.0, %v1273
  %v1275 = vpop.f32.mrf.mxu0
  %v1276 = vadd.f32 0.0, %v1275
  %1277 = vmatmul.bf16.gmra.mxu0 %v1010
  %v1278 = vpop.f32.mrf.mxu0
  %v1279 = vadd.f32 0.0, %v1278
  %v1280 = vpop.f32.mrf.mxu0
  %v1281 = vadd.f32 0.0, %v1280
  %1282 = vmatmul.bf16.gmra.mxu0 %v1012
  %v1283 = vpop.f32.mrf.mxu0
  %v1284 = vadd.f32 0.0, %v1283
  %v1285 = vpop.f32.mrf.mxu0
  %v1286 = vadd.f32 0.0, %v1285
  %1287 = vdwg.mxu0
  %1288 = vmatpush.bf16.msra.mxu0 0
  %1289 = vmatpush.bf16.msra.mxu0 0
  %1290 = vmatpush.bf16.msra.mxu0 0
  %1291 = vmatpush.bf16.msra.mxu0 0
  %1292 = vmatpush.bf16.msra.mxu0 %v1175
  %1293 = vmatpush.bf16.msra.mxu0 %v1172
  %1294 = vmatpush.bf16.msra.mxu0 %v1169
  %1295 = vmatpush.bf16.msra.mxu0 %v1166
  %1296 = vmatmul.bf16.gmra.mxu0 %v1216
  %v1297 = vpop.f32.mrf.mxu0
  %v1298 = vadd.f32 %v1249, %v1297
  %v1299 = vpop.f32.mrf.mxu0
  %v1300 = vadd.f32 %v1251, %v1299
  %1301 = vmatmul.bf16.gmra.mxu0 %v1219
  %v1302 = vpop.f32.mrf.mxu0
  %v1303 = vadd.f32 %v1254, %v1302
  %v1304 = vpop.f32.mrf.mxu0
  %v1305 = vadd.f32 %v1256, %v1304
  %1306 = vmatmul.bf16.gmra.mxu0 %v1222
  %v1307 = vpop.f32.mrf.mxu0
  %v1308 = vadd.f32 %v1259, %v1307
  %v1309 = vpop.f32.mrf.mxu0
  %v1310 = vadd.f32 %v1261, %v1309
  %1311 = vmatmul.bf16.gmra.mxu0 %v1225
  %v1312 = vpop.f32.mrf.mxu0
  %v1313 = vadd.f32 %v1264, %v1312
  %v1314 = vpop.f32.mrf.mxu0
  %v1315 = vadd.f32 %v1266, %v1314
  %1316 = vmatmul.bf16.gmra.mxu0 %v1228
  %v1317 = vpop.f32.mrf.mxu0
  %v1318 = vadd.f32 %v1269, %v1317
  %v1319 = vpop.f32.mrf.mxu0
  %v1320 = vadd.f32 %v1271, %v1319
  %1321 = vmatmul.bf16.gmra.mxu0 %v1231
  %v1322 = vpop.f32.mrf.mxu0
  %v1323 = vadd.f32 %v1274, %v1322
  %v1324 = vpop.f32.mrf.mxu0
  %v1325 = vadd.f32 %v1276, %v1324
  %1326 = vmatmul.bf16.gmra.mxu0 %v1234
  %v1327 = vpop.f32.mrf.mxu0
  %v1328 = vadd.f32 %v1279, %v1327
  %v1329 = vpop.f32.mrf.mxu0
  %v1330 = vadd.f32 %v1281, %v1329
  %1331 = vmatmul.bf16.gmra.mxu0 %v1237
  %v1332 = vpop.f32.mrf.mxu0
  %v1333 = vadd.f32 %v1284, %v1332
  %v1334 = vpop.f32.mrf.mxu0
  %v1335 = vadd.f32 %v1286, %v1334
  %1336 = vdwg.mxu0
  %1337 = vmatpush.bf16.msra.mxu0 %v1164
  %1338 = vmatpush.bf16.msra.mxu0 %v1161
  %1339 = vmatpush.bf16.msra.mxu0 %v1158
  %1340 = vmatpush.bf16.msra.mxu0 %v1155
  %1341 = vmatpush.bf16.msra.mxu0 %v1152
  %1342 = vmatpush.bf16.msra.mxu0 %v1149
  %1343 = vmatpush.bf16.msra.mxu0 %v1146
  %1344 = vmatpush.bf16.msra.mxu0 %v1143
  %1345 = vmatmul.bf16.gmra.mxu0 %v998
  %v1346 = vpop.f32.mrf.mxu0
  %v1347 = vadd.f32 0.0, %v1346
  %v1348 = vpop.f32.mrf.mxu0
  %v1349 = vadd.f32 0.0, %v1348
  %1350 = vmatmul.bf16.gmra.mxu0 %v1000
  %v1351 = vpop.f32.mrf.mxu0
  %v1352 = vadd.f32 0.0, %v1351
  %v1353 = vpop.f32.mrf.mxu0
  %v1354 = vadd.f32 0.0, %v1353
  %1355 = vmatmul.bf16.gmra.mxu0 %v1002
  %v1356 = vpop.f32.mrf.mxu0
  %v1357 = vadd.f32 0.0, %v1356
  %v1358 = vpop.f32.mrf.mxu0
  %v1359 = vadd.f32 0.0, %v1358
  %1360 = vmatmul.bf16.gmra.mxu0 %v1004
  %v1361 = vpop.f32.mrf.mxu0
  %v1362 = vadd.f32 0.0, %v1361
  %v1363 = vpop.f32.mrf.mxu0
  %v1364 = vadd.f32 0.0, %v1363
  %1365 = vmatmul.bf16.gmra.mxu0 %v1006
  %v1366 = vpop.f32.mrf.mxu0
  %v1367 = vadd.f32 0.0, %v1366
  %v1368 = vpop.f32.mrf.mxu0
  %v1369 = vadd.f32 0.0, %v1368
  %1370 = vmatmul.bf16.gmra.mxu0 %v1008
  %v1371 = vpop.f32.mrf.mxu0
  %v1372 = vadd.f32 0.0, %v1371
  %v1373 = vpop.f32.mrf.mxu0
  %v1374 = vadd.f32 0.0, %v1373
  %1375 = vmatmul.bf16.gmra.mxu0 %v1010
  %v1376 = vpop.f32.mrf.mxu0
  %v1377 = vadd.f32 0.0, %v1376
  %v1378 = vpop.f32.mrf.mxu0
  %v1379 = vadd.f32 0.0, %v1378
  %1380 = vmatmul.bf16.gmra.mxu0 %v1012
  %v1381 = vpop.f32.mrf.mxu0
  %v1382 = vadd.f32 0.0, %v1381
  %v1383 = vpop.f32.mrf.mxu0
  %v1384 = vadd.f32 0.0, %v1383
  %1385 = vdwg.mxu0
  %1386 = vmatpush.bf16.msra.mxu0 0
  %1387 = vmatpush.bf16.msra.mxu0 0
  %1388 = vmatpush.bf16.msra.mxu0 0
  %1389 = vmatpush.bf16.msra.mxu0 0
  %1390 = vmatpush.bf16.msra.mxu0 %v1176
  %1391 = vmatpush.bf16.msra.mxu0 %v1173
  %1392 = vmatpush.bf16.msra.mxu0 %v1170
  %1393 = vmatpush.bf16.msra.mxu0 %v1167
  %1394 = vmatmul.bf16.gmra.mxu0 %v1216
  %v1395 = vpop.f32.mrf.mxu0
  %v1396 = vadd.f32 %v1347, %v1395
  %v1397 = vpop.f32.mrf.mxu0
  %v1398 = vadd.f32 %v1349, %v1397
  %1399 = vmatmul.bf16.gmra.mxu0 %v1219
  %v1400 = vpop.f32.mrf.mxu0
  %v1401 = vadd.f32 %v1352, %v1400
  %v1402 = vpop.f32.mrf.mxu0
  %v1403 = vadd.f32 %v1354, %v1402
  %1404 = vmatmul.bf16.gmra.mxu0 %v1222
  %v1405 = vpop.f32.mrf.mxu0
  %v1406 = vadd.f32 %v1357, %v1405
  %v1407 = vpop.f32.mrf.mxu0
  %v1408 = vadd.f32 %v1359, %v1407
  %1409 = vmatmul.bf16.gmra.mxu0 %v1225
  %v1410 = vpop.f32.mrf.mxu0
  %v1411 = vadd.f32 %v1362, %v1410
  %v1412 = vpop.f32.mrf.mxu0
  %v1413 = vadd.f32 %v1364, %v1412
  %1414 = vmatmul.bf16.gmra.mxu0 %v1228
  %v1415 = vpop.f32.mrf.mxu0
  %v1416 = vadd.f32 %v1367, %v1415
  %v1417 = vpop.f32.mrf.mxu0
  %v1418 = vadd.f32 %v1369, %v1417
  %1419 = vmatmul.bf16.gmra.mxu0 %v1231
  %v1420 = vpop.f32.mrf.mxu0
  %v1421 = vadd.f32 %v1372, %v1420
  %v1422 = vpop.f32.mrf.mxu0
  %v1423 = vadd.f32 %v1374, %v1422
  %1424 = vmatmul.bf16.gmra.mxu0 %v1234
  %v1425 = vpop.f32.mrf.mxu0
  %v1426 = vadd.f32 %v1377, %v1425
  %v1427 = vpop.f32.mrf.mxu0
  %v1428 = vadd.f32 %v1379, %v1427
  %1429 = vmatmul.bf16.gmra.mxu0 %v1237
  %v1430 = vpop.f32.mrf.mxu0
  %v1431 = vadd.f32 %v1382, %v1430
  %v1432 = vpop.f32.mrf.mxu0
  %v1433 = vadd.f32 %v1384, %v1432
  %1434 = vdwg.mxu0
  %1435 = vmatpush.bf16.msra.mxu0 %v1165
  %1436 = vmatpush.bf16.msra.mxu0 %v1162
  %1437 = vmatpush.bf16.msra.mxu0 %v1159
  %1438 = vmatpush.bf16.msra.mxu0 %v1156
  %1439 = vmatpush.bf16.msra.mxu0 %v1153
  %1440 = vmatpush.bf16.msra.mxu0 %v1150
  %1441 = vmatpush.bf16.msra.mxu0 %v1147
  %1442 = vmatpush.bf16.msra.mxu0 %v1144
  %1443 = vmatmul.bf16.gmra.mxu0 %v998
  %v1444 = vpop.f32.mrf.mxu0
  %v1445 = vadd.f32 0.0, %v1444
  %v1446 = vpop.f32.mrf.mxu0
  %v1447 = vadd.f32 0.0, %v1446
  %1448 = vmatmul.bf16.gmra.mxu0 %v1000
  %v1449 = vpop.f32.mrf.mxu0
  %v1450 = vadd.f32 0.0, %v1449
  %v1451 = vpop.f32.mrf.mxu0
  %v1452 = vadd.f32 0.0, %v1451
  %1453 = vmatmul.bf16.gmra.mxu0 %v1002
  %v1454 = vpop.f32.mrf.mxu0
  %v1455 = vadd.f32 0.0, %v1454
  %v1456 = vpop.f32.mrf.mxu0
  %v1457 = vadd.f32 0.0, %v1456
  %1458 = vmatmul.bf16.gmra.mxu0 %v1004
  %v1459 = vpop.f32.mrf.mxu0
  %v1460 = vadd.f32 0.0, %v1459
  %v1461 = vpop.f32.mrf.mxu0
  %v1462 = vadd.f32 0.0, %v1461
  %1463 = vmatmul.bf16.gmra.mxu0 %v1006
  %v1464 = vpop.f32.mrf.mxu0
  %v1465 = vadd.f32 0.0, %v1464
  %v1466 = vpop.f32.mrf.mxu0
  %v1467 = vadd.f32 0.0, %v1466
  %1468 = vmatmul.bf16.gmra.mxu0 %v1008
  %v1469 = vpop.f32.mrf.mxu0
  %v1470 = vadd.f32 0.0, %v1469
  %v1471 = vpop.f32.mrf.mxu0
  %v1472 = vadd.f32 0.0, %v1471
  %1473 = vmatmul.bf16.gmra.mxu0 %v1010
  %v1474 = vpop.f32.mrf.mxu0
  %v1475 = vadd.f32 0.0, %v1474
  %v1476 = vpop.f32.mrf.mxu0
  %v1477 = vadd.f32 0.0, %v1476
  %1478 = vmatmul.bf16.gmra.mxu0 %v1012
  %v1479 = vpop.f32.mrf.mxu0
  %v1480 = vadd.f32 0.0, %v1479
  %v1481 = vpop.f32.mrf.mxu0
  %v1482 = vadd.f32 0.0, %v1481
  %1483 = vdwg.mxu0
  %1484 = vmatpush.bf16.msra.mxu0 0
  %1485 = vmatpush.bf16.msra.mxu0 0
  %1486 = vmatpush.bf16.msra.mxu0 0
  %1487 = vmatpush.bf16.msra.mxu0 0
  %1488 = vmatpush.bf16.msra.mxu0 %v1177
  %1489 = vmatpush.bf16.msra.mxu0 %v1174
  %1490 = vmatpush.bf16.msra.mxu0 %v1171
  %1491 = vmatpush.bf16.msra.mxu0 %v1168
  %1492 = vmatmul.bf16.gmra.mxu0 %v1216
  %v1493 = vpop.f32.mrf.mxu0
  %v1494 = vadd.f32 %v1445, %v1493
  %v1495 = vpop.f32.mrf.mxu0
  %v1496 = vadd.f32 %v1447, %v1495
  %1497 = vmatmul.bf16.gmra.mxu0 %v1219
  %v1498 = vpop.f32.mrf.mxu0
  %v1499 = vadd.f32 %v1450, %v1498
  %v1500 = vpop.f32.mrf.mxu0
  %v1501 = vadd.f32 %v1452, %v1500
  %1502 = vmatmul.bf16.gmra.mxu0 %v1222
  %v1503 = vpop.f32.mrf.mxu0
  %v1504 = vadd.f32 %v1455, %v1503
  %v1505 = vpop.f32.mrf.mxu0
  %v1506 = vadd.f32 %v1457, %v1505
  %1507 = vmatmul.bf16.gmra.mxu0 %v1225
  %v1508 = vpop.f32.mrf.mxu0
  %v1509 = vadd.f32 %v1460, %v1508
  %v1510 = vpop.f32.mrf.mxu0
  %v1511 = vadd.f32 %v1462, %v1510
  %1512 = vmatmul.bf16.gmra.mxu0 %v1228
  %v1513 = vpop.f32.mrf.mxu0
  %v1514 = vadd.f32 %v1465, %v1513
  %v1515 = vpop.f32.mrf.mxu0
  %v1516 = vadd.f32 %v1467, %v1515
  %1517 = vmatmul.bf16.gmra.mxu0 %v1231
  %v1518 = vpop.f32.mrf.mxu0
  %v1519 = vadd.f32 %v1470, %v1518
  %v1520 = vpop.f32.mrf.mxu0
  %v1521 = vadd.f32 %v1472, %v1520
  %1522 = vmatmul.bf16.gmra.mxu0 %v1234
  %v1523 = vpop.f32.mrf.mxu0
  %v1524 = vadd.f32 %v1475, %v1523
  %v1525 = vpop.f32.mrf.mxu0
  %v1526 = vadd.f32 %v1477, %v1525
  %1527 = vmatmul.bf16.gmra.mxu0 %v1237
  %v1528 = vpop.f32.mrf.mxu0
  %v1529 = vadd.f32 %v1480, %v1528
  %v1530 = vpop.f32.mrf.mxu0
  %v1531 = vadd.f32 %v1482, %v1530
  %1532 = vdwg.mxu0
  %1565 = vrot.lane.b32.xlu0 %v1298, 44
  %v1566 = vpop.permute.xlu0 %1565
  %1567 = vrot.lane.b32.xlu0 %v1396, 44
  %v1568 = vpop.permute.xlu0 %1567
  %1569 = vrot.lane.b32.xlu0 %v1300, 44
  %v1570 = vpop.permute.xlu0 %1569
  %1571 = vrot.lane.b32.xlu0 %v1398, 44
  %v1572 = vpop.permute.xlu0 %1571
  %1573 = vrot.lane.b32.xlu0 %v1303, 44
  %v1574 = vpop.permute.xlu0 %1573
  %1575 = vrot.lane.b32.xlu0 %v1401, 44
  %v1576 = vpop.permute.xlu0 %1575
  %1577 = vrot.lane.b32.xlu0 %v1305, 44
  %v1578 = vpop.permute.xlu0 %1577
  %1579 = vrot.lane.b32.xlu0 %v1403, 44
  %v1580 = vpop.permute.xlu0 %1579
  %1581 = vrot.lane.b32.xlu0 %v1308, 44
  %v1582 = vpop.permute.xlu0 %1581
  %1583 = vrot.lane.b32.xlu0 %v1406, 44
  %v1584 = vpop.permute.xlu0 %1583
  %1585 = vrot.lane.b32.xlu0 %v1310, 44
  %v1586 = vpop.permute.xlu0 %1585
  %1587 = vrot.lane.b32.xlu0 %v1408, 44
  %v1588 = vpop.permute.xlu0 %1587
  %1589 = vrot.lane.b32.xlu0 %v1313, 44
  %v1590 = vpop.permute.xlu0 %1589
  %1591 = vrot.lane.b32.xlu0 %v1411, 44
  %v1592 = vpop.permute.xlu0 %1591
  %1593 = vrot.lane.b32.xlu0 %v1315, 44
  %v1594 = vpop.permute.xlu0 %1593
  %1595 = vrot.lane.b32.xlu0 %v1413, 44
  %v1596 = vpop.permute.xlu0 %1595
  %1597 = vrot.lane.b32.xlu0 %v1318, 44
  %v1598 = vpop.permute.xlu0 %1597
  %1599 = vrot.lane.b32.xlu0 %v1416, 44
  %v1600 = vpop.permute.xlu0 %1599
  %1601 = vrot.lane.b32.xlu0 %v1320, 44
  %v1602 = vpop.permute.xlu0 %1601
  %1603 = vrot.lane.b32.xlu0 %v1418, 44
  %v1604 = vpop.permute.xlu0 %1603
  %1605 = vrot.lane.b32.xlu0 %v1323, 44
  %v1606 = vpop.permute.xlu0 %1605
  %1607 = vrot.lane.b32.xlu0 %v1421, 44
  %v1608 = vpop.permute.xlu0 %1607
  %1609 = vrot.lane.b32.xlu0 %v1325, 44
  %v1610 = vpop.permute.xlu0 %1609
  %1611 = vrot.lane.b32.xlu0 %v1423, 44
  %v1612 = vpop.permute.xlu0 %1611
  %1613 = vrot.lane.b32.xlu0 %v1328, 44
  %v1614 = vpop.permute.xlu0 %1613
  %1615 = vrot.lane.b32.xlu0 %v1426, 44
  %v1616 = vpop.permute.xlu0 %1615
  %1617 = vrot.lane.b32.xlu0 %v1330, 44
  %v1618 = vpop.permute.xlu0 %1617
  %1619 = vrot.lane.b32.xlu0 %v1428, 44
  %v1620 = vpop.permute.xlu0 %1619
  %1621 = vrot.lane.b32.xlu0 %v1333, 44
  %v1622 = vpop.permute.xlu0 %1621
  %1623 = vrot.lane.b32.xlu0 %v1431, 44
  %v1624 = vpop.permute.xlu0 %1623
  %1625 = vrot.lane.b32.xlu0 %v1335, 44
  %v1626 = vpop.permute.xlu0 %1625
  %1627 = vrot.lane.b32.xlu0 %v1433, 44
  %v1628 = vpop.permute.xlu0 %1627
  %vm1629 = vcmask 359424
  %v1630 = vsel %vm1629, %v1566, %v1568
  %v1631 = vsel %vm1629, %v1570, %v1572
  %v1632 = vsel %vm1629, %v1574, %v1576
  %v1633 = vsel %vm1629, %v1578, %v1580
  %v1634 = vsel %vm1629, %v1582, %v1584
  %v1635 = vsel %vm1629, %v1586, %v1588
  %v1636 = vsel %vm1629, %v1590, %v1592
  %v1637 = vsel %vm1629, %v1594, %v1596
  %v1638 = vsel %vm1629, %v1598, %v1600
  %v1639 = vsel %vm1629, %v1602, %v1604
  %v1640 = vsel %vm1629, %v1606, %v1608
  %v1641 = vsel %vm1629, %v1610, %v1612
  %v1642 = vsel %vm1629, %v1614, %v1616
  %v1643 = vsel %vm1629, %v1618, %v1620
  %v1644 = vsel %vm1629, %v1622, %v1624
  %v1645 = vsel %vm1629, %v1626, %v1628
  %v1662 = vmax.f32 %v1298, %v1630
  %v1663 = vmax.f32 %v1300, %v1631
  %v1664 = vmax.f32 %v1303, %v1632
  %v1665 = vmax.f32 %v1305, %v1633
  %v1666 = vmax.f32 %v1308, %v1634
  %v1667 = vmax.f32 %v1310, %v1635
  %v1668 = vmax.f32 %v1313, %v1636
  %v1669 = vmax.f32 %v1315, %v1637
  %v1670 = vmax.f32 %v1318, %v1638
  %v1671 = vmax.f32 %v1320, %v1639
  %v1672 = vmax.f32 %v1323, %v1640
  %v1673 = vmax.f32 %v1325, %v1641
  %v1674 = vmax.f32 %v1328, %v1642
  %v1675 = vmax.f32 %v1330, %v1643
  %v1676 = vmax.f32 %v1333, %v1644
  %v1677 = vmax.f32 %v1335, %v1645
  %1694 = vrot.lane.b32.xlu0 %v1494, 44
  %v1695 = vpop.permute.xlu0 %1694
  %1696 = vrot.lane.b32.xlu0 %v1496, 44
  %v1697 = vpop.permute.xlu0 %1696
  %1698 = vrot.lane.b32.xlu0 %v1499, 44
  %v1699 = vpop.permute.xlu0 %1698
  %1700 = vrot.lane.b32.xlu0 %v1501, 44
  %v1701 = vpop.permute.xlu0 %1700
  %1702 = vrot.lane.b32.xlu0 %v1504, 44
  %v1703 = vpop.permute.xlu0 %1702
  %1704 = vrot.lane.b32.xlu0 %v1506, 44
  %v1705 = vpop.permute.xlu0 %1704
  %1706 = vrot.lane.b32.xlu0 %v1509, 44
  %v1707 = vpop.permute.xlu0 %1706
  %1708 = vrot.lane.b32.xlu0 %v1511, 44
  %v1709 = vpop.permute.xlu0 %1708
  %1710 = vrot.lane.b32.xlu0 %v1514, 44
  %v1711 = vpop.permute.xlu0 %1710
  %1712 = vrot.lane.b32.xlu0 %v1516, 44
  %v1713 = vpop.permute.xlu0 %1712
  %1714 = vrot.lane.b32.xlu0 %v1519, 44
  %v1715 = vpop.permute.xlu0 %1714
  %1716 = vrot.lane.b32.xlu0 %v1521, 44
  %v1717 = vpop.permute.xlu0 %1716
  %1718 = vrot.lane.b32.xlu0 %v1524, 44
  %v1719 = vpop.permute.xlu0 %1718
  %1720 = vrot.lane.b32.xlu0 %v1526, 44
  %v1721 = vpop.permute.xlu0 %1720
  %1722 = vrot.lane.b32.xlu0 %v1529, 44
  %v1723 = vpop.permute.xlu0 %1722
  %1724 = vrot.lane.b32.xlu0 %v1531, 44
  %v1725 = vpop.permute.xlu0 %1724
  %v1726 = vsel %vm1629, %v1568, %v1695
  %v1727 = vsel %vm1629, %v1572, %v1697
  %v1728 = vsel %vm1629, %v1576, %v1699
  %v1729 = vsel %vm1629, %v1580, %v1701
  %v1730 = vsel %vm1629, %v1584, %v1703
  %v1731 = vsel %vm1629, %v1588, %v1705
  %v1732 = vsel %vm1629, %v1592, %v1707
  %v1733 = vsel %vm1629, %v1596, %v1709
  %v1734 = vsel %vm1629, %v1600, %v1711
  %v1735 = vsel %vm1629, %v1604, %v1713
  %v1736 = vsel %vm1629, %v1608, %v1715
  %v1737 = vsel %vm1629, %v1612, %v1717
  %v1738 = vsel %vm1629, %v1616, %v1719
  %v1739 = vsel %vm1629, %v1620, %v1721
  %v1740 = vsel %vm1629, %v1624, %v1723
  %v1741 = vsel %vm1629, %v1628, %v1725
  %v1758 = vmax.f32 %v1396, %v1726
  %v1759 = vmax.f32 %v1398, %v1727
  %v1760 = vmax.f32 %v1401, %v1728
  %v1761 = vmax.f32 %v1403, %v1729
  %v1762 = vmax.f32 %v1406, %v1730
  %v1763 = vmax.f32 %v1408, %v1731
  %v1764 = vmax.f32 %v1411, %v1732
  %v1765 = vmax.f32 %v1413, %v1733
  %v1766 = vmax.f32 %v1416, %v1734
  %v1767 = vmax.f32 %v1418, %v1735
  %v1768 = vmax.f32 %v1421, %v1736
  %v1769 = vmax.f32 %v1423, %v1737
  %v1770 = vmax.f32 %v1426, %v1738
  %v1771 = vmax.f32 %v1428, %v1739
  %v1772 = vmax.f32 %v1431, %v1740
  %v1773 = vmax.f32 %v1433, %v1741
  %1790 = vrot.lane.b32.xlu0 %v1758, 88
  %v1791 = vpop.permute.xlu0 %1790
  %1792 = vrot.lane.b32.xlu0 %v1759, 88
  %v1793 = vpop.permute.xlu0 %1792
  %1794 = vrot.lane.b32.xlu0 %v1760, 88
  %v1795 = vpop.permute.xlu0 %1794
  %1796 = vrot.lane.b32.xlu0 %v1761, 88
  %v1797 = vpop.permute.xlu0 %1796
  %1798 = vrot.lane.b32.xlu0 %v1762, 88
  %v1799 = vpop.permute.xlu0 %1798
  %1800 = vrot.lane.b32.xlu0 %v1763, 88
  %v1801 = vpop.permute.xlu0 %1800
  %1802 = vrot.lane.b32.xlu0 %v1764, 88
  %v1803 = vpop.permute.xlu0 %1802
  %1804 = vrot.lane.b32.xlu0 %v1765, 88
  %v1805 = vpop.permute.xlu0 %1804
  %1806 = vrot.lane.b32.xlu0 %v1766, 88
  %v1807 = vpop.permute.xlu0 %1806
  %1808 = vrot.lane.b32.xlu0 %v1767, 88
  %v1809 = vpop.permute.xlu0 %1808
  %1810 = vrot.lane.b32.xlu0 %v1768, 88
  %v1811 = vpop.permute.xlu0 %1810
  %1812 = vrot.lane.b32.xlu0 %v1769, 88
  %v1813 = vpop.permute.xlu0 %1812
  %1814 = vrot.lane.b32.xlu0 %v1770, 88
  %v1815 = vpop.permute.xlu0 %1814
  %1816 = vrot.lane.b32.xlu0 %v1771, 88
  %v1817 = vpop.permute.xlu0 %1816
  %1818 = vrot.lane.b32.xlu0 %v1772, 88
  %v1819 = vpop.permute.xlu0 %1818
  %1820 = vrot.lane.b32.xlu0 %v1773, 88
  %v1821 = vpop.permute.xlu0 %1820
  %v1838 = vmax.f32 %v1662, %v1791
  %v1839 = vmax.f32 %v1663, %v1793
  %v1840 = vmax.f32 %v1664, %v1795
  %v1841 = vmax.f32 %v1665, %v1797
  %v1842 = vmax.f32 %v1666, %v1799
  %v1843 = vmax.f32 %v1667, %v1801
  %v1844 = vmax.f32 %v1668, %v1803
  %v1845 = vmax.f32 %v1669, %v1805
  %v1846 = vmax.f32 %v1670, %v1807
  %v1847 = vmax.f32 %v1671, %v1809
  %v1848 = vmax.f32 %v1672, %v1811
  %v1849 = vmax.f32 %v1673, %v1813
  %v1850 = vmax.f32 %v1674, %v1815
  %v1851 = vmax.f32 %v1675, %v1817
  %v1852 = vmax.f32 %v1676, %v1819
  %v1853 = vmax.f32 %v1677, %v1821
  %v1854 = vld [vmem:[%s2] sm:$0x1]
  %v1856 = vperm.slane %v1854, 0
  %v1858 = vadd.f32 %v1838, %v1856
  %v1859 = vadd.f32 %v1839, %v1856
  %v1860 = vadd.f32 %v1840, %v1856
  %v1861 = vadd.f32 %v1841, %v1856
  %v1862 = vadd.f32 %v1842, %v1856
  %v1863 = vadd.f32 %v1843, %v1856
  %v1864 = vadd.f32 %v1844, %v1856
  %v1865 = vadd.f32 %v1845, %v1856
  %v1866 = vadd.f32 %v1846, %v1856
  %v1867 = vadd.f32 %v1847, %v1856
  %v1868 = vadd.f32 %v1848, %v1856
  %v1869 = vadd.f32 %v1849, %v1856
  %v1870 = vadd.f32 %v1850, %v1856
  %v1871 = vadd.f32 %v1851, %v1856
  %v1872 = vadd.f32 %v1852, %v1856
  %v1873 = vadd.f32 %v1853, %v1856
  %v1874 = vmax.f32 %v1858, 0.0
  %v1875 = vmax.f32 %v1859, 0.0
  %v1876 = vmax.f32 %v1860, 0.0
  %v1877 = vmax.f32 %v1861, 0.0
  %v1878 = vmax.f32 %v1862, 0.0
  %v1879 = vmax.f32 %v1863, 0.0
  %v1880 = vmax.f32 %v1864, 0.0
  %v1881 = vmax.f32 %v1865, 0.0
  %v1882 = vmax.f32 %v1866, 0.0
  %v1883 = vmax.f32 %v1867, 0.0
  %v1884 = vmax.f32 %v1868, 0.0
  %v1885 = vmax.f32 %v1869, 0.0
  %v1886 = vmax.f32 %v1870, 0.0
  %v1887 = vmax.f32 %v1871, 0.0
  %v1888 = vmax.f32 %v1872, 0.0
  %v1889 = vmax.f32 %v1873, 0.0
  %vm1890 = vcmask 687104
  %1891 = vst.msk [vmem:[#allocation3] sm:$0xff] %vm1890, %v1874
  %1892 = vst.msk [vmem:[#allocation3 + $0x8] sm:$0xff] %vm1890, %v1875
  %1893 = vst.msk [vmem:[#allocation3 + $0x10] sm:$0xff] %vm1890, %v1876
  %1894 = vst.msk [vmem:[#allocation3 + $0x18] sm:$0xff] %vm1890, %v1877
  %1895 = vst.msk [vmem:[#allocation3 + $0x20] sm:$0xff] %vm1890, %v1878
  %1896 = vst.msk [vmem:[#allocation3 + $0x28] sm:$0xff] %vm1890, %v1879
  %1897 = vst.msk [vmem:[#allocation3 + $0x30] sm:$0xff] %vm1890, %v1880
  %1898 = vst.msk [vmem:[#allocation3 + $0x38] sm:$0xff] %vm1890, %v1881
  %1899 = vst.msk [vmem:[#allocation3 + $0x40] sm:$0xff] %vm1890, %v1882
  %1900 = vst.msk [vmem:[#allocation3 + $0x48] sm:$0xff] %vm1890, %v1883
  %1901 = vst.msk [vmem:[#allocation3 + $0x50] sm:$0xff] %vm1890, %v1884
  %1902 = vst.msk [vmem:[#allocation3 + $0x58] sm:$0xff] %vm1890, %v1885
  %1903 = vst.msk [vmem:[#allocation3 + $0x60] sm:$0xff] %vm1890, %v1886
  %1904 = vst.msk [vmem:[#allocation3 + $0x68] sm:$0xff] %vm1890, %v1887
  %1905 = vst.msk [vmem:[#allocation3 + $0x70] sm:$0xff] %vm1890, %v1888
  %1906 = vst.msk [vmem:[#allocation3 + $0x78] sm:$0xff] %vm1890, %v1889
  %v1907 = vld [vmem:[#allocation3] sm:$0xff]
  %v1908 = vld [vmem:[#allocation3 + $0x8] sm:$0x3]
  %v1909 = vld [vmem:[#allocation3 + $0x10] sm:$0xff]
  %v1910 = vld [vmem:[#allocation3 + $0x18] sm:$0x3]
  %v1911 = vld [vmem:[#allocation3 + $0x20] sm:$0xff]
  %v1912 = vld [vmem:[#allocation3 + $0x28] sm:$0x3]
  %v1913 = vld [vmem:[#allocation3 + $0x30] sm:$0xff]
  %v1914 = vld [vmem:[#allocation3 + $0x38] sm:$0x3]
  %v1915 = vld [vmem:[#allocation3 + $0x40] sm:$0xff]
  %v1916 = vld [vmem:[#allocation3 + $0x48] sm:$0x3]
  %v1917 = vld [vmem:[#allocation3 + $0x50] sm:$0xff]
  %v1918 = vld [vmem:[#allocation3 + $0x58] sm:$0x3]
  %v1919 = vld [vmem:[#allocation3 + $0x60] sm:$0xff]
  %v1920 = vld [vmem:[#allocation3 + $0x68] sm:$0x3]
  %v1921 = vld [vmem:[#allocation3 + $0x70] sm:$0xff]
  %v1922 = vld [vmem:[#allocation3 + $0x78] sm:$0x3]
  %v1923 = vpack.c.bf16 %v1907, %v1907
  %v1924 = vpack.c.bf16 %v1908, %v1908
  %v1925 = vpack.c.bf16 %v1909, %v1909
  %v1926 = vpack.c.bf16 %v1910, %v1910
  %v1927 = vpack.c.bf16 %v1911, %v1911
  %v1928 = vpack.c.bf16 %v1912, %v1912
  %v1929 = vpack.c.bf16 %v1913, %v1913
  %v1930 = vpack.c.bf16 %v1914, %v1914
  %v1931 = vpack.c.bf16 %v1915, %v1915
  %v1932 = vpack.c.bf16 %v1916, %v1916
  %v1933 = vpack.c.bf16 %v1917, %v1917
  %v1934 = vpack.c.bf16 %v1918, %v1918
  %v1935 = vpack.c.bf16 %v1919, %v1919
  %v1936 = vpack.c.bf16 %v1920, %v1920
  %v1937 = vpack.c.bf16 %v1921, %v1921
  %v1938 = vpack.c.bf16 %v1922, %v1922
  %vm1939 = vcmask 683008
  %1940 = vst.msk [vmem:[#allocation4] sm:$0xf] %vm1939, %v1923
  %vm1941 = vcmask 679936
  %1942 = vst.msk [vmem:[#allocation4 + $0x10] sm:$0x1] %vm1941, %v1924
  %1943 = vst.msk [vmem:[#allocation4 + $0x20] sm:$0xf] %vm1939, %v1925
  %1944 = vst.msk [vmem:[#allocation4 + $0x30] sm:$0x1] %vm1941, %v1926
  %1945 = vst.msk [vmem:[#allocation4 + $0x40] sm:$0xf] %vm1939, %v1927
  %1946 = vst.msk [vmem:[#allocation4 + $0x50] sm:$0x1] %vm1941, %v1928
  %1947 = vst.msk [vmem:[#allocation4 + $0x60] sm:$0xf] %vm1939, %v1929
  %1948 = vst.msk [vmem:[#allocation4 + $0x70] sm:$0x1] %vm1941, %v1930
  %1949 = vst.msk [vmem:[#allocation4 + $0x80] sm:$0xf] %vm1939, %v1931
  %1950 = vst.msk [vmem:[#allocation4 + $0x90] sm:$0x1] %vm1941, %v1932
  %1951 = vst.msk [vmem:[#allocation4 + $0xa0] sm:$0xf] %vm1939, %v1933
  %1952 = vst.msk [vmem:[#allocation4 + $0xb0] sm:$0x1] %vm1941, %v1934
  %1953 = vst.msk [vmem:[#allocation4 + $0xc0] sm:$0xf] %vm1939, %v1935
  %1954 = vst.msk [vmem:[#allocation4 + $0xd0] sm:$0x1] %vm1941, %v1936
  %1955 = vst.msk [vmem:[#allocation4 + $0xe0] sm:$0xf] %vm1939, %v1937
  %1956 = vst.msk [vmem:[#allocation4 + $0xf0] sm:$0x1] %vm1941, %v1938
  %v1957 = vld [vmem:[#allocation3 + $0x1] sm:$0xff]
  %v1958 = vld [vmem:[#allocation3 + $0x9] sm:$0x3]
  %v1959 = vld [vmem:[#allocation3 + $0x11] sm:$0xff]
  %v1960 = vld [vmem:[#allocation3 + $0x19] sm:$0x3]
  %v1961 = vld [vmem:[#allocation3 + $0x21] sm:$0xff]
  %v1962 = vld [vmem:[#allocation3 + $0x29] sm:$0x3]
  %v1963 = vld [vmem:[#allocation3 + $0x31] sm:$0xff]
  %v1964 = vld [vmem:[#allocation3 + $0x39] sm:$0x3]
  %v1965 = vld [vmem:[#allocation3 + $0x41] sm:$0xff]
  %v1966 = vld [vmem:[#allocation3 + $0x49] sm:$0x3]
  %v1967 = vld [vmem:[#allocation3 + $0x51] sm:$0xff]
  %v1968 = vld [vmem:[#allocation3 + $0x59] sm:$0x3]
  %v1969 = vld [vmem:[#allocation3 + $0x61] sm:$0xff]
  %v1970 = vld [vmem:[#allocation3 + $0x69] sm:$0x3]
  %v1971 = vld [vmem:[#allocation3 + $0x71] sm:$0xff]
  %v1972 = vld [vmem:[#allocation3 + $0x79] sm:$0x3]
  %v1973 = vpack.c.bf16 %v1957, %v1957
  %v1974 = vpack.c.bf16 %v1958, %v1958
  %v1975 = vpack.c.bf16 %v1959, %v1959
  %v1976 = vpack.c.bf16 %v1960, %v1960
  %v1977 = vpack.c.bf16 %v1961, %v1961
  %v1978 = vpack.c.bf16 %v1962, %v1962
  %v1979 = vpack.c.bf16 %v1963, %v1963
  %v1980 = vpack.c.bf16 %v1964, %v1964
  %v1981 = vpack.c.bf16 %v1965, %v1965
  %v1982 = vpack.c.bf16 %v1966, %v1966
  %v1983 = vpack.c.bf16 %v1967, %v1967
  %v1984 = vpack.c.bf16 %v1968, %v1968
  %v1985 = vpack.c.bf16 %v1969, %v1969
  %v1986 = vpack.c.bf16 %v1970, %v1970
  %v1987 = vpack.c.bf16 %v1971, %v1971
  %v1988 = vpack.c.bf16 %v1972, %v1972
  %2005 = vrot.lane.b32.xlu0 %v1973, 84
  %v2006 = vpop.permute.xlu0 %2005
  %2007 = vrot.lane.b32.xlu0 %v1974, 84
  %v2008 = vpop.permute.xlu0 %2007
  %2009 = vrot.lane.b32.xlu0 %v1975, 84
  %v2010 = vpop.permute.xlu0 %2009
  %2011 = vrot.lane.b32.xlu0 %v1976, 84
  %v2012 = vpop.permute.xlu0 %2011
  %2013 = vrot.lane.b32.xlu0 %v1977, 84
  %v2014 = vpop.permute.xlu0 %2013
  %2015 = vrot.lane.b32.xlu0 %v1978, 84
  %v2016 = vpop.permute.xlu0 %2015
  %2017 = vrot.lane.b32.xlu0 %v1979, 84
  %v2018 = vpop.permute.xlu0 %2017
  %2019 = vrot.lane.b32.xlu0 %v1980, 84
  %v2020 = vpop.permute.xlu0 %2019
  %2021 = vrot.lane.b32.xlu0 %v1981, 84
  %v2022 = vpop.permute.xlu0 %2021
  %2023 = vrot.lane.b32.xlu0 %v1982, 84
  %v2024 = vpop.permute.xlu0 %2023
  %2025 = vrot.lane.b32.xlu0 %v1983, 84
  %v2026 = vpop.permute.xlu0 %2025
  %2027 = vrot.lane.b32.xlu0 %v1984, 84
  %v2028 = vpop.permute.xlu0 %2027
  %2029 = vrot.lane.b32.xlu0 %v1985, 84
  %v2030 = vpop.permute.xlu0 %2029
  %2031 = vrot.lane.b32.xlu0 %v1986, 84
  %v2032 = vpop.permute.xlu0 %2031
  %2033 = vrot.lane.b32.xlu0 %v1987, 84
  %v2034 = vpop.permute.xlu0 %2033
  %2035 = vrot.lane.b32.xlu0 %v1988, 84
  %v2036 = vpop.permute.xlu0 %2035
  %v2037 = vrot.slane %v2006, 4
  %v2038 = vrot.slane %v2008, 4
  %v2039 = vrot.slane %v2010, 4
  %v2040 = vrot.slane %v2012, 4
  %v2041 = vrot.slane %v2014, 4
  %v2042 = vrot.slane %v2016, 4
  %v2043 = vrot.slane %v2018, 4
  %v2044 = vrot.slane %v2020, 4
  %v2045 = vrot.slane %v2022, 4
  %v2046 = vrot.slane %v2024, 4
  %v2047 = vrot.slane %v2026, 4
  %v2048 = vrot.slane %v2028, 4
  %v2049 = vrot.slane %v2030, 4
  %v2050 = vrot.slane %v2032, 4
  %v2051 = vrot.slane %v2034, 4
  %v2052 = vrot.slane %v2036, 4
  %vm2053 = vcmask 687104
  %v2054 = vsel %vm2053, %v2037, %v2006
  %v2055 = vsel %vm2053, %v2038, %v2008
  %v2056 = vsel %vm2053, %v2039, %v2010
  %v2057 = vsel %vm2053, %v2040, %v2012
  %v2058 = vsel %vm2053, %v2041, %v2014
  %v2059 = vsel %vm2053, %v2042, %v2016
  %v2060 = vsel %vm2053, %v2043, %v2018
  %v2061 = vsel %vm2053, %v2044, %v2020
  %v2062 = vsel %vm2053, %v2045, %v2022
  %v2063 = vsel %vm2053, %v2046, %v2024
  %v2064 = vsel %vm2053, %v2047, %v2026
  %v2065 = vsel %vm2053, %v2048, %v2028
  %v2066 = vsel %vm2053, %v2049, %v2030
  %v2067 = vsel %vm2053, %v2050, %v2032
  %v2068 = vsel %vm2053, %v2051, %v2034
  %v2069 = vsel %vm2053, %v2052, %v2036
  %vm2086 = vcmask 1044128
  %vm2087 = vcmask 326660
  %vm2088 = vmor %vm2087, %vm2086
  %2089 = vst.msk [vmem:[#allocation4] sm:$0xff] %vm2088, %v2054
  %vm2090 = vcmask 1041056
  %vm2091 = vcmask 323588
  %vm2092 = vmor %vm2091, %vm2090
  %2093 = vst.msk [vmem:[#allocation4 + $0x10] sm:$0x11] %vm2092, %v2055
  %2094 = vst.msk [vmem:[#allocation4 + $0x20] sm:$0xff] %vm2088, %v2056
  %2095 = vst.msk [vmem:[#allocation4 + $0x30] sm:$0x11] %vm2092, %v2057
  %2096 = vst.msk [vmem:[#allocation4 + $0x40] sm:$0xff] %vm2088, %v2058
  %2097 = vst.msk [vmem:[#allocation4 + $0x50] sm:$0x11] %vm2092, %v2059
  %2098 = vst.msk [vmem:[#allocation4 + $0x60] sm:$0xff] %vm2088, %v2060
  %2099 = vst.msk [vmem:[#allocation4 + $0x70] sm:$0x11] %vm2092, %v2061
  %2100 = vst.msk [vmem:[#allocation4 + $0x80] sm:$0xff] %vm2088, %v2062
  %2101 = vst.msk [vmem:[#allocation4 + $0x90] sm:$0x11] %vm2092, %v2063
  %2102 = vst.msk [vmem:[#allocation4 + $0xa0] sm:$0xff] %vm2088, %v2064
  %2103 = vst.msk [vmem:[#allocation4 + $0xb0] sm:$0x11] %vm2092, %v2065
  %2104 = vst.msk [vmem:[#allocation4 + $0xc0] sm:$0xff] %vm2088, %v2066
  %2105 = vst.msk [vmem:[#allocation4 + $0xd0] sm:$0x11] %vm2092, %v2067
  %2106 = vst.msk [vmem:[#allocation4 + $0xe0] sm:$0xff] %vm2088, %v2068
  %2107 = vst.msk [vmem:[#allocation4 + $0xf0] sm:$0x11] %vm2092, %v2069
  %v2108 = vld [vmem:[#allocation3 + $0x2] sm:$0xff]
  %v2109 = vld [vmem:[#allocation3 + $0xa] sm:$0x3]
  %v2110 = vld [vmem:[#allocation3 + $0x12] sm:$0xff]
  %v2111 = vld [vmem:[#allocation3 + $0x1a] sm:$0x3]
  %v2112 = vld [vmem:[#allocation3 + $0x22] sm:$0xff]
  %v2113 = vld [vmem:[#allocation3 + $0x2a] sm:$0x3]
  %v2114 = vld [vmem:[#allocation3 + $0x32] sm:$0xff]
  %v2115 = vld [vmem:[#allocation3 + $0x3a] sm:$0x3]
  %v2116 = vld [vmem:[#allocation3 + $0x42] sm:$0xff]
  %v2117 = vld [vmem:[#allocation3 + $0x4a] sm:$0x3]
  %v2118 = vld [vmem:[#allocation3 + $0x52] sm:$0xff]
  %v2119 = vld [vmem:[#allocation3 + $0x5a] sm:$0x3]
  %v2120 = vld [vmem:[#allocation3 + $0x62] sm:$0xff]
  %v2121 = vld [vmem:[#allocation3 + $0x6a] sm:$0x3]
  %v2122 = vld [vmem:[#allocation3 + $0x72] sm:$0xff]
  %v2123 = vld [vmem:[#allocation3 + $0x7a] sm:$0x3]
  %v2124 = vpack.c.bf16 %v2108, %v2108
  %v2125 = vpack.c.bf16 %v2109, %v2109
  %v2126 = vpack.c.bf16 %v2110, %v2110
  %v2127 = vpack.c.bf16 %v2111, %v2111
  %v2128 = vpack.c.bf16 %v2112, %v2112
  %v2129 = vpack.c.bf16 %v2113, %v2113
  %v2130 = vpack.c.bf16 %v2114, %v2114
  %v2131 = vpack.c.bf16 %v2115, %v2115
  %v2132 = vpack.c.bf16 %v2116, %v2116
  %v2133 = vpack.c.bf16 %v2117, %v2117
  %v2134 = vpack.c.bf16 %v2118, %v2118
  %v2135 = vpack.c.bf16 %v2119, %v2119
  %v2136 = vpack.c.bf16 %v2120, %v2120
  %v2137 = vpack.c.bf16 %v2121, %v2121
  %v2138 = vpack.c.bf16 %v2122, %v2122
  %v2139 = vpack.c.bf16 %v2123, %v2123
  %2156 = vrot.lane.b32.xlu0 %v2124, 40
  %v2157 = vpop.permute.xlu0 %2156
  %2158 = vrot.lane.b32.xlu0 %v2125, 40
  %v2159 = vpop.permute.xlu0 %2158
  %2160 = vrot.lane.b32.xlu0 %v2126, 40
  %v2161 = vpop.permute.xlu0 %2160
  %2162 = vrot.lane.b32.xlu0 %v2127, 40
  %v2163 = vpop.permute.xlu0 %2162
  %2164 = vrot.lane.b32.xlu0 %v2128, 40
  %v2165 = vpop.permute.xlu0 %2164
  %2166 = vrot.lane.b32.xlu0 %v2129, 40
  %v2167 = vpop.permute.xlu0 %2166
  %2168 = vrot.lane.b32.xlu0 %v2130, 40
  %v2169 = vpop.permute.xlu0 %2168
  %2170 = vrot.lane.b32.xlu0 %v2131, 40
  %v2171 = vpop.permute.xlu0 %2170
  %2172 = vrot.lane.b32.xlu0 %v2132, 40
  %v2173 = vpop.permute.xlu0 %2172
  %2174 = vrot.lane.b32.xlu0 %v2133, 40
  %v2175 = vpop.permute.xlu0 %2174
  %2176 = vrot.lane.b32.xlu0 %v2134, 40
  %v2177 = vpop.permute.xlu0 %2176
  %2178 = vrot.lane.b32.xlu0 %v2135, 40
  %v2179 = vpop.permute.xlu0 %2178
  %2180 = vrot.lane.b32.xlu0 %v2136, 40
  %v2181 = vpop.permute.xlu0 %2180
  %2182 = vrot.lane.b32.xlu0 %v2137, 40
  %v2183 = vpop.permute.xlu0 %2182
  %2184 = vrot.lane.b32.xlu0 %v2138, 40
  %v2185 = vpop.permute.xlu0 %2184
  %2186 = vrot.lane.b32.xlu0 %v2139, 40
  %v2187 = vpop.permute.xlu0 %2186
  %vm2204 = vcmask 1011008
  %2205 = vst.msk [vmem:[#allocation4 + $0x4] sm:$0xf] %vm2204, %v2157
  %vm2206 = vcmask 1007936
  %2207 = vst.msk [vmem:[#allocation4 + $0x14] sm:$0x1] %vm2206, %v2159
  %2208 = vst.msk [vmem:[#allocation4 + $0x24] sm:$0xf] %vm2204, %v2161
  %2209 = vst.msk [vmem:[#allocation4 + $0x34] sm:$0x1] %vm2206, %v2163
  %2210 = vst.msk [vmem:[#allocation4 + $0x44] sm:$0xf] %vm2204, %v2165
  %2211 = vst.msk [vmem:[#allocation4 + $0x54] sm:$0x1] %vm2206, %v2167
  %2212 = vst.msk [vmem:[#allocation4 + $0x64] sm:$0xf] %vm2204, %v2169
  %2213 = vst.msk [vmem:[#allocation4 + $0x74] sm:$0x1] %vm2206, %v2171
  %2214 = vst.msk [vmem:[#allocation4 + $0x84] sm:$0xf] %vm2204, %v2173
  %2215 = vst.msk [vmem:[#allocation4 + $0x94] sm:$0x1] %vm2206, %v2175
  %2216 = vst.msk [vmem:[#allocation4 + $0xa4] sm:$0xf] %vm2204, %v2177
  %2217 = vst.msk [vmem:[#allocation4 + $0xb4] sm:$0x1] %vm2206, %v2179
  %2218 = vst.msk [vmem:[#allocation4 + $0xc4] sm:$0xf] %vm2204, %v2181
  %2219 = vst.msk [vmem:[#allocation4 + $0xd4] sm:$0x1] %vm2206, %v2183
  %2220 = vst.msk [vmem:[#allocation4 + $0xe4] sm:$0xf] %vm2204, %v2185
  %2221 = vst.msk [vmem:[#allocation4 + $0xf4] sm:$0x1] %vm2206, %v2187
  %v2222 = vld [vmem:[#allocation3 + $0x3] sm:$0xff]
  %v2223 = vld [vmem:[#allocation3 + $0xb] sm:$0x3]
  %v2224 = vld [vmem:[#allocation3 + $0x13] sm:$0xff]
  %v2225 = vld [vmem:[#allocation3 + $0x1b] sm:$0x3]
  %v2226 = vld [vmem:[#allocation3 + $0x23] sm:$0xff]
  %v2227 = vld [vmem:[#allocation3 + $0x2b] sm:$0x3]
  %v2228 = vld [vmem:[#allocation3 + $0x33] sm:$0xff]
  %v2229 = vld [vmem:[#allocation3 + $0x3b] sm:$0x3]
  %v2230 = vld [vmem:[#allocation3 + $0x43] sm:$0xff]
  %v2231 = vld [vmem:[#allocation3 + $0x4b] sm:$0x3]
  %v2232 = vld [vmem:[#allocation3 + $0x53] sm:$0xff]
  %v2233 = vld [vmem:[#allocation3 + $0x5b] sm:$0x3]
  %v2234 = vld [vmem:[#allocation3 + $0x63] sm:$0xff]
  %v2235 = vld [vmem:[#allocation3 + $0x6b] sm:$0x3]
  %v2236 = vld [vmem:[#allocation3 + $0x73] sm:$0xff]
  %v2237 = vld [vmem:[#allocation3 + $0x7b] sm:$0x3]
  %v2238 = vpack.c.bf16 %v2222, %v2222
  %v2239 = vpack.c.bf16 %v2223, %v2223
  %v2240 = vpack.c.bf16 %v2224, %v2224
  %v2241 = vpack.c.bf16 %v2225, %v2225
  %v2242 = vpack.c.bf16 %v2226, %v2226
  %v2243 = vpack.c.bf16 %v2227, %v2227
  %v2244 = vpack.c.bf16 %v2228, %v2228
  %v2245 = vpack.c.bf16 %v2229, %v2229
  %v2246 = vpack.c.bf16 %v2230, %v2230
  %v2247 = vpack.c.bf16 %v2231, %v2231
  %v2248 = vpack.c.bf16 %v2232, %v2232
  %v2249 = vpack.c.bf16 %v2233, %v2233
  %v2250 = vpack.c.bf16 %v2234, %v2234
  %v2251 = vpack.c.bf16 %v2235, %v2235
  %v2252 = vpack.c.bf16 %v2236, %v2236
  %v2253 = vpack.c.bf16 %v2237, %v2237
  %2270 = vrot.lane.b32.xlu0 %v2238, 124
  %v2271 = vpop.permute.xlu0 %2270
  %2272 = vrot.lane.b32.xlu0 %v2239, 124
  %v2273 = vpop.permute.xlu0 %2272
  %2274 = vrot.lane.b32.xlu0 %v2240, 124
  %v2275 = vpop.permute.xlu0 %2274
  %2276 = vrot.lane.b32.xlu0 %v2241, 124
  %v2277 = vpop.permute.xlu0 %2276
  %2278 = vrot.lane.b32.xlu0 %v2242, 124
  %v2279 = vpop.permute.xlu0 %2278
  %2280 = vrot.lane.b32.xlu0 %v2243, 124
  %v2281 = vpop.permute.xlu0 %2280
  %2282 = vrot.lane.b32.xlu0 %v2244, 124
  %v2283 = vpop.permute.xlu0 %2282
  %2284 = vrot.lane.b32.xlu0 %v2245, 124
  %v2285 = vpop.permute.xlu0 %2284
  %2286 = vrot.lane.b32.xlu0 %v2246, 124
  %v2287 = vpop.permute.xlu0 %2286
  %2288 = vrot.lane.b32.xlu0 %v2247, 124
  %v2289 = vpop.permute.xlu0 %2288
  %2290 = vrot.lane.b32.xlu0 %v2248, 124
  %v2291 = vpop.permute.xlu0 %2290
  %2292 = vrot.lane.b32.xlu0 %v2249, 124
  %v2293 = vpop.permute.xlu0 %2292
  %2294 = vrot.lane.b32.xlu0 %v2250, 124
  %v2295 = vpop.permute.xlu0 %2294
  %2296 = vrot.lane.b32.xlu0 %v2251, 124
  %v2297 = vpop.permute.xlu0 %2296
  %2298 = vrot.lane.b32.xlu0 %v2252, 124
  %v2299 = vpop.permute.xlu0 %2298
  %2300 = vrot.lane.b32.xlu0 %v2253, 124
  %v2301 = vpop.permute.xlu0 %2300
  %v2302 = vrot.slane %v2271, 4
  %v2303 = vrot.slane %v2273, 4
  %v2304 = vrot.slane %v2275, 4
  %v2305 = vrot.slane %v2277, 4
  %v2306 = vrot.slane %v2279, 4
  %v2307 = vrot.slane %v2281, 4
  %v2308 = vrot.slane %v2283, 4
  %v2309 = vrot.slane %v2285, 4
  %v2310 = vrot.slane %v2287, 4
  %v2311 = vrot.slane %v2289, 4
  %v2312 = vrot.slane %v2291, 4
  %v2313 = vrot.slane %v2293, 4
  %v2314 = vrot.slane %v2295, 4
  %v2315 = vrot.slane %v2297, 4
  %v2316 = vrot.slane %v2299, 4
  %v2317 = vrot.slane %v2301, 4
  %vm2318 = vcmask 1014784
  %v2319 = vsel %vm2318, %v2302, %v2271
  %v2320 = vsel %vm2318, %v2303, %v2273
  %v2321 = vsel %vm2318, %v2304, %v2275
  %v2322 = vsel %vm2318, %v2305, %v2277
  %v2323 = vsel %vm2318, %v2306, %v2279
  %v2324 = vsel %vm2318, %v2307, %v2281
  %v2325 = vsel %vm2318, %v2308, %v2283
  %v2326 = vsel %vm2318, %v2309, %v2285
  %v2327 = vsel %vm2318, %v2310, %v2287
  %v2328 = vsel %vm2318, %v2311, %v2289
  %v2329 = vsel %vm2318, %v2312, %v2291
  %v2330 = vsel %vm2318, %v2313, %v2293
  %v2331 = vsel %vm2318, %v2314, %v2295
  %v2332 = vsel %vm2318, %v2315, %v2297
  %v2333 = vsel %vm2318, %v2316, %v2299
  %v2334 = vsel %vm2318, %v2317, %v2301
  %vm2351 = vcmask 1044448
  %vm2352 = vcmask 654340
  %vm2353 = vmor %vm2352, %vm2351
  %2354 = vst.msk [vmem:[#allocation4 + $0x4] sm:$0xff] %vm2353, %v2319
  %vm2355 = vcmask 1041376
  %vm2356 = vcmask 651268
  %vm2357 = vmor %vm2356, %vm2355
  %2358 = vst.msk [vmem:[#allocation4 + $0x14] sm:$0x11] %vm2357, %v2320
  %2359 = vst.msk [vmem:[#allocation4 + $0x24] sm:$0xff] %vm2353, %v2321
  %2360 = vst.msk [vmem:[#allocation4 + $0x34] sm:$0x11] %vm2357, %v2322
  %2361 = vst.msk [vmem:[#allocation4 + $0x44] sm:$0xff] %vm2353, %v2323
  %2362 = vst.msk [vmem:[#allocation4 + $0x54] sm:$0x11] %vm2357, %v2324
  %2363 = vst.msk [vmem:[#allocation4 + $0x64] sm:$0xff] %vm2353, %v2325
  %2364 = vst.msk [vmem:[#allocation4 + $0x74] sm:$0x11] %vm2357, %v2326
  %2365 = vst.msk [vmem:[#allocation4 + $0x84] sm:$0xff] %vm2353, %v2327
  %2366 = vst.msk [vmem:[#allocation4 + $0x94] sm:$0x11] %vm2357, %v2328
  %2367 = vst.msk [vmem:[#allocation4 + $0xa4] sm:$0xff] %vm2353, %v2329
  %2368 = vst.msk [vmem:[#allocation4 + $0xb4] sm:$0x11] %vm2357, %v2330
  %2369 = vst.msk [vmem:[#allocation4 + $0xc4] sm:$0xff] %vm2353, %v2331
  %2370 = vst.msk [vmem:[#allocation4 + $0xd4] sm:$0x11] %vm2357, %v2332
  %2371 = vst.msk [vmem:[#allocation4 + $0xe4] sm:$0xff] %vm2353, %v2333
  %2372 = vst.msk [vmem:[#allocation4 + $0xf4] sm:$0x11] %vm2357, %v2334
  %v2373 = vld [vmem:[#allocation3 + $0x4] sm:$0xff]
  %v2374 = vld [vmem:[#allocation3 + $0xc] sm:$0x3]
  %v2375 = vld [vmem:[#allocation3 + $0x14] sm:$0xff]
  %v2376 = vld [vmem:[#allocation3 + $0x1c] sm:$0x3]
  %v2377 = vld [vmem:[#allocation3 + $0x24] sm:$0xff]
  %v2378 = vld [vmem:[#allocation3 + $0x2c] sm:$0x3]
  %v2379 = vld [vmem:[#allocation3 + $0x34] sm:$0xff]
  %v2380 = vld [vmem:[#allocation3 + $0x3c] sm:$0x3]
  %v2381 = vld [vmem:[#allocation3 + $0x44] sm:$0xff]
  %v2382 = vld [vmem:[#allocation3 + $0x4c] sm:$0x3]
  %v2383 = vld [vmem:[#allocation3 + $0x54] sm:$0xff]
  %v2384 = vld [vmem:[#allocation3 + $0x5c] sm:$0x3]
  %v2385 = vld [vmem:[#allocation3 + $0x64] sm:$0xff]
  %v2386 = vld [vmem:[#allocation3 + $0x6c] sm:$0x3]
  %v2387 = vld [vmem:[#allocation3 + $0x74] sm:$0xff]
  %v2388 = vld [vmem:[#allocation3 + $0x7c] sm:$0x3]
  %v2389 = vpack.c.bf16 %v2373, %v2373
  %v2390 = vpack.c.bf16 %v2374, %v2374
  %v2391 = vpack.c.bf16 %v2375, %v2375
  %v2392 = vpack.c.bf16 %v2376, %v2376
  %v2393 = vpack.c.bf16 %v2377, %v2377
  %v2394 = vpack.c.bf16 %v2378, %v2378
  %v2395 = vpack.c.bf16 %v2379, %v2379
  %v2396 = vpack.c.bf16 %v2380, %v2380
  %v2397 = vpack.c.bf16 %v2381, %v2381
  %v2398 = vpack.c.bf16 %v2382, %v2382
  %v2399 = vpack.c.bf16 %v2383, %v2383
  %v2400 = vpack.c.bf16 %v2384, %v2384
  %v2401 = vpack.c.bf16 %v2385, %v2385
  %v2402 = vpack.c.bf16 %v2386, %v2386
  %v2403 = vpack.c.bf16 %v2387, %v2387
  %v2404 = vpack.c.bf16 %v2388, %v2388
  %2421 = vrot.lane.b32.xlu0 %v2389, 80
  %v2422 = vpop.permute.xlu0 %2421
  %2423 = vrot.lane.b32.xlu0 %v2390, 80
  %v2424 = vpop.permute.xlu0 %2423
  %2425 = vrot.lane.b32.xlu0 %v2391, 80
  %v2426 = vpop.permute.xlu0 %2425
  %2427 = vrot.lane.b32.xlu0 %v2392, 80
  %v2428 = vpop.permute.xlu0 %2427
  %2429 = vrot.lane.b32.xlu0 %v2393, 80
  %v2430 = vpop.permute.xlu0 %2429
  %2431 = vrot.lane.b32.xlu0 %v2394, 80
  %v2432 = vpop.permute.xlu0 %2431
  %2433 = vrot.lane.b32.xlu0 %v2395, 80
  %v2434 = vpop.permute.xlu0 %2433
  %2435 = vrot.lane.b32.xlu0 %v2396, 80
  %v2436 = vpop.permute.xlu0 %2435
  %2437 = vrot.lane.b32.xlu0 %v2397, 80
  %v2438 = vpop.permute.xlu0 %2437
  %2439 = vrot.lane.b32.xlu0 %v2398, 80
  %v2440 = vpop.permute.xlu0 %2439
  %2441 = vrot.lane.b32.xlu0 %v2399, 80
  %v2442 = vpop.permute.xlu0 %2441
  %2443 = vrot.lane.b32.xlu0 %v2400, 80
  %v2444 = vpop.permute.xlu0 %2443
  %2445 = vrot.lane.b32.xlu0 %v2401, 80
  %v2446 = vpop.permute.xlu0 %2445
  %2447 = vrot.lane.b32.xlu0 %v2402, 80
  %v2448 = vpop.permute.xlu0 %2447
  %2449 = vrot.lane.b32.xlu0 %v2403, 80
  %v2450 = vpop.permute.xlu0 %2449
  %2451 = vrot.lane.b32.xlu0 %v2404, 80
  %v2452 = vpop.permute.xlu0 %2451
  %v2453 = vrot.slane %v2422, 4
  %v2454 = vrot.slane %v2424, 4
  %v2455 = vrot.slane %v2426, 4
  %v2456 = vrot.slane %v2428, 4
  %v2457 = vrot.slane %v2430, 4
  %v2458 = vrot.slane %v2432, 4
  %v2459 = vrot.slane %v2434, 4
  %v2460 = vrot.slane %v2436, 4
  %v2461 = vrot.slane %v2438, 4
  %v2462 = vrot.slane %v2440, 4
  %v2463 = vrot.slane %v2442, 4
  %v2464 = vrot.slane %v2444, 4
  %v2465 = vrot.slane %v2446, 4
  %v2466 = vrot.slane %v2448, 4
  %v2467 = vrot.slane %v2450, 4
  %v2468 = vrot.slane %v2452, 4
  %vm2469 = vcmask 654336
  %v2470 = vsel %vm2469, %v2453, %v2422
  %v2471 = vsel %vm2469, %v2454, %v2424
  %v2472 = vsel %vm2469, %v2455, %v2426
  %v2473 = vsel %vm2469, %v2456, %v2428
  %v2474 = vsel %vm2469, %v2457, %v2430
  %v2475 = vsel %vm2469, %v2458, %v2432
  %v2476 = vsel %vm2469, %v2459, %v2434
  %v2477 = vsel %vm2469, %v2460, %v2436
  %v2478 = vsel %vm2469, %v2461, %v2438
  %v2479 = vsel %vm2469, %v2462, %v2440
  %v2480 = vsel %vm2469, %v2463, %v2442
  %v2481 = vsel %vm2469, %v2464, %v2444
  %v2482 = vsel %vm2469, %v2465, %v2446
  %v2483 = vsel %vm2469, %v2466, %v2448
  %v2484 = vsel %vm2469, %v2467, %v2450
  %v2485 = vsel %vm2469, %v2468, %v2452
  %vm2502 = vcmask 1044096
  %vm2503 = vcmask 293892
  %vm2504 = vmor %vm2503, %vm2502
  %2505 = vst.msk [vmem:[#allocation4 + $0x8] sm:$0xff] %vm2504, %v2470
  %vm2506 = vcmask 1041024
  %vm2507 = vcmask 290820
  %vm2508 = vmor %vm2507, %vm2506
  %2509 = vst.msk [vmem:[#allocation4 + $0x18] sm:$0x11] %vm2508, %v2471
  %2510 = vst.msk [vmem:[#allocation4 + $0x28] sm:$0xff] %vm2504, %v2472
  %2511 = vst.msk [vmem:[#allocation4 + $0x38] sm:$0x11] %vm2508, %v2473
  %2512 = vst.msk [vmem:[#allocation4 + $0x48] sm:$0xff] %vm2504, %v2474
  %2513 = vst.msk [vmem:[#allocation4 + $0x58] sm:$0x11] %vm2508, %v2475
  %2514 = vst.msk [vmem:[#allocation4 + $0x68] sm:$0xff] %vm2504, %v2476
  %2515 = vst.msk [vmem:[#allocation4 + $0x78] sm:$0x11] %vm2508, %v2477
  %2516 = vst.msk [vmem:[#allocation4 + $0x88] sm:$0xff] %vm2504, %v2478
  %2517 = vst.msk [vmem:[#allocation4 + $0x98] sm:$0x11] %vm2508, %v2479
  %2518 = vst.msk [vmem:[#allocation4 + $0xa8] sm:$0xff] %vm2504, %v2480
  %2519 = vst.msk [vmem:[#allocation4 + $0xb8] sm:$0x11] %vm2508, %v2481
  %2520 = vst.msk [vmem:[#allocation4 + $0xc8] sm:$0xff] %vm2504, %v2482
  %2521 = vst.msk [vmem:[#allocation4 + $0xd8] sm:$0x11] %vm2508, %v2483
  %2522 = vst.msk [vmem:[#allocation4 + $0xe8] sm:$0xff] %vm2504, %v2484
  %2523 = vst.msk [vmem:[#allocation4 + $0xf8] sm:$0x11] %vm2508, %v2485
  %v2524 = vld [vmem:[#allocation4] sm:$0xff]
  %v2525 = vld [vmem:[#allocation4 + $0x8] sm:$0xff]
  %v2526 = vld [vmem:[#allocation4 + $0x10] sm:$0xff]
  %v2527 = vld [vmem:[#allocation4 + $0x18] sm:$0xff]
  %v2528 = vld [vmem:[#allocation4 + $0x20] sm:$0xff]
  %v2529 = vld [vmem:[#allocation4 + $0x28] sm:$0xff]
  %v2530 = vld [vmem:[#allocation4 + $0x30] sm:$0xff]
  %v2531 = vld [vmem:[#allocation4 + $0x38] sm:$0xff]
  %v2532 = vld [vmem:[#allocation4 + $0x40] sm:$0xff]
  %v2533 = vld [vmem:[#allocation4 + $0x48] sm:$0xff]
  %v2534 = vld [vmem:[#allocation4 + $0x50] sm:$0xff]
  %v2535 = vld [vmem:[#allocation4 + $0x58] sm:$0xff]
  %v2536 = vld [vmem:[#allocation4 + $0x60] sm:$0xff]
  %v2537 = vld [vmem:[#allocation4 + $0x68] sm:$0xff]
  %v2538 = vld [vmem:[#allocation4 + $0x70] sm:$0xff]
  %v2539 = vld [vmem:[#allocation4 + $0x78] sm:$0xff]
  %v2540 = vld [vmem:[#allocation4 + $0x80] sm:$0xff]
  %v2541 = vld [vmem:[#allocation4 + $0x88] sm:$0xff]
  %v2542 = vld [vmem:[#allocation4 + $0x90] sm:$0xff]
  %v2543 = vld [vmem:[#allocation4 + $0x98] sm:$0xff]
  %v2544 = vld [vmem:[#allocation4 + $0xa0] sm:$0xff]
  %v2545 = vld [vmem:[#allocation4 + $0xa8] sm:$0xff]
  %v2546 = vld [vmem:[#allocation4 + $0xb0] sm:$0xff]
  %v2547 = vld [vmem:[#allocation4 + $0xb8] sm:$0xff]
  %v2548 = vld [vmem:[#allocation4 + $0xc0] sm:$0xff]
  %v2549 = vld [vmem:[#allocation4 + $0xc8] sm:$0xff]
  %v2550 = vld [vmem:[#allocation4 + $0xd0] sm:$0xff]
  %v2551 = vld [vmem:[#allocation4 + $0xd8] sm:$0xff]
  %v2552 = vld [vmem:[#allocation4 + $0xe0] sm:$0xff]
  %v2553 = vld [vmem:[#allocation4 + $0xe8] sm:$0xff]
  %v2554 = vld [vmem:[#allocation4 + $0xf0] sm:$0xff]
  %v2555 = vld [vmem:[#allocation4 + $0xf8] sm:$0xff]
  %v2556 = vld [vmem:[%s3] sm:$0xff]
  %v2557 = vld [vmem:[%s3 + $0x8] sm:$0xff]
  %v2558 = vld [vmem:[%s3 + $0x10] sm:$0xff]
  %v2559 = vld [vmem:[%s3 + $0x18] sm:$0xff]
  %v2560 = vld [vmem:[%s3 + $0x20] sm:$0xff]
  %v2561 = vld [vmem:[%s3 + $0x28] sm:$0xff]
  %v2562 = vld [vmem:[%s3 + $0x30] sm:$0xff]
  %v2563 = vld [vmem:[%s3 + $0x38] sm:$0xff]
  %v2564 = vld [vmem:[%s3 + $0x40] sm:$0xff]
  %v2565 = vld [vmem:[%s3 + $0x48] sm:$0xff]
  %v2566 = vld [vmem:[%s3 + $0x50] sm:$0xff]
  %v2567 = vld [vmem:[%s3 + $0x58] sm:$0xff]
  %v2568 = vld [vmem:[%s3 + $0x60] sm:$0xff]
  %v2569 = vld [vmem:[%s3 + $0x68] sm:$0xff]
  %v2570 = vld [vmem:[%s3 + $0x70] sm:$0xff]
  %v2571 = vld [vmem:[%s3 + $0x78] sm:$0xff]
  %v2572 = vld [vmem:[%s3 + $0x80] sm:$0xff]
  %v2573 = vld [vmem:[%s3 + $0x88] sm:$0xff]
  %v2574 = vld [vmem:[%s3 + $0x90] sm:$0xff]
  %v2575 = vld [vmem:[%s3 + $0x98] sm:$0xff]
  %v2576 = vld [vmem:[%s3 + $0xa0] sm:$0xff]
  %v2577 = vld [vmem:[%s3 + $0xa8] sm:$0xff]
  %v2578 = vld [vmem:[%s3 + $0xb0] sm:$0xff]
  %v2579 = vld [vmem:[%s3 + $0xb8] sm:$0xff]
  %v2580 = vld [vmem:[%s3 + $0xc0] sm:$0xff]
  %v2581 = vld [vmem:[%s3 + $0xc8] sm:$0xff]
  %v2582 = vld [vmem:[%s3 + $0xd0] sm:$0xff]
  %v2583 = vld [vmem:[%s3 + $0xd8] sm:$0xff]
  %v2584 = vld [vmem:[%s3 + $0xe0] sm:$0xff]
  %v2585 = vld [vmem:[%s3 + $0xe8] sm:$0xff]
  %v2586 = vld [vmem:[%s3 + $0xf0] sm:$0xff]
  %v2587 = vld [vmem:[%s3 + $0xf8] sm:$0xff]
  %v2588 = vld [vmem:[%s3 + $0x100] sm:$0xff]
  %v2589 = vld [vmem:[%s3 + $0x108] sm:$0xff]
  %v2590 = vld [vmem:[%s3 + $0x110] sm:$0xff]
  %v2591 = vld [vmem:[%s3 + $0x118] sm:$0xff]
  %v2592 = vld [vmem:[%s3 + $0x120] sm:$0xff]
  %v2593 = vld [vmem:[%s3 + $0x128] sm:$0xff]
  %v2594 = vld [vmem:[%s3 + $0x130] sm:$0xff]
  %v2595 = vld [vmem:[%s3 + $0x138] sm:$0xff]
  %v2596 = vld [vmem:[%s3 + $0x140] sm:$0xff]
  %v2597 = vld [vmem:[%s3 + $0x148] sm:$0xff]
  %v2598 = vld [vmem:[%s3 + $0x150] sm:$0xff]
  %v2599 = vld [vmem:[%s3 + $0x158] sm:$0xff]
  %v2600 = vld [vmem:[%s3 + $0x160] sm:$0xff]
  %v2601 = vld [vmem:[%s3 + $0x168] sm:$0xff]
  %v2602 = vld [vmem:[%s3 + $0x170] sm:$0xff]
  %v2603 = vld [vmem:[%s3 + $0x178] sm:$0xff]
  %v2604 = vld [vmem:[%s3 + $0x180] sm:$0xff]
  %v2605 = vld [vmem:[%s3 + $0x188] sm:$0xff]
  %v2606 = vld [vmem:[%s3 + $0x190] sm:$0xff]
  %v2607 = vld [vmem:[%s3 + $0x198] sm:$0xff]
  %v2608 = vld [vmem:[%s3 + $0x1a0] sm:$0x33]
  %v2641 = vunpack.c.l.b16 %v2524
  %v2642 = vunpack.c.h.b16 %v2524
  %v2643 = vunpack.c.l.b16 %v2525
  %v2644 = vunpack.c.h.b16 %v2525
  %v2645 = vunpack.c.l.b16 %v2526
  %v2646 = vunpack.c.h.b16 %v2526
  %v2647 = vunpack.c.l.b16 %v2527
  %v2648 = vunpack.c.h.b16 %v2527
  %v2649 = vunpack.c.l.b16 %v2528
  %v2650 = vunpack.c.h.b16 %v2528
  %v2651 = vunpack.c.l.b16 %v2529
  %v2652 = vunpack.c.h.b16 %v2529
  %v2653 = vunpack.c.l.b16 %v2530
  %v2654 = vunpack.c.h.b16 %v2530
  %v2655 = vunpack.c.l.b16 %v2531
  %v2656 = vunpack.c.h.b16 %v2531
  %v2657 = vunpack.c.l.b16 %v2532
  %v2658 = vunpack.c.h.b16 %v2532
  %v2659 = vunpack.c.l.b16 %v2533
  %v2660 = vunpack.c.h.b16 %v2533
  %v2661 = vunpack.c.l.b16 %v2534
  %v2662 = vunpack.c.h.b16 %v2534
  %v2663 = vunpack.c.l.b16 %v2535
  %v2664 = vunpack.c.h.b16 %v2535
  %v2665 = vunpack.c.l.b16 %v2536
  %v2666 = vunpack.c.h.b16 %v2536
  %v2667 = vunpack.c.l.b16 %v2537
  %v2668 = vunpack.c.h.b16 %v2537
  %v2669 = vunpack.c.l.b16 %v2538
  %v2670 = vunpack.c.h.b16 %v2538
  %v2671 = vunpack.c.l.b16 %v2539
  %v2672 = vunpack.c.h.b16 %v2539
  %v2673 = vunpack.c.l.b16 %v2540
  %v2674 = vunpack.c.h.b16 %v2540
  %v2675 = vunpack.c.l.b16 %v2541
  %v2676 = vunpack.c.h.b16 %v2541
  %v2677 = vunpack.c.l.b16 %v2542
  %v2678 = vunpack.c.h.b16 %v2542
  %v2679 = vunpack.c.l.b16 %v2543
  %v2680 = vunpack.c.h.b16 %v2543
  %v2681 = vunpack.c.l.b16 %v2544
  %v2682 = vunpack.c.h.b16 %v2544
  %v2683 = vunpack.c.l.b16 %v2545
  %v2684 = vunpack.c.h.b16 %v2545
  %v2685 = vunpack.c.l.b16 %v2546
  %v2686 = vunpack.c.h.b16 %v2546
  %v2687 = vunpack.c.l.b16 %v2547
  %v2688 = vunpack.c.h.b16 %v2547
  %v2689 = vunpack.c.l.b16 %v2548
  %v2690 = vunpack.c.h.b16 %v2548
  %v2691 = vunpack.c.l.b16 %v2549
  %v2692 = vunpack.c.h.b16 %v2549
  %v2693 = vunpack.c.l.b16 %v2550
  %v2694 = vunpack.c.h.b16 %v2550
  %v2695 = vunpack.c.l.b16 %v2551
  %v2696 = vunpack.c.h.b16 %v2551
  %v2697 = vunpack.c.l.b16 %v2552
  %v2698 = vunpack.c.h.b16 %v2552
  %v2699 = vunpack.c.l.b16 %v2553
  %v2700 = vunpack.c.h.b16 %v2553
  %v2701 = vunpack.c.l.b16 %v2554
  %v2702 = vunpack.c.h.b16 %v2554
  %v2703 = vunpack.c.l.b16 %v2555
  %v2704 = vunpack.c.h.b16 %v2555
  %v2705 = vpack.c.b16 %v2645, %v2641
  %v2706 = vpack.c.b16 %v2646, %v2642
  %v2707 = vpack.c.b16 %v2647, %v2643
  %v2708 = vpack.c.b16 %v2648, %v2644
  %v2709 = vpack.c.b16 %v2653, %v2649
  %v2710 = vpack.c.b16 %v2654, %v2650
  %v2711 = vpack.c.b16 %v2655, %v2651
  %v2712 = vpack.c.b16 %v2656, %v2652
  %v2713 = vpack.c.b16 %v2661, %v2657
  %v2714 = vpack.c.b16 %v2662, %v2658
  %v2715 = vpack.c.b16 %v2663, %v2659
  %v2716 = vpack.c.b16 %v2664, %v2660
  %v2717 = vpack.c.b16 %v2669, %v2665
  %v2718 = vpack.c.b16 %v2670, %v2666
  %v2719 = vpack.c.b16 %v2671, %v2667
  %v2720 = vpack.c.b16 %v2672, %v2668
  %v2721 = vpack.c.b16 %v2677, %v2673
  %v2722 = vpack.c.b16 %v2678, %v2674
  %v2723 = vpack.c.b16 %v2679, %v2675
  %v2724 = vpack.c.b16 %v2680, %v2676
  %v2725 = vpack.c.b16 %v2685, %v2681
  %v2726 = vpack.c.b16 %v2686, %v2682
  %v2727 = vpack.c.b16 %v2687, %v2683
  %v2728 = vpack.c.b16 %v2688, %v2684
  %v2729 = vpack.c.b16 %v2693, %v2689
  %v2730 = vpack.c.b16 %v2694, %v2690
  %v2731 = vpack.c.b16 %v2695, %v2691
  %v2732 = vpack.c.b16 %v2696, %v2692
  %v2733 = vpack.c.b16 %v2701, %v2697
  %v2734 = vpack.c.b16 %v2702, %v2698
  %v2735 = vpack.c.b16 %v2703, %v2699
  %v2736 = vpack.c.b16 %v2704, %v2700
  %v2814 = vunpack.c.l.b16 %v2556
  %v2815 = vunpack.c.h.b16 %v2556
  %v2816 = vunpack.c.l.b16 %v2557
  %v2817 = vunpack.c.h.b16 %v2557
  %v2818 = vunpack.c.l.b16 %v2558
  %v2819 = vunpack.c.h.b16 %v2558
  %v2820 = vunpack.c.l.b16 %v2559
  %v2821 = vunpack.c.h.b16 %v2559
  %v2822 = vunpack.c.l.b16 %v2560
  %v2823 = vunpack.c.h.b16 %v2560
  %v2824 = vunpack.c.l.b16 %v2561
  %v2825 = vunpack.c.h.b16 %v2561
  %v2826 = vunpack.c.l.b16 %v2562
  %v2827 = vunpack.c.h.b16 %v2562
  %v2828 = vunpack.c.l.b16 %v2563
  %v2829 = vunpack.c.h.b16 %v2563
  %v2830 = vunpack.c.l.b16 %v2564
  %v2831 = vunpack.c.h.b16 %v2564
  %v2832 = vunpack.c.l.b16 %v2565
  %v2833 = vunpack.c.h.b16 %v2565
  %v2834 = vunpack.c.l.b16 %v2566
  %v2835 = vunpack.c.h.b16 %v2566
  %v2836 = vunpack.c.l.b16 %v2567
  %v2837 = vunpack.c.h.b16 %v2567
  %v2838 = vunpack.c.l.b16 %v2568
  %v2839 = vunpack.c.h.b16 %v2568
  %v2840 = vunpack.c.l.b16 %v2569
  %v2841 = vunpack.c.h.b16 %v2569
  %v2842 = vunpack.c.l.b16 %v2570
  %v2843 = vunpack.c.h.b16 %v2570
  %v2844 = vunpack.c.l.b16 %v2571
  %v2845 = vunpack.c.h.b16 %v2571
  %v2846 = vunpack.c.l.b16 %v2572
  %v2847 = vunpack.c.h.b16 %v2572
  %v2848 = vunpack.c.l.b16 %v2573
  %v2849 = vunpack.c.h.b16 %v2573
  %v2850 = vunpack.c.l.b16 %v2574
  %v2851 = vunpack.c.h.b16 %v2574
  %v2852 = vunpack.c.l.b16 %v2575
  %v2853 = vunpack.c.h.b16 %v2575
  %v2854 = vunpack.c.l.b16 %v2576
  %v2855 = vunpack.c.h.b16 %v2576
  %v2856 = vunpack.c.l.b16 %v2577
  %v2857 = vunpack.c.h.b16 %v2577
  %v2858 = vunpack.c.l.b16 %v2578
  %v2859 = vunpack.c.h.b16 %v2578
  %v2860 = vunpack.c.l.b16 %v2579
  %v2861 = vunpack.c.h.b16 %v2579
  %v2862 = vunpack.c.l.b16 %v2580
  %v2863 = vunpack.c.h.b16 %v2580
  %v2864 = vunpack.c.l.b16 %v2581
  %v2865 = vunpack.c.h.b16 %v2581
  %v2866 = vunpack.c.l.b16 %v2582
  %v2867 = vunpack.c.h.b16 %v2582
  %v2868 = vunpack.c.l.b16 %v2583
  %v2869 = vunpack.c.h.b16 %v2583
  %v2870 = vunpack.c.l.b16 %v2584
  %v2871 = vunpack.c.h.b16 %v2584
  %v2872 = vunpack.c.l.b16 %v2585
  %v2873 = vunpack.c.h.b16 %v2585
  %v2874 = vunpack.c.l.b16 %v2586
  %v2875 = vunpack.c.h.b16 %v2586
  %v2876 = vunpack.c.l.b16 %v2587
  %v2877 = vunpack.c.h.b16 %v2587
  %v2878 = vunpack.c.l.b16 %v2588
  %v2879 = vunpack.c.h.b16 %v2588
  %v2880 = vunpack.c.l.b16 %v2589
  %v2881 = vunpack.c.h.b16 %v2589
  %v2882 = vunpack.c.l.b16 %v2590
  %v2883 = vunpack.c.h.b16 %v2590
  %v2884 = vunpack.c.l.b16 %v2591
  %v2885 = vunpack.c.h.b16 %v2591
  %v2886 = vunpack.c.l.b16 %v2592
  %v2887 = vunpack.c.h.b16 %v2592
  %v2888 = vunpack.c.l.b16 %v2593
  %v2889 = vunpack.c.h.b16 %v2593
  %v2890 = vunpack.c.l.b16 %v2594
  %v2891 = vunpack.c.h.b16 %v2594
  %v2892 = vunpack.c.l.b16 %v2595
  %v2893 = vunpack.c.h.b16 %v2595
  %v2894 = vunpack.c.l.b16 %v2596
  %v2895 = vunpack.c.h.b16 %v2596
  %v2896 = vunpack.c.l.b16 %v2597
  %v2897 = vunpack.c.h.b16 %v2597
  %v2898 = vunpack.c.l.b16 %v2598
  %v2899 = vunpack.c.h.b16 %v2598
  %v2900 = vunpack.c.l.b16 %v2599
  %v2901 = vunpack.c.h.b16 %v2599
  %v2902 = vunpack.c.l.b16 %v2600
  %v2903 = vunpack.c.h.b16 %v2600
  %v2904 = vunpack.c.l.b16 %v2601
  %v2905 = vunpack.c.h.b16 %v2601
  %v2906 = vunpack.c.l.b16 %v2602
  %v2907 = vunpack.c.h.b16 %v2602
  %v2908 = vunpack.c.l.b16 %v2603
  %v2909 = vunpack.c.h.b16 %v2603
  %v2910 = vunpack.c.l.b16 %v2604
  %v2911 = vunpack.c.h.b16 %v2604
  %v2912 = vunpack.c.l.b16 %v2605
  %v2913 = vunpack.c.h.b16 %v2605
  %v2914 = vunpack.c.l.b16 %v2606
  %v2915 = vunpack.c.h.b16 %v2606
  %v2916 = vunpack.c.l.b16 %v2607
  %v2917 = vunpack.c.h.b16 %v2607
  %v2918 = vunpack.c.l.b16 %v2608
  %v2919 = vunpack.c.h.b16 %v2608
  %v2920 = vpack.c.b16 %v2816, %v2814
  %v2921 = vpack.c.b16 %v2817, %v2815
  %v2922 = vpack.c.b16 %v2820, %v2818
  %v2923 = vpack.c.b16 %v2821, %v2819
  %v2924 = vpack.c.b16 %v2824, %v2822
  %v2925 = vpack.c.b16 %v2825, %v2823
  %v2926 = vpack.c.b16 %v2828, %v2826
  %v2927 = vpack.c.b16 %v2829, %v2827
  %v2928 = vpack.c.b16 %v2832, %v2830
  %v2929 = vpack.c.b16 %v2833, %v2831
  %v2930 = vpack.c.b16 %v2836, %v2834
  %v2931 = vpack.c.b16 %v2837, %v2835
  %v2932 = vpack.c.b16 %v2840, %v2838
  %v2933 = vpack.c.b16 %v2841, %v2839
  %v2934 = vpack.c.b16 %v2844, %v2842
  %v2935 = vpack.c.b16 %v2845, %v2843
  %v2936 = vpack.c.b16 %v2848, %v2846
  %v2937 = vpack.c.b16 %v2849, %v2847
  %v2938 = vpack.c.b16 %v2852, %v2850
  %v2939 = vpack.c.b16 %v2853, %v2851
  %v2940 = vpack.c.b16 %v2856, %v2854
  %v2941 = vpack.c.b16 %v2857, %v2855
  %v2942 = vpack.c.b16 %v2860, %v2858
  %v2943 = vpack.c.b16 %v2861, %v2859
  %v2944 = vpack.c.b16 %v2864, %v2862
  %v2945 = vpack.c.b16 %v2865, %v2863
  %v2946 = vpack.c.b16 %v2868, %v2866
  %v2947 = vpack.c.b16 %v2869, %v2867
  %v2948 = vpack.c.b16 %v2872, %v2870
  %v2949 = vpack.c.b16 %v2873, %v2871
  %v2950 = vpack.c.b16 %v2876, %v2874
  %v2951 = vpack.c.b16 %v2877, %v2875
  %v2952 = vpack.c.b16 %v2880, %v2878
  %v2953 = vpack.c.b16 %v2881, %v2879
  %v2954 = vpack.c.b16 %v2884, %v2882
  %v2955 = vpack.c.b16 %v2885, %v2883
  %v2956 = vpack.c.b16 %v2888, %v2886
  %v2957 = vpack.c.b16 %v2889, %v2887
  %v2958 = vpack.c.b16 %v2892, %v2890
  %v2959 = vpack.c.b16 %v2893, %v2891
  %v2960 = vpack.c.b16 %v2896, %v2894
  %v2961 = vpack.c.b16 %v2897, %v2895
  %v2962 = vpack.c.b16 %v2900, %v2898
  %v2963 = vpack.c.b16 %v2901, %v2899
  %v2964 = vpack.c.b16 %v2904, %v2902
  %v2965 = vpack.c.b16 %v2905, %v2903
  %v2966 = vpack.c.b16 %v2908, %v2906
  %v2967 = vpack.c.b16 %v2909, %v2907
  %v2968 = vpack.c.b16 %v2912, %v2910
  %v2969 = vpack.c.b16 %v2913, %v2911
  %v2970 = vpack.c.b16 %v2916, %v2914
  %v2971 = vpack.c.b16 %v2917, %v2915
  %v2972 = vpack.c.b16 %v2918, %v2918
  %v2973 = vpack.c.b16 %v2919, %v2919
  %vm3026 = vcmask 293888
  %v3028 = vsel %vm3026, %v2708, 0
  %v3031 = vsel %vm3026, %v2712, 0
  %v3034 = vsel %vm3026, %v2716, 0
  %v3037 = vsel %vm3026, %v2720, 0
  %v3040 = vsel %vm3026, %v2724, 0
  %v3043 = vsel %vm3026, %v2728, 0
  %v3046 = vsel %vm3026, %v2732, 0
  %v3049 = vsel %vm3026, %v2736, 0
  %vm3051 = vcmask 1041408
  %v3053 = vsel %vm3051, %v2972, 0
  %v3056 = vsel %vm3051, %v2973, 0
  %3058 = vmatpush.bf16.msra.mxu0 %v2934
  %3059 = vmatpush.bf16.msra.mxu0 %v2932
  %3060 = vmatpush.bf16.msra.mxu0 %v2930
  %3061 = vmatpush.bf16.msra.mxu0 %v2928
  %3062 = vmatpush.bf16.msra.mxu0 %v2926
  %3063 = vmatpush.bf16.msra.mxu0 %v2924
  %3064 = vmatpush.bf16.msra.mxu0 %v2922
  %3065 = vmatpush.bf16.msra.mxu0 %v2920
  %3066 = vmatmul.bf16.gmra.mxu0 %v2705
  %v3067 = vpop.f32.mrf.mxu0
  %v3068 = vadd.f32 0.0, %v3067
  %v3069 = vpop.f32.mrf.mxu0
  %v3070 = vadd.f32 0.0, %v3069
  %3071 = vmatmul.bf16.gmra.mxu0 %v2709
  %v3072 = vpop.f32.mrf.mxu0
  %v3073 = vadd.f32 0.0, %v3072
  %v3074 = vpop.f32.mrf.mxu0
  %v3075 = vadd.f32 0.0, %v3074
  %3076 = vmatmul.bf16.gmra.mxu0 %v2713
  %v3077 = vpop.f32.mrf.mxu0
  %v3078 = vadd.f32 0.0, %v3077
  %v3079 = vpop.f32.mrf.mxu0
  %v3080 = vadd.f32 0.0, %v3079
  %3081 = vmatmul.bf16.gmra.mxu0 %v2717
  %v3082 = vpop.f32.mrf.mxu0
  %v3083 = vadd.f32 0.0, %v3082
  %v3084 = vpop.f32.mrf.mxu0
  %v3085 = vadd.f32 0.0, %v3084
  %3086 = vmatmul.bf16.gmra.mxu0 %v2721
  %v3087 = vpop.f32.mrf.mxu0
  %v3088 = vadd.f32 0.0, %v3087
  %v3089 = vpop.f32.mrf.mxu0
  %v3090 = vadd.f32 0.0, %v3089
  %3091 = vmatmul.bf16.gmra.mxu0 %v2725
  %v3092 = vpop.f32.mrf.mxu0
  %v3093 = vadd.f32 0.0, %v3092
  %v3094 = vpop.f32.mrf.mxu0
  %v3095 = vadd.f32 0.0, %v3094
  %3096 = vmatmul.bf16.gmra.mxu0 %v2729
  %v3097 = vpop.f32.mrf.mxu0
  %v3098 = vadd.f32 0.0, %v3097
  %v3099 = vpop.f32.mrf.mxu0
  %v3100 = vadd.f32 0.0, %v3099
  %3101 = vmatmul.bf16.gmra.mxu0 %v2733
  %v3102 = vpop.f32.mrf.mxu0
  %v3103 = vadd.f32 0.0, %v3102
  %v3104 = vpop.f32.mrf.mxu0
  %v3105 = vadd.f32 0.0, %v3104
  %3106 = vdwg.mxu0
  %3107 = vmatpush.bf16.msra.mxu0 %v2950
  %3108 = vmatpush.bf16.msra.mxu0 %v2948
  %3109 = vmatpush.bf16.msra.mxu0 %v2946
  %3110 = vmatpush.bf16.msra.mxu0 %v2944
  %3111 = vmatpush.bf16.msra.mxu0 %v2942
  %3112 = vmatpush.bf16.msra.mxu0 %v2940
  %3113 = vmatpush.bf16.msra.mxu0 %v2938
  %3114 = vmatpush.bf16.msra.mxu0 %v2936
  %3115 = vmatmul.bf16.gmra.mxu0 %v2706
  %v3116 = vpop.f32.mrf.mxu0
  %v3117 = vadd.f32 %v3068, %v3116
  %v3118 = vpop.f32.mrf.mxu0
  %v3119 = vadd.f32 %v3070, %v3118
  %3120 = vmatmul.bf16.gmra.mxu0 %v2710
  %v3121 = vpop.f32.mrf.mxu0
  %v3122 = vadd.f32 %v3073, %v3121
  %v3123 = vpop.f32.mrf.mxu0
  %v3124 = vadd.f32 %v3075, %v3123
  %3125 = vmatmul.bf16.gmra.mxu0 %v2714
  %v3126 = vpop.f32.mrf.mxu0
  %v3127 = vadd.f32 %v3078, %v3126
  %v3128 = vpop.f32.mrf.mxu0
  %v3129 = vadd.f32 %v3080, %v3128
  %3130 = vmatmul.bf16.gmra.mxu0 %v2718
  %v3131 = vpop.f32.mrf.mxu0
  %v3132 = vadd.f32 %v3083, %v3131
  %v3133 = vpop.f32.mrf.mxu0
  %v3134 = vadd.f32 %v3085, %v3133
  %3135 = vmatmul.bf16.gmra.mxu0 %v2722
  %v3136 = vpop.f32.mrf.mxu0
  %v3137 = vadd.f32 %v3088, %v3136
  %v3138 = vpop.f32.mrf.mxu0
  %v3139 = vadd.f32 %v3090, %v3138
  %3140 = vmatmul.bf16.gmra.mxu0 %v2726
  %v3141 = vpop.f32.mrf.mxu0
  %v3142 = vadd.f32 %v3093, %v3141
  %v3143 = vpop.f32.mrf.mxu0
  %v3144 = vadd.f32 %v3095, %v3143
  %3145 = vmatmul.bf16.gmra.mxu0 %v2730
  %v3146 = vpop.f32.mrf.mxu0
  %v3147 = vadd.f32 %v3098, %v3146
  %v3148 = vpop.f32.mrf.mxu0
  %v3149 = vadd.f32 %v3100, %v3148
  %3150 = vmatmul.bf16.gmra.mxu0 %v2734
  %v3151 = vpop.f32.mrf.mxu0
  %v3152 = vadd.f32 %v3103, %v3151
  %v3153 = vpop.f32.mrf.mxu0
  %v3154 = vadd.f32 %v3105, %v3153
  %3155 = vdwg.mxu0
  %3156 = vmatpush.bf16.msra.mxu0 %v2966
  %3157 = vmatpush.bf16.msra.mxu0 %v2964
  %3158 = vmatpush.bf16.msra.mxu0 %v2962
  %3159 = vmatpush.bf16.msra.mxu0 %v2960
  %3160 = vmatpush.bf16.msra.mxu0 %v2958
  %3161 = vmatpush.bf16.msra.mxu0 %v2956
  %3162 = vmatpush.bf16.msra.mxu0 %v2954
  %3163 = vmatpush.bf16.msra.mxu0 %v2952
  %3164 = vmatmul.bf16.gmra.mxu0 %v2707
  %v3165 = vpop.f32.mrf.mxu0
  %v3166 = vadd.f32 %v3117, %v3165
  %v3167 = vpop.f32.mrf.mxu0
  %v3168 = vadd.f32 %v3119, %v3167
  %3169 = vmatmul.bf16.gmra.mxu0 %v2711
  %v3170 = vpop.f32.mrf.mxu0
  %v3171 = vadd.f32 %v3122, %v3170
  %v3172 = vpop.f32.mrf.mxu0
  %v3173 = vadd.f32 %v3124, %v3172
  %3174 = vmatmul.bf16.gmra.mxu0 %v2715
  %v3175 = vpop.f32.mrf.mxu0
  %v3176 = vadd.f32 %v3127, %v3175
  %v3177 = vpop.f32.mrf.mxu0
  %v3178 = vadd.f32 %v3129, %v3177
  %3179 = vmatmul.bf16.gmra.mxu0 %v2719
  %v3180 = vpop.f32.mrf.mxu0
  %v3181 = vadd.f32 %v3132, %v3180
  %v3182 = vpop.f32.mrf.mxu0
  %v3183 = vadd.f32 %v3134, %v3182
  %3184 = vmatmul.bf16.gmra.mxu0 %v2723
  %v3185 = vpop.f32.mrf.mxu0
  %v3186 = vadd.f32 %v3137, %v3185
  %v3187 = vpop.f32.mrf.mxu0
  %v3188 = vadd.f32 %v3139, %v3187
  %3189 = vmatmul.bf16.gmra.mxu0 %v2727
  %v3190 = vpop.f32.mrf.mxu0
  %v3191 = vadd.f32 %v3142, %v3190
  %v3192 = vpop.f32.mrf.mxu0
  %v3193 = vadd.f32 %v3144, %v3192
  %3194 = vmatmul.bf16.gmra.mxu0 %v2731
  %v3195 = vpop.f32.mrf.mxu0
  %v3196 = vadd.f32 %v3147, %v3195
  %v3197 = vpop.f32.mrf.mxu0
  %v3198 = vadd.f32 %v3149, %v3197
  %3199 = vmatmul.bf16.gmra.mxu0 %v2735
  %v3200 = vpop.f32.mrf.mxu0
  %v3201 = vadd.f32 %v3152, %v3200
  %v3202 = vpop.f32.mrf.mxu0
  %v3203 = vadd.f32 %v3154, %v3202
  %3204 = vdwg.mxu0
  %3205 = vmatpush.bf16.msra.mxu0 0
  %3206 = vmatpush.bf16.msra.mxu0 0
  %3207 = vmatpush.bf16.msra.mxu0 0
  %3208 = vmatpush.bf16.msra.mxu0 0
  %3209 = vmatpush.bf16.msra.mxu0 0
  %3210 = vmatpush.bf16.msra.mxu0 %v3053
  %3211 = vmatpush.bf16.msra.mxu0 %v2970
  %3212 = vmatpush.bf16.msra.mxu0 %v2968
  %3213 = vmatmul.bf16.gmra.mxu0 %v3028
  %v3214 = vpop.f32.mrf.mxu0
  %v3215 = vadd.f32 %v3166, %v3214
  %v3216 = vpop.f32.mrf.mxu0
  %v3217 = vadd.f32 %v3168, %v3216
  %3218 = vmatmul.bf16.gmra.mxu0 %v3031
  %v3219 = vpop.f32.mrf.mxu0
  %v3220 = vadd.f32 %v3171, %v3219
  %v3221 = vpop.f32.mrf.mxu0
  %v3222 = vadd.f32 %v3173, %v3221
  %3223 = vmatmul.bf16.gmra.mxu0 %v3034
  %v3224 = vpop.f32.mrf.mxu0
  %v3225 = vadd.f32 %v3176, %v3224
  %v3226 = vpop.f32.mrf.mxu0
  %v3227 = vadd.f32 %v3178, %v3226
  %3228 = vmatmul.bf16.gmra.mxu0 %v3037
  %v3229 = vpop.f32.mrf.mxu0
  %v3230 = vadd.f32 %v3181, %v3229
  %v3231 = vpop.f32.mrf.mxu0
  %v3232 = vadd.f32 %v3183, %v3231
  %3233 = vmatmul.bf16.gmra.mxu0 %v3040
  %v3234 = vpop.f32.mrf.mxu0
  %v3235 = vadd.f32 %v3186, %v3234
  %v3236 = vpop.f32.mrf.mxu0
  %v3237 = vadd.f32 %v3188, %v3236
  %3238 = vmatmul.bf16.gmra.mxu0 %v3043
  %v3239 = vpop.f32.mrf.mxu0
  %v3240 = vadd.f32 %v3191, %v3239
  %v3241 = vpop.f32.mrf.mxu0
  %v3242 = vadd.f32 %v3193, %v3241
  %3243 = vmatmul.bf16.gmra.mxu0 %v3046
  %v3244 = vpop.f32.mrf.mxu0
  %v3245 = vadd.f32 %v3196, %v3244
  %v3246 = vpop.f32.mrf.mxu0
  %v3247 = vadd.f32 %v3198, %v3246
  %3248 = vmatmul.bf16.gmra.mxu0 %v3049
  %v3249 = vpop.f32.mrf.mxu0
  %v3250 = vadd.f32 %v3201, %v3249
  %v3251 = vpop.f32.mrf.mxu0
  %v3252 = vadd.f32 %v3203, %v3251
  %3253 = vdwg.mxu0
  %3254 = vmatpush.bf16.msra.mxu0 %v2935
  %3255 = vmatpush.bf16.msra.mxu0 %v2933
  %3256 = vmatpush.bf16.msra.mxu0 %v2931
  %3257 = vmatpush.bf16.msra.mxu0 %v2929
  %3258 = vmatpush.bf16.msra.mxu0 %v2927
  %3259 = vmatpush.bf16.msra.mxu0 %v2925
  %3260 = vmatpush.bf16.msra.mxu0 %v2923
  %3261 = vmatpush.bf16.msra.mxu0 %v2921
  %3262 = vmatmul.bf16.gmra.mxu0 %v2705
  %v3263 = vpop.f32.mrf.mxu0
  %v3264 = vadd.f32 0.0, %v3263
  %v3265 = vpop.f32.mrf.mxu0
  %v3266 = vadd.f32 0.0, %v3265
  %3267 = vmatmul.bf16.gmra.mxu0 %v2709
  %v3268 = vpop.f32.mrf.mxu0
  %v3269 = vadd.f32 0.0, %v3268
  %v3270 = vpop.f32.mrf.mxu0
  %v3271 = vadd.f32 0.0, %v3270
  %3272 = vmatmul.bf16.gmra.mxu0 %v2713
  %v3273 = vpop.f32.mrf.mxu0
  %v3274 = vadd.f32 0.0, %v3273
  %v3275 = vpop.f32.mrf.mxu0
  %v3276 = vadd.f32 0.0, %v3275
  %3277 = vmatmul.bf16.gmra.mxu0 %v2717
  %v3278 = vpop.f32.mrf.mxu0
  %v3279 = vadd.f32 0.0, %v3278
  %v3280 = vpop.f32.mrf.mxu0
  %v3281 = vadd.f32 0.0, %v3280
  %3282 = vmatmul.bf16.gmra.mxu0 %v2721
  %v3283 = vpop.f32.mrf.mxu0
  %v3284 = vadd.f32 0.0, %v3283
  %v3285 = vpop.f32.mrf.mxu0
  %v3286 = vadd.f32 0.0, %v3285
  %3287 = vmatmul.bf16.gmra.mxu0 %v2725
  %v3288 = vpop.f32.mrf.mxu0
  %v3289 = vadd.f32 0.0, %v3288
  %v3290 = vpop.f32.mrf.mxu0
  %v3291 = vadd.f32 0.0, %v3290
  %3292 = vmatmul.bf16.gmra.mxu0 %v2729
  %v3293 = vpop.f32.mrf.mxu0
  %v3294 = vadd.f32 0.0, %v3293
  %v3295 = vpop.f32.mrf.mxu0
  %v3296 = vadd.f32 0.0, %v3295
  %3297 = vmatmul.bf16.gmra.mxu0 %v2733
  %v3298 = vpop.f32.mrf.mxu0
  %v3299 = vadd.f32 0.0, %v3298
  %v3300 = vpop.f32.mrf.mxu0
  %v3301 = vadd.f32 0.0, %v3300
  %3302 = vdwg.mxu0
  %3303 = vmatpush.bf16.msra.mxu0 %v2951
  %3304 = vmatpush.bf16.msra.mxu0 %v2949
  %3305 = vmatpush.bf16.msra.mxu0 %v2947
  %3306 = vmatpush.bf16.msra.mxu0 %v2945
  %3307 = vmatpush.bf16.msra.mxu0 %v2943
  %3308 = vmatpush.bf16.msra.mxu0 %v2941
  %3309 = vmatpush.bf16.msra.mxu0 %v2939
  %3310 = vmatpush.bf16.msra.mxu0 %v2937
  %3311 = vmatmul.bf16.gmra.mxu0 %v2706
  %v3312 = vpop.f32.mrf.mxu0
  %v3313 = vadd.f32 %v3264, %v3312
  %v3314 = vpop.f32.mrf.mxu0
  %v3315 = vadd.f32 %v3266, %v3314
  %3316 = vmatmul.bf16.gmra.mxu0 %v2710
  %v3317 = vpop.f32.mrf.mxu0
  %v3318 = vadd.f32 %v3269, %v3317
  %v3319 = vpop.f32.mrf.mxu0
  %v3320 = vadd.f32 %v3271, %v3319
  %3321 = vmatmul.bf16.gmra.mxu0 %v2714
  %v3322 = vpop.f32.mrf.mxu0
  %v3323 = vadd.f32 %v3274, %v3322
  %v3324 = vpop.f32.mrf.mxu0
  %v3325 = vadd.f32 %v3276, %v3324
  %3326 = vmatmul.bf16.gmra.mxu0 %v2718
  %v3327 = vpop.f32.mrf.mxu0
  %v3328 = vadd.f32 %v3279, %v3327
  %v3329 = vpop.f32.mrf.mxu0
  %v3330 = vadd.f32 %v3281, %v3329
  %3331 = vmatmul.bf16.gmra.mxu0 %v2722
  %v3332 = vpop.f32.mrf.mxu0
  %v3333 = vadd.f32 %v3284, %v3332
  %v3334 = vpop.f32.mrf.mxu0
  %v3335 = vadd.f32 %v3286, %v3334
  %3336 = vmatmul.bf16.gmra.mxu0 %v2726
  %v3337 = vpop.f32.mrf.mxu0
  %v3338 = vadd.f32 %v3289, %v3337
  %v3339 = vpop.f32.mrf.mxu0
  %v3340 = vadd.f32 %v3291, %v3339
  %3341 = vmatmul.bf16.gmra.mxu0 %v2730
  %v3342 = vpop.f32.mrf.mxu0
  %v3343 = vadd.f32 %v3294, %v3342
  %v3344 = vpop.f32.mrf.mxu0
  %v3345 = vadd.f32 %v3296, %v3344
  %3346 = vmatmul.bf16.gmra.mxu0 %v2734
  %v3347 = vpop.f32.mrf.mxu0
  %v3348 = vadd.f32 %v3299, %v3347
  %v3349 = vpop.f32.mrf.mxu0
  %v3350 = vadd.f32 %v3301, %v3349
  %3351 = vdwg.mxu0
  %3352 = vmatpush.bf16.msra.mxu0 %v2967
  %3353 = vmatpush.bf16.msra.mxu0 %v2965
  %3354 = vmatpush.bf16.msra.mxu0 %v2963
  %3355 = vmatpush.bf16.msra.mxu0 %v2961
  %3356 = vmatpush.bf16.msra.mxu0 %v2959
  %3357 = vmatpush.bf16.msra.mxu0 %v2957
  %3358 = vmatpush.bf16.msra.mxu0 %v2955
  %3359 = vmatpush.bf16.msra.mxu0 %v2953
  %3360 = vmatmul.bf16.gmra.mxu0 %v2707
  %v3361 = vpop.f32.mrf.mxu0
  %v3362 = vadd.f32 %v3313, %v3361
  %v3363 = vpop.f32.mrf.mxu0
  %v3364 = vadd.f32 %v3315, %v3363
  %3365 = vmatmul.bf16.gmra.mxu0 %v2711
  %v3366 = vpop.f32.mrf.mxu0
  %v3367 = vadd.f32 %v3318, %v3366
  %v3368 = vpop.f32.mrf.mxu0
  %v3369 = vadd.f32 %v3320, %v3368
  %3370 = vmatmul.bf16.gmra.mxu0 %v2715
  %v3371 = vpop.f32.mrf.mxu0
  %v3372 = vadd.f32 %v3323, %v3371
  %v3373 = vpop.f32.mrf.mxu0
  %v3374 = vadd.f32 %v3325, %v3373
  %3375 = vmatmul.bf16.gmra.mxu0 %v2719
  %v3376 = vpop.f32.mrf.mxu0
  %v3377 = vadd.f32 %v3328, %v3376
  %v3378 = vpop.f32.mrf.mxu0
  %v3379 = vadd.f32 %v3330, %v3378
  %3380 = vmatmul.bf16.gmra.mxu0 %v2723
  %v3381 = vpop.f32.mrf.mxu0
  %v3382 = vadd.f32 %v3333, %v3381
  %v3383 = vpop.f32.mrf.mxu0
  %v3384 = vadd.f32 %v3335, %v3383
  %3385 = vmatmul.bf16.gmra.mxu0 %v2727
  %v3386 = vpop.f32.mrf.mxu0
  %v3387 = vadd.f32 %v3338, %v3386
  %v3388 = vpop.f32.mrf.mxu0
  %v3389 = vadd.f32 %v3340, %v3388
  %3390 = vmatmul.bf16.gmra.mxu0 %v2731
  %v3391 = vpop.f32.mrf.mxu0
  %v3392 = vadd.f32 %v3343, %v3391
  %v3393 = vpop.f32.mrf.mxu0
  %v3394 = vadd.f32 %v3345, %v3393
  %3395 = vmatmul.bf16.gmra.mxu0 %v2735
  %v3396 = vpop.f32.mrf.mxu0
  %v3397 = vadd.f32 %v3348, %v3396
  %v3398 = vpop.f32.mrf.mxu0
  %v3399 = vadd.f32 %v3350, %v3398
  %3400 = vdwg.mxu0
  %3401 = vmatpush.bf16.msra.mxu0 0
  %3402 = vmatpush.bf16.msra.mxu0 0
  %3403 = vmatpush.bf16.msra.mxu0 0
  %3404 = vmatpush.bf16.msra.mxu0 0
  %3405 = vmatpush.bf16.msra.mxu0 0
  %3406 = vmatpush.bf16.msra.mxu0 %v3056
  %3407 = vmatpush.bf16.msra.mxu0 %v2971
  %3408 = vmatpush.bf16.msra.mxu0 %v2969
  %3409 = vmatmul.bf16.gmra.mxu0 %v3028
  %v3410 = vpop.f32.mrf.mxu0
  %v3411 = vadd.f32 %v3362, %v3410
  %v3412 = vpop.f32.mrf.mxu0
  %v3413 = vadd.f32 %v3364, %v3412
  %3414 = vmatmul.bf16.gmra.mxu0 %v3031
  %v3415 = vpop.f32.mrf.mxu0
  %v3416 = vadd.f32 %v3367, %v3415
  %v3417 = vpop.f32.mrf.mxu0
  %v3418 = vadd.f32 %v3369, %v3417
  %3419 = vmatmul.bf16.gmra.mxu0 %v3034
  %v3420 = vpop.f32.mrf.mxu0
  %v3421 = vadd.f32 %v3372, %v3420
  %v3422 = vpop.f32.mrf.mxu0
  %v3423 = vadd.f32 %v3374, %v3422
  %3424 = vmatmul.bf16.gmra.mxu0 %v3037
  %v3425 = vpop.f32.mrf.mxu0
  %v3426 = vadd.f32 %v3377, %v3425
  %v3427 = vpop.f32.mrf.mxu0
  %v3428 = vadd.f32 %v3379, %v3427
  %3429 = vmatmul.bf16.gmra.mxu0 %v3040
  %v3430 = vpop.f32.mrf.mxu0
  %v3431 = vadd.f32 %v3382, %v3430
  %v3432 = vpop.f32.mrf.mxu0
  %v3433 = vadd.f32 %v3384, %v3432
  %3434 = vmatmul.bf16.gmra.mxu0 %v3043
  %v3435 = vpop.f32.mrf.mxu0
  %v3436 = vadd.f32 %v3387, %v3435
  %v3437 = vpop.f32.mrf.mxu0
  %v3438 = vadd.f32 %v3389, %v3437
  %3439 = vmatmul.bf16.gmra.mxu0 %v3046
  %v3440 = vpop.f32.mrf.mxu0
  %v3441 = vadd.f32 %v3392, %v3440
  %v3442 = vpop.f32.mrf.mxu0
  %v3443 = vadd.f32 %v3394, %v3442
  %3444 = vmatmul.bf16.gmra.mxu0 %v3049
  %v3445 = vpop.f32.mrf.mxu0
  %v3446 = vadd.f32 %v3397, %v3445
  %v3447 = vpop.f32.mrf.mxu0
  %v3448 = vadd.f32 %v3399, %v3447
  %3449 = vdwg.mxu0
  %3482 = vrot.lane.b32.xlu0 %v3215, 48
  %v3483 = vpop.permute.xlu0 %3482
  %3484 = vrot.lane.b32.xlu0 %v3411, 48
  %v3485 = vpop.permute.xlu0 %3484
  %3486 = vrot.lane.b32.xlu0 %v3217, 48
  %v3487 = vpop.permute.xlu0 %3486
  %3488 = vrot.lane.b32.xlu0 %v3413, 48
  %v3489 = vpop.permute.xlu0 %3488
  %3490 = vrot.lane.b32.xlu0 %v3220, 48
  %v3491 = vpop.permute.xlu0 %3490
  %3492 = vrot.lane.b32.xlu0 %v3416, 48
  %v3493 = vpop.permute.xlu0 %3492
  %3494 = vrot.lane.b32.xlu0 %v3222, 48
  %v3495 = vpop.permute.xlu0 %3494
  %3496 = vrot.lane.b32.xlu0 %v3418, 48
  %v3497 = vpop.permute.xlu0 %3496
  %3498 = vrot.lane.b32.xlu0 %v3225, 48
  %v3499 = vpop.permute.xlu0 %3498
  %3500 = vrot.lane.b32.xlu0 %v3421, 48
  %v3501 = vpop.permute.xlu0 %3500
  %3502 = vrot.lane.b32.xlu0 %v3227, 48
  %v3503 = vpop.permute.xlu0 %3502
  %3504 = vrot.lane.b32.xlu0 %v3423, 48
  %v3505 = vpop.permute.xlu0 %3504
  %3506 = vrot.lane.b32.xlu0 %v3230, 48
  %v3507 = vpop.permute.xlu0 %3506
  %3508 = vrot.lane.b32.xlu0 %v3426, 48
  %v3509 = vpop.permute.xlu0 %3508
  %3510 = vrot.lane.b32.xlu0 %v3232, 48
  %v3511 = vpop.permute.xlu0 %3510
  %3512 = vrot.lane.b32.xlu0 %v3428, 48
  %v3513 = vpop.permute.xlu0 %3512
  %3514 = vrot.lane.b32.xlu0 %v3235, 48
  %v3515 = vpop.permute.xlu0 %3514
  %3516 = vrot.lane.b32.xlu0 %v3431, 48
  %v3517 = vpop.permute.xlu0 %3516
  %3518 = vrot.lane.b32.xlu0 %v3237, 48
  %v3519 = vpop.permute.xlu0 %3518
  %3520 = vrot.lane.b32.xlu0 %v3433, 48
  %v3521 = vpop.permute.xlu0 %3520
  %3522 = vrot.lane.b32.xlu0 %v3240, 48
  %v3523 = vpop.permute.xlu0 %3522
  %3524 = vrot.lane.b32.xlu0 %v3436, 48
  %v3525 = vpop.permute.xlu0 %3524
  %3526 = vrot.lane.b32.xlu0 %v3242, 48
  %v3527 = vpop.permute.xlu0 %3526
  %3528 = vrot.lane.b32.xlu0 %v3438, 48
  %v3529 = vpop.permute.xlu0 %3528
  %3530 = vrot.lane.b32.xlu0 %v3245, 48
  %v3531 = vpop.permute.xlu0 %3530
  %3532 = vrot.lane.b32.xlu0 %v3441, 48
  %v3533 = vpop.permute.xlu0 %3532
  %3534 = vrot.lane.b32.xlu0 %v3247, 48
  %v3535 = vpop.permute.xlu0 %3534
  %3536 = vrot.lane.b32.xlu0 %v3443, 48
  %v3537 = vpop.permute.xlu0 %3536
  %3538 = vrot.lane.b32.xlu0 %v3250, 48
  %v3539 = vpop.permute.xlu0 %3538
  %3540 = vrot.lane.b32.xlu0 %v3446, 48
  %v3541 = vpop.permute.xlu0 %3540
  %3542 = vrot.lane.b32.xlu0 %v3252, 48
  %v3543 = vpop.permute.xlu0 %3542
  %3544 = vrot.lane.b32.xlu0 %v3448, 48
  %v3545 = vpop.permute.xlu0 %3544
  %vm3546 = vcmask 392192
  %v3547 = vsel %vm3546, %v3483, %v3485
  %v3548 = vsel %vm3546, %v3487, %v3489
  %v3549 = vsel %vm3546, %v3491, %v3493
  %v3550 = vsel %vm3546, %v3495, %v3497
  %v3551 = vsel %vm3546, %v3499, %v3501
  %v3552 = vsel %vm3546, %v3503, %v3505
  %v3553 = vsel %vm3546, %v3507, %v3509
  %v3554 = vsel %vm3546, %v3511, %v3513
  %v3555 = vsel %vm3546, %v3515, %v3517
  %v3556 = vsel %vm3546, %v3519, %v3521
  %v3557 = vsel %vm3546, %v3523, %v3525
  %v3558 = vsel %vm3546, %v3527, %v3529
  %v3559 = vsel %vm3546, %v3531, %v3533
  %v3560 = vsel %vm3546, %v3535, %v3537
  %v3561 = vsel %vm3546, %v3539, %v3541
  %v3562 = vsel %vm3546, %v3543, %v3545
  %v3579 = vmax.f32 %v3215, %v3547
  %v3580 = vmax.f32 %v3217, %v3548
  %v3581 = vmax.f32 %v3220, %v3549
  %v3582 = vmax.f32 %v3222, %v3550
  %v3583 = vmax.f32 %v3225, %v3551
  %v3584 = vmax.f32 %v3227, %v3552
  %v3585 = vmax.f32 %v3230, %v3553
  %v3586 = vmax.f32 %v3232, %v3554
  %v3587 = vmax.f32 %v3235, %v3555
  %v3588 = vmax.f32 %v3237, %v3556
  %v3589 = vmax.f32 %v3240, %v3557
  %v3590 = vmax.f32 %v3242, %v3558
  %v3591 = vmax.f32 %v3245, %v3559
  %v3592 = vmax.f32 %v3247, %v3560
  %v3593 = vmax.f32 %v3250, %v3561
  %v3594 = vmax.f32 %v3252, %v3562
  %vm3595 = vcmask 654336
  %3596 = vst.msk [vmem:[#allocation5] sm:$0xff] %vm3595, %v3579
  %3597 = vst.msk [vmem:[#allocation5 + $0x8] sm:$0xff] %vm3595, %v3580
  %3598 = vst.msk [vmem:[#allocation5 + $0x10] sm:$0xff] %vm3595, %v3581
  %3599 = vst.msk [vmem:[#allocation5 + $0x18] sm:$0xff] %vm3595, %v3582
  %3600 = vst.msk [vmem:[#allocation5 + $0x20] sm:$0xff] %vm3595, %v3583
  %3601 = vst.msk [vmem:[#allocation5 + $0x28] sm:$0xff] %vm3595, %v3584
  %3602 = vst.msk [vmem:[#allocation5 + $0x30] sm:$0xff] %vm3595, %v3585
  %3603 = vst.msk [vmem:[#allocation5 + $0x38] sm:$0xff] %vm3595, %v3586
  %3604 = vst.msk [vmem:[#allocation5 + $0x40] sm:$0xff] %vm3595, %v3587
  %3605 = vst.msk [vmem:[#allocation5 + $0x48] sm:$0xff] %vm3595, %v3588
  %3606 = vst.msk [vmem:[#allocation5 + $0x50] sm:$0xff] %vm3595, %v3589
  %3607 = vst.msk [vmem:[#allocation5 + $0x58] sm:$0xff] %vm3595, %v3590
  %3608 = vst.msk [vmem:[#allocation5 + $0x60] sm:$0xff] %vm3595, %v3591
  %3609 = vst.msk [vmem:[#allocation5 + $0x68] sm:$0xff] %vm3595, %v3592
  %3610 = vst.msk [vmem:[#allocation5 + $0x70] sm:$0xff] %vm3595, %v3593
  %3611 = vst.msk [vmem:[#allocation5 + $0x78] sm:$0xff] %vm3595, %v3594
  %v3612 = vld [vmem:[%s4] sm:$0x1]
  %v3613 = vld [vmem:[#allocation5] sm:$0x1]
  %v3614 = vld [vmem:[#allocation5 + $0x10] sm:$0x1]
  %v3615 = vld [vmem:[#allocation5 + $0x20] sm:$0x1]
  %v3616 = vld [vmem:[#allocation5 + $0x30] sm:$0x1]
  %v3617 = vld [vmem:[#allocation5 + $0x40] sm:$0x1]
  %v3618 = vld [vmem:[#allocation5 + $0x50] sm:$0x1]
  %v3619 = vld [vmem:[#allocation5 + $0x60] sm:$0x1]
  %v3620 = vld [vmem:[#allocation5 + $0x70] sm:$0x1]
  %v3621 = vld [vmem:[#allocation5 + $0x1] sm:$0x1]
  %v3622 = vld [vmem:[#allocation5 + $0x11] sm:$0x1]
  %v3623 = vld [vmem:[#allocation5 + $0x21] sm:$0x1]
  %v3624 = vld [vmem:[#allocation5 + $0x31] sm:$0x1]
  %v3625 = vld [vmem:[#allocation5 + $0x41] sm:$0x1]
  %v3626 = vld [vmem:[#allocation5 + $0x51] sm:$0x1]
  %v3627 = vld [vmem:[#allocation5 + $0x61] sm:$0x1]
  %v3628 = vld [vmem:[#allocation5 + $0x71] sm:$0x1]
  %v3629 = vmax.f32 %v3613, %v3621
  %v3630 = vmax.f32 %v3614, %v3622
  %v3631 = vmax.f32 %v3615, %v3623
  %v3632 = vmax.f32 %v3616, %v3624
  %v3633 = vmax.f32 %v3617, %v3625
  %v3634 = vmax.f32 %v3618, %v3626
  %v3635 = vmax.f32 %v3619, %v3627
  %v3636 = vmax.f32 %v3620, %v3628
  %v3638 = vperm.slane %v3612, 0
  %v3640 = vadd.f32 %v3629, %v3638
  %v3641 = vadd.f32 %v3630, %v3638
  %v3642 = vadd.f32 %v3631, %v3638
  %v3643 = vadd.f32 %v3632, %v3638
  %v3644 = vadd.f32 %v3633, %v3638
  %v3645 = vadd.f32 %v3634, %v3638
  %v3646 = vadd.f32 %v3635, %v3638
  %v3647 = vadd.f32 %v3636, %v3638
  %v3648 = vmax.f32 %v3640, 0.0
  %v3649 = vmax.f32 %v3641, 0.0
  %v3650 = vmax.f32 %v3642, 0.0
  %v3651 = vmax.f32 %v3643, 0.0
  %v3652 = vmax.f32 %v3644, 0.0
  %v3653 = vmax.f32 %v3645, 0.0
  %v3654 = vmax.f32 %v3646, 0.0
  %v3655 = vmax.f32 %v3647, 0.0
  %v3656 = vld [vmem:[#allocation5 + $0x2] sm:$0x1]
  %v3657 = vld [vmem:[#allocation5 + $0x12] sm:$0x1]
  %v3658 = vld [vmem:[#allocation5 + $0x22] sm:$0x1]
  %v3659 = vld [vmem:[#allocation5 + $0x32] sm:$0x1]
  %v3660 = vld [vmem:[#allocation5 + $0x42] sm:$0x1]
  %v3661 = vld [vmem:[#allocation5 + $0x52] sm:$0x1]
  %v3662 = vld [vmem:[#allocation5 + $0x62] sm:$0x1]
  %v3663 = vld [vmem:[#allocation5 + $0x72] sm:$0x1]
  %v3664 = vld [vmem:[#allocation5 + $0x3] sm:$0x1]
  %v3665 = vld [vmem:[#allocation5 + $0x13] sm:$0x1]
  %v3666 = vld [vmem:[#allocation5 + $0x23] sm:$0x1]
  %v3667 = vld [vmem:[#allocation5 + $0x33] sm:$0x1]
  %v3668 = vld [vmem:[#allocation5 + $0x43] sm:$0x1]
  %v3669 = vld [vmem:[#allocation5 + $0x53] sm:$0x1]
  %v3670 = vld [vmem:[#allocation5 + $0x63] sm:$0x1]
  %v3671 = vld [vmem:[#allocation5 + $0x73] sm:$0x1]
  %v3672 = vmax.f32 %v3656, %v3664
  %v3673 = vmax.f32 %v3657, %v3665
  %v3674 = vmax.f32 %v3658, %v3666
  %v3675 = vmax.f32 %v3659, %v3667
  %v3676 = vmax.f32 %v3660, %v3668
  %v3677 = vmax.f32 %v3661, %v3669
  %v3678 = vmax.f32 %v3662, %v3670
  %v3679 = vmax.f32 %v3663, %v3671
  %v3680 = vadd.f32 %v3672, %v3638
  %v3681 = vadd.f32 %v3673, %v3638
  %v3682 = vadd.f32 %v3674, %v3638
  %v3683 = vadd.f32 %v3675, %v3638
  %v3684 = vadd.f32 %v3676, %v3638
  %v3685 = vadd.f32 %v3677, %v3638
  %v3686 = vadd.f32 %v3678, %v3638
  %v3687 = vadd.f32 %v3679, %v3638
  %v3688 = vmax.f32 %v3680, 0.0
  %v3689 = vmax.f32 %v3681, 0.0
  %v3690 = vmax.f32 %v3682, 0.0
  %v3691 = vmax.f32 %v3683, 0.0
  %v3692 = vmax.f32 %v3684, 0.0
  %v3693 = vmax.f32 %v3685, 0.0
  %v3694 = vmax.f32 %v3686, 0.0
  %v3695 = vmax.f32 %v3687, 0.0
  %v3696 = vld [vmem:[#allocation5 + $0x4] sm:$0x1]
  %v3697 = vld [vmem:[#allocation5 + $0x14] sm:$0x1]
  %v3698 = vld [vmem:[#allocation5 + $0x24] sm:$0x1]
  %v3699 = vld [vmem:[#allocation5 + $0x34] sm:$0x1]
  %v3700 = vld [vmem:[#allocation5 + $0x44] sm:$0x1]
  %v3701 = vld [vmem:[#allocation5 + $0x54] sm:$0x1]
  %v3702 = vld [vmem:[#allocation5 + $0x64] sm:$0x1]
  %v3703 = vld [vmem:[#allocation5 + $0x74] sm:$0x1]
  %v3704 = vld [vmem:[#allocation5 + $0x5] sm:$0x1]
  %v3705 = vld [vmem:[#allocation5 + $0x15] sm:$0x1]
  %v3706 = vld [vmem:[#allocation5 + $0x25] sm:$0x1]
  %v3707 = vld [vmem:[#allocation5 + $0x35] sm:$0x1]
  %v3708 = vld [vmem:[#allocation5 + $0x45] sm:$0x1]
  %v3709 = vld [vmem:[#allocation5 + $0x55] sm:$0x1]
  %v3710 = vld [vmem:[#allocation5 + $0x65] sm:$0x1]
  %v3711 = vld [vmem:[#allocation5 + $0x75] sm:$0x1]
  %v3712 = vmax.f32 %v3696, %v3704
  %v3713 = vmax.f32 %v3697, %v3705
  %v3714 = vmax.f32 %v3698, %v3706
  %v3715 = vmax.f32 %v3699, %v3707
  %v3716 = vmax.f32 %v3700, %v3708
  %v3717 = vmax.f32 %v3701, %v3709
  %v3718 = vmax.f32 %v3702, %v3710
  %v3719 = vmax.f32 %v3703, %v3711
  %v3720 = vadd.f32 %v3712, %v3638
  %v3721 = vadd.f32 %v3713, %v3638
  %v3722 = vadd.f32 %v3714, %v3638
  %v3723 = vadd.f32 %v3715, %v3638
  %v3724 = vadd.f32 %v3716, %v3638
  %v3725 = vadd.f32 %v3717, %v3638
  %v3726 = vadd.f32 %v3718, %v3638
  %v3727 = vadd.f32 %v3719, %v3638
  %v3728 = vmax.f32 %v3720, 0.0
  %v3729 = vmax.f32 %v3721, 0.0
  %v3730 = vmax.f32 %v3722, 0.0
  %v3731 = vmax.f32 %v3723, 0.0
  %v3732 = vmax.f32 %v3724, 0.0
  %v3733 = vmax.f32 %v3725, 0.0
  %v3734 = vmax.f32 %v3726, 0.0
  %v3735 = vmax.f32 %v3727, 0.0
  %v3736 = vld [vmem:[#allocation5 + $0x6] sm:$0x1]
  %v3737 = vld [vmem:[#allocation5 + $0x16] sm:$0x1]
  %v3738 = vld [vmem:[#allocation5 + $0x26] sm:$0x1]
  %v3739 = vld [vmem:[#allocation5 + $0x36] sm:$0x1]
  %v3740 = vld [vmem:[#allocation5 + $0x46] sm:$0x1]
  %v3741 = vld [vmem:[#allocation5 + $0x56] sm:$0x1]
  %v3742 = vld [vmem:[#allocation5 + $0x66] sm:$0x1]
  %v3743 = vld [vmem:[#allocation5 + $0x76] sm:$0x1]
  %v3744 = vld [vmem:[#allocation5 + $0x7] sm:$0x1]
  %v3745 = vld [vmem:[#allocation5 + $0x17] sm:$0x1]
  %v3746 = vld [vmem:[#allocation5 + $0x27] sm:$0x1]
  %v3747 = vld [vmem:[#allocation5 + $0x37] sm:$0x1]
  %v3748 = vld [vmem:[#allocation5 + $0x47] sm:$0x1]
  %v3749 = vld [vmem:[#allocation5 + $0x57] sm:$0x1]
  %v3750 = vld [vmem:[#allocation5 + $0x67] sm:$0x1]
  %v3751 = vld [vmem:[#allocation5 + $0x77] sm:$0x1]
  %v3752 = vmax.f32 %v3736, %v3744
  %v3753 = vmax.f32 %v3737, %v3745
  %v3754 = vmax.f32 %v3738, %v3746
  %v3755 = vmax.f32 %v3739, %v3747
  %v3756 = vmax.f32 %v3740, %v3748
  %v3757 = vmax.f32 %v3741, %v3749
  %v3758 = vmax.f32 %v3742, %v3750
  %v3759 = vmax.f32 %v3743, %v3751
  %v3760 = vadd.f32 %v3752, %v3638
  %v3761 = vadd.f32 %v3753, %v3638
  %v3762 = vadd.f32 %v3754, %v3638
  %v3763 = vadd.f32 %v3755, %v3638
  %v3764 = vadd.f32 %v3756, %v3638
  %v3765 = vadd.f32 %v3757, %v3638
  %v3766 = vadd.f32 %v3758, %v3638
  %v3767 = vadd.f32 %v3759, %v3638
  %v3768 = vmax.f32 %v3760, 0.0
  %v3769 = vmax.f32 %v3761, 0.0
  %v3770 = vmax.f32 %v3762, 0.0
  %v3771 = vmax.f32 %v3763, 0.0
  %v3772 = vmax.f32 %v3764, 0.0
  %v3773 = vmax.f32 %v3765, 0.0
  %v3774 = vmax.f32 %v3766, 0.0
  %v3775 = vmax.f32 %v3767, 0.0
  %v3776 = vld [vmem:[#allocation5 + $0x8] sm:$0x1]
  %v3777 = vld [vmem:[#allocation5 + $0x18] sm:$0x1]
  %v3778 = vld [vmem:[#allocation5 + $0x28] sm:$0x1]
  %v3779 = vld [vmem:[#allocation5 + $0x38] sm:$0x1]
  %v3780 = vld [vmem:[#allocation5 + $0x48] sm:$0x1]
  %v3781 = vld [vmem:[#allocation5 + $0x58] sm:$0x1]
  %v3782 = vld [vmem:[#allocation5 + $0x68] sm:$0x1]
  %v3783 = vld [vmem:[#allocation5 + $0x78] sm:$0x1]
  %v3784 = vld [vmem:[#allocation5 + $0x9] sm:$0x1]
  %v3785 = vld [vmem:[#allocation5 + $0x19] sm:$0x1]
  %v3786 = vld [vmem:[#allocation5 + $0x29] sm:$0x1]
  %v3787 = vld [vmem:[#allocation5 + $0x39] sm:$0x1]
  %v3788 = vld [vmem:[#allocation5 + $0x49] sm:$0x1]
  %v3789 = vld [vmem:[#allocation5 + $0x59] sm:$0x1]
  %v3790 = vld [vmem:[#allocation5 + $0x69] sm:$0x1]
  %v3791 = vld [vmem:[#allocation5 + $0x79] sm:$0x1]
  %v3792 = vmax.f32 %v3776, %v3784
  %v3793 = vmax.f32 %v3777, %v3785
  %v3794 = vmax.f32 %v3778, %v3786
  %v3795 = vmax.f32 %v3779, %v3787
  %v3796 = vmax.f32 %v3780, %v3788
  %v3797 = vmax.f32 %v3781, %v3789
  %v3798 = vmax.f32 %v3782, %v3790
  %v3799 = vmax.f32 %v3783, %v3791
  %v3800 = vadd.f32 %v3792, %v3638
  %v3801 = vadd.f32 %v3793, %v3638
  %v3802 = vadd.f32 %v3794, %v3638
  %v3803 = vadd.f32 %v3795, %v3638
  %v3804 = vadd.f32 %v3796, %v3638
  %v3805 = vadd.f32 %v3797, %v3638
  %v3806 = vadd.f32 %v3798, %v3638
  %v3807 = vadd.f32 %v3799, %v3638
  %v3808 = vmax.f32 %v3800, 0.0
  %v3809 = vmax.f32 %v3801, 0.0
  %v3810 = vmax.f32 %v3802, 0.0
  %v3811 = vmax.f32 %v3803, 0.0
  %v3812 = vmax.f32 %v3804, 0.0
  %v3813 = vmax.f32 %v3805, 0.0
  %v3814 = vmax.f32 %v3806, 0.0
  %v3815 = vmax.f32 %v3807, 0.0
  %v3824 = vrot.slane %v3649, 7
  %vm3825 = vcmask 1041409
  %v3826 = vsel %vm3825, %v3824, %v3648
  %v3827 = vrot.slane %v3650, 6
  %vm3828 = vcmask 1042434
  %v3829 = vsel %vm3828, %v3827, %v3826
  %v3830 = vrot.slane %v3651, 5
  %vm3831 = vcmask 1043459
  %v3832 = vsel %vm3831, %v3830, %v3829
  %v3833 = vrot.slane %v3652, 4
  %vm3834 = vcmask 1044484
  %v3835 = vsel %vm3834, %v3833, %v3832
  %v3836 = vrot.slane %v3653, 3
  %vm3837 = vcmask 1045509
  %v3838 = vsel %vm3837, %v3836, %v3835
  %v3839 = vrot.slane %v3654, 2
  %vm3840 = vcmask 1046534
  %v3841 = vsel %vm3840, %v3839, %v3838
  %v3842 = vrot.slane %v3655, 1
  %vm3843 = vcmask 1047559
  %v3844 = vsel %vm3843, %v3842, %v3841
  %v3854 = vrot.slane %v3689, 7
  %v3855 = vsel %vm3825, %v3854, %v3688
  %v3856 = vrot.slane %v3690, 6
  %v3857 = vsel %vm3828, %v3856, %v3855
  %v3858 = vrot.slane %v3691, 5
  %v3859 = vsel %vm3831, %v3858, %v3857
  %v3860 = vrot.slane %v3692, 4
  %v3861 = vsel %vm3834, %v3860, %v3859
  %v3862 = vrot.slane %v3693, 3
  %v3863 = vsel %vm3837, %v3862, %v3861
  %v3864 = vrot.slane %v3694, 2
  %v3865 = vsel %vm3840, %v3864, %v3863
  %v3866 = vrot.slane %v3695, 1
  %v3867 = vsel %vm3843, %v3866, %v3865
  %3868 = vrot.lane.b32.xlu0 %v3867, 80
  %v3869 = vpop.permute.xlu0 %3868
  %v3879 = vrot.slane %v3729, 7
  %v3880 = vsel %vm3825, %v3879, %v3728
  %v3881 = vrot.slane %v3730, 6
  %v3882 = vsel %vm3828, %v3881, %v3880
  %v3883 = vrot.slane %v3731, 5
  %v3884 = vsel %vm3831, %v3883, %v3882
  %v3885 = vrot.slane %v3732, 4
  %v3886 = vsel %vm3834, %v3885, %v3884
  %v3887 = vrot.slane %v3733, 3
  %v3888 = vsel %vm3837, %v3887, %v3886
  %v3889 = vrot.slane %v3734, 2
  %v3890 = vsel %vm3840, %v3889, %v3888
  %v3891 = vrot.slane %v3735, 1
  %v3892 = vsel %vm3843, %v3891, %v3890
  %3893 = vrot.lane.b32.xlu0 %v3892, 32
  %v3894 = vpop.permute.xlu0 %3893
  %v3904 = vrot.slane %v3769, 7
  %v3905 = vsel %vm3825, %v3904, %v3768
  %v3906 = vrot.slane %v3770, 6
  %v3907 = vsel %vm3828, %v3906, %v3905
  %v3908 = vrot.slane %v3771, 5
  %v3909 = vsel %vm3831, %v3908, %v3907
  %v3910 = vrot.slane %v3772, 4
  %v3911 = vsel %vm3834, %v3910, %v3909
  %v3912 = vrot.slane %v3773, 3
  %v3913 = vsel %vm3837, %v3912, %v3911
  %v3914 = vrot.slane %v3774, 2
  %v3915 = vsel %vm3840, %v3914, %v3913
  %v3916 = vrot.slane %v3775, 1
  %v3917 = vsel %vm3843, %v3916, %v3915
  %3918 = vrot.lane.b32.xlu0 %v3917, 112
  %v3919 = vpop.permute.xlu0 %3918
  %v3929 = vrot.slane %v3809, 7
  %v3930 = vsel %vm3825, %v3929, %v3808
  %v3931 = vrot.slane %v3810, 6
  %v3932 = vsel %vm3828, %v3931, %v3930
  %v3933 = vrot.slane %v3811, 5
  %v3934 = vsel %vm3831, %v3933, %v3932
  %v3935 = vrot.slane %v3812, 4
  %v3936 = vsel %vm3834, %v3935, %v3934
  %v3937 = vrot.slane %v3813, 3
  %v3938 = vsel %vm3837, %v3937, %v3936
  %v3939 = vrot.slane %v3814, 2
  %v3940 = vsel %vm3840, %v3939, %v3938
  %v3941 = vrot.slane %v3815, 1
  %v3942 = vsel %vm3843, %v3941, %v3940
  %3943 = vrot.lane.b32.xlu0 %v3942, 64
  %v3944 = vpop.permute.xlu0 %3943
  %v3946 = vsel %vm3595, %v3844, %v3869
  %vm3947 = vcmask 261120
  %v3948 = vsel %vm3947, %v3869, %v3894
  %vm3949 = vcmask 916480
  %v3950 = vsel %vm3949, %v3948, %v3919
  %v3951 = vsel %vm1214, %v3919, %v3944
  %v3952 = vpack.c.bf16 %v3946, %v3946
  %v3953 = vpack.c.bf16 %v3950, %v3950
  %v3954 = vpack.c.bf16 %v3951, %v3951
  %v3955 = vpack.c.bf16 %v3944, %v3944
  %v3956 = vld [vmem:[%s5] sm:$0xf]
  %v3957 = vld [vmem:[%s5 + $0x4] sm:$0xf]
  %v3958 = vld [vmem:[%s5 + $0x8] sm:$0xf]
  %v3959 = vld [vmem:[%s5 + $0xc] sm:$0xf]
  %v3960 = vld [vmem:[%s5 + $0x10] sm:$0xf]
  %v3961 = vld [vmem:[%s5 + $0x14] sm:$0xf]
  %v3962 = vld [vmem:[%s5 + $0x18] sm:$0xf]
  %v3963 = vld [vmem:[%s5 + $0x1c] sm:$0xf]
  %v3964 = vld [vmem:[%s5 + $0x20] sm:$0xf]
  %v3965 = vld [vmem:[%s5 + $0x24] sm:$0xf]
  %v3966 = vld [vmem:[%s5 + $0x28] sm:$0xf]
  %v3967 = vld [vmem:[%s5 + $0x2c] sm:$0xf]
  %v3968 = vld [vmem:[%s5 + $0x30] sm:$0xf]
  %v3969 = vld [vmem:[%s5 + $0x34] sm:$0xf]
  %v3970 = vld [vmem:[%s5 + $0x38] sm:$0xf]
  %v3971 = vld [vmem:[%s5 + $0x3c] sm:$0xf]
  %v3972 = vld [vmem:[%s5 + $0x40] sm:$0xf]
  %v3973 = vld [vmem:[%s5 + $0x44] sm:$0xf]
  %v3974 = vld [vmem:[%s5 + $0x48] sm:$0xf]
  %v3975 = vld [vmem:[%s5 + $0x4c] sm:$0xf]
  %v3976 = vld [vmem:[%s5 + $0x50] sm:$0xf]
  %v3977 = vld [vmem:[%s5 + $0x54] sm:$0xf]
  %v3978 = vld [vmem:[%s5 + $0x58] sm:$0xf]
  %v3979 = vld [vmem:[%s5 + $0x5c] sm:$0xf]
  %v3980 = vld [vmem:[%s5 + $0x60] sm:$0xf]
  %v3981 = vld [vmem:[%s5 + $0x64] sm:$0xf]
  %v3982 = vld [vmem:[%s5 + $0x68] sm:$0xf]
  %v3983 = vld [vmem:[%s5 + $0x6c] sm:$0xf]
  %v3984 = vld [vmem:[%s5 + $0x70] sm:$0xf]
  %v3985 = vld [vmem:[%s5 + $0x74] sm:$0xf]
  %v3986 = vld [vmem:[%s5 + $0x78] sm:$0xf]
  %v3987 = vld [vmem:[%s5 + $0x7c] sm:$0xf]
  %v3988 = vld [vmem:[%s5 + $0x80] sm:$0xf]
  %v3989 = vld [vmem:[%s5 + $0x84] sm:$0xf]
  %v3990 = vld [vmem:[%s5 + $0x88] sm:$0xf]
  %v3991 = vld [vmem:[%s5 + $0x8c] sm:$0xf]
  %v3992 = vld [vmem:[%s5 + $0x90] sm:$0xf]
  %v3993 = vld [vmem:[%s5 + $0x94] sm:$0xf]
  %v3994 = vld [vmem:[%s5 + $0x98] sm:$0xf]
  %v3995 = vld [vmem:[%s5 + $0x9c] sm:$0xf]
  %v3996 = vld [vmem:[%s5 + $0xa0] sm:$0xf]
  %v3997 = vld [vmem:[%s5 + $0xa4] sm:$0xf]
  %v3998 = vld [vmem:[%s5 + $0xa8] sm:$0xf]
  %v3999 = vld [vmem:[%s5 + $0xac] sm:$0xf]
  %v4000 = vld [vmem:[%s5 + $0xb0] sm:$0xf]
  %v4001 = vld [vmem:[%s5 + $0xb4] sm:$0xf]
  %v4002 = vld [vmem:[%s5 + $0xb8] sm:$0xf]
  %v4003 = vld [vmem:[%s5 + $0xbc] sm:$0xf]
  %v4004 = vld [vmem:[%s5 + $0xc0] sm:$0xf]
  %v4005 = vld [vmem:[%s5 + $0xc4] sm:$0xf]
  %v4006 = vld [vmem:[%s6] sm:$0x1]
  %v4008 = vperm.slane %v4006, 0
  %v4060 = vunpack.c.l.b16 %v3956
  %v4061 = vunpack.c.l.b16 %v3957
  %v4062 = vunpack.c.l.b16 %v3958
  %v4063 = vunpack.c.l.b16 %v3959
  %v4064 = vunpack.c.l.b16 %v3960
  %v4065 = vunpack.c.l.b16 %v3961
  %v4066 = vunpack.c.l.b16 %v3962
  %v4067 = vunpack.c.l.b16 %v3963
  %v4068 = vunpack.c.l.b16 %v3964
  %v4069 = vunpack.c.l.b16 %v3965
  %v4070 = vunpack.c.l.b16 %v3966
  %v4071 = vunpack.c.l.b16 %v3967
  %v4072 = vunpack.c.l.b16 %v3968
  %v4073 = vunpack.c.l.b16 %v3969
  %v4074 = vunpack.c.l.b16 %v3970
  %v4075 = vunpack.c.l.b16 %v3971
  %v4076 = vunpack.c.l.b16 %v3972
  %v4077 = vunpack.c.l.b16 %v3973
  %v4078 = vunpack.c.l.b16 %v3974
  %v4079 = vunpack.c.l.b16 %v3975
  %v4080 = vunpack.c.l.b16 %v3976
  %v4081 = vunpack.c.l.b16 %v3977
  %v4082 = vunpack.c.l.b16 %v3978
  %v4083 = vunpack.c.l.b16 %v3979
  %v4084 = vunpack.c.l.b16 %v3980
  %v4085 = vunpack.c.l.b16 %v3981
  %v4086 = vunpack.c.l.b16 %v3982
  %v4087 = vunpack.c.l.b16 %v3983
  %v4088 = vunpack.c.l.b16 %v3984
  %v4089 = vunpack.c.l.b16 %v3985
  %v4090 = vunpack.c.l.b16 %v3986
  %v4091 = vunpack.c.l.b16 %v3987
  %v4092 = vunpack.c.l.b16 %v3988
  %v4093 = vunpack.c.l.b16 %v3989
  %v4094 = vunpack.c.l.b16 %v3990
  %v4095 = vunpack.c.l.b16 %v3991
  %v4096 = vunpack.c.l.b16 %v3992
  %v4097 = vunpack.c.l.b16 %v3993
  %v4098 = vunpack.c.l.b16 %v3994
  %v4099 = vunpack.c.l.b16 %v3995
  %v4100 = vunpack.c.l.b16 %v3996
  %v4101 = vunpack.c.l.b16 %v3997
  %v4102 = vunpack.c.l.b16 %v3998
  %v4103 = vunpack.c.l.b16 %v3999
  %v4104 = vunpack.c.l.b16 %v4000
  %v4105 = vunpack.c.l.b16 %v4001
  %v4106 = vunpack.c.l.b16 %v4002
  %v4107 = vunpack.c.l.b16 %v4003
  %v4108 = vunpack.c.l.b16 %v4004
  %v4109 = vunpack.c.l.b16 %v4005
  %v4110 = vpack.c.b16 %v4061, %v4060
  %v4111 = vpack.c.b16 %v4063, %v4062
  %v4112 = vpack.c.b16 %v4065, %v4064
  %v4113 = vpack.c.b16 %v4067, %v4066
  %v4114 = vpack.c.b16 %v4069, %v4068
  %v4115 = vpack.c.b16 %v4071, %v4070
  %v4116 = vpack.c.b16 %v4073, %v4072
  %v4117 = vpack.c.b16 %v4075, %v4074
  %v4118 = vpack.c.b16 %v4077, %v4076
  %v4119 = vpack.c.b16 %v4079, %v4078
  %v4120 = vpack.c.b16 %v4081, %v4080
  %v4121 = vpack.c.b16 %v4083, %v4082
  %v4122 = vpack.c.b16 %v4085, %v4084
  %v4123 = vpack.c.b16 %v4087, %v4086
  %v4124 = vpack.c.b16 %v4089, %v4088
  %v4125 = vpack.c.b16 %v4091, %v4090
  %v4126 = vpack.c.b16 %v4093, %v4092
  %v4127 = vpack.c.b16 %v4095, %v4094
  %v4128 = vpack.c.b16 %v4097, %v4096
  %v4129 = vpack.c.b16 %v4099, %v4098
  %v4130 = vpack.c.b16 %v4101, %v4100
  %v4131 = vpack.c.b16 %v4103, %v4102
  %v4132 = vpack.c.b16 %v4105, %v4104
  %v4133 = vpack.c.b16 %v4107, %v4106
  %v4134 = vpack.c.b16 %v4109, %v4108
  %vm4160 = vcmask 130048
  %v4162 = vsel %vm4160, %v3955, 0
  %4164 = vmatpush.bf16.msra.mxu0 %v4117
  %4165 = vmatpush.bf16.msra.mxu0 %v4116
  %4166 = vmatpush.bf16.msra.mxu0 %v4115
  %4167 = vmatpush.bf16.msra.mxu0 %v4114
  %4168 = vmatpush.bf16.msra.mxu0 %v4113
  %4169 = vmatpush.bf16.msra.mxu0 %v4112
  %4170 = vmatpush.bf16.msra.mxu0 %v4111
  %4171 = vmatpush.bf16.msra.mxu0 %v4110
  %4172 = vmatmul.bf16.gmra.mxu0 %v3952
  %v4173 = vpop.f32.mrf.mxu0
  %v4174 = vadd.f32 %v4008, %v4173
  %v4175 = vpop.f32.mrf.mxu0
  %4176 = vdwg.mxu0
  %4177 = vmatpush.bf16.msra.mxu0 %v4125
  %4178 = vmatpush.bf16.msra.mxu0 %v4124
  %4179 = vmatpush.bf16.msra.mxu0 %v4123
  %4180 = vmatpush.bf16.msra.mxu0 %v4122
  %4181 = vmatpush.bf16.msra.mxu0 %v4121
  %4182 = vmatpush.bf16.msra.mxu0 %v4120
  %4183 = vmatpush.bf16.msra.mxu0 %v4119
  %4184 = vmatpush.bf16.msra.mxu0 %v4118
  %4185 = vmatmul.bf16.gmra.mxu0 %v3953
  %v4186 = vpop.f32.mrf.mxu0
  %v4187 = vadd.f32 %v4174, %v4186
  %v4188 = vpop.f32.mrf.mxu0
  %4189 = vdwg.mxu0
  %4190 = vmatpush.bf16.msra.mxu0 %v4133
  %4191 = vmatpush.bf16.msra.mxu0 %v4132
  %4192 = vmatpush.bf16.msra.mxu0 %v4131
  %4193 = vmatpush.bf16.msra.mxu0 %v4130
  %4194 = vmatpush.bf16.msra.mxu0 %v4129
  %4195 = vmatpush.bf16.msra.mxu0 %v4128
  %4196 = vmatpush.bf16.msra.mxu0 %v4127
  %4197 = vmatpush.bf16.msra.mxu0 %v4126
  %4198 = vmatmul.bf16.gmra.mxu0 %v3954
  %v4199 = vpop.f32.mrf.mxu0
  %v4200 = vadd.f32 %v4187, %v4199
  %v4201 = vpop.f32.mrf.mxu0
  %4202 = vdwg.mxu0
  %4203 = vmatpush.bf16.msra.mxu0 0
  %4204 = vmatpush.bf16.msra.mxu0 0
  %4205 = vmatpush.bf16.msra.mxu0 0
  %4206 = vmatpush.bf16.msra.mxu0 0
  %4207 = vmatpush.bf16.msra.mxu0 0
  %4208 = vmatpush.bf16.msra.mxu0 0
  %4209 = vmatpush.bf16.msra.mxu0 0
  %4210 = vmatpush.bf16.msra.mxu0 %v4134
  %4211 = vmatmul.bf16.gmra.mxu0 %v4162
  %v4212 = vpop.f32.mrf.mxu0
  %v4213 = vadd.f32 %v4200, %v4212
  %v4214 = vpop.f32.mrf.mxu0
  %4215 = vdwg.mxu0
  %v4216 = vmax.f32 %v4213, 0.0
  %v4217 = vpack.c.bf16 %v4216, %v4216
  %v4218 = vld [vmem:[%s7] sm:$0xf]
  %v4219 = vld [vmem:[%s7 + $0x4] sm:$0xf]
  %v4220 = vld [vmem:[%s7 + $0x8] sm:$0xf]
  %v4221 = vld [vmem:[%s7 + $0xc] sm:$0xf]
  %v4222 = vld [vmem:[%s7 + $0x10] sm:$0xf]
  %v4223 = vld [vmem:[%s7 + $0x14] sm:$0xf]
  %v4224 = vld [vmem:[%s7 + $0x18] sm:$0xf]
  %v4225 = vld [vmem:[%s7 + $0x1c] sm:$0xf]
  %v4226 = vld [vmem:[%s7 + $0x20] sm:$0xf]
  %v4227 = vld [vmem:[%s7 + $0x24] sm:$0xf]
  %v4228 = vld [vmem:[%s7 + $0x28] sm:$0xf]
  %v4229 = vld [vmem:[%s7 + $0x2c] sm:$0xf]
  %v4230 = vld [vmem:[%s7 + $0x30] sm:$0xf]
  %v4231 = vld [vmem:[%s7 + $0x34] sm:$0xf]
  %v4232 = vld [vmem:[%s7 + $0x38] sm:$0xf]
  %v4233 = vld [vmem:[%s7 + $0x3c] sm:$0xf]
  %v4234 = vld [vmem:[%s8] sm:$0x1]
  %v4236 = vperm.slane %v4234, 0
  %v4254 = vunpack.c.l.b16 %v4218
  %v4255 = vunpack.c.l.b16 %v4219
  %v4256 = vunpack.c.l.b16 %v4220
  %v4257 = vunpack.c.l.b16 %v4221
  %v4258 = vunpack.c.l.b16 %v4222
  %v4259 = vunpack.c.l.b16 %v4223
  %v4260 = vunpack.c.l.b16 %v4224
  %v4261 = vunpack.c.l.b16 %v4225
  %v4262 = vunpack.c.l.b16 %v4226
  %v4263 = vunpack.c.l.b16 %v4227
  %v4264 = vunpack.c.l.b16 %v4228
  %v4265 = vunpack.c.l.b16 %v4229
  %v4266 = vunpack.c.l.b16 %v4230
  %v4267 = vunpack.c.l.b16 %v4231
  %v4268 = vunpack.c.l.b16 %v4232
  %v4269 = vunpack.c.l.b16 %v4233
  %v4270 = vpack.c.b16 %v4255, %v4254
  %v4271 = vpack.c.b16 %v4257, %v4256
  %v4272 = vpack.c.b16 %v4259, %v4258
  %v4273 = vpack.c.b16 %v4261, %v4260
  %v4274 = vpack.c.b16 %v4263, %v4262
  %v4275 = vpack.c.b16 %v4265, %v4264
  %v4276 = vpack.c.b16 %v4267, %v4266
  %v4277 = vpack.c.b16 %v4269, %v4268
  %4286 = vmatpush.bf16.msra.mxu0 %v4277
  %4287 = vmatpush.bf16.msra.mxu0 %v4276
  %4288 = vmatpush.bf16.msra.mxu0 %v4275
  %4289 = vmatpush.bf16.msra.mxu0 %v4274
  %4290 = vmatpush.bf16.msra.mxu0 %v4273
  %4291 = vmatpush.bf16.msra.mxu0 %v4272
  %4292 = vmatpush.bf16.msra.mxu0 %v4271
  %4293 = vmatpush.bf16.msra.mxu0 %v4270
  %4294 = vmatmul.bf16.gmra.mxu0 %v4217
  %v4295 = vpop.f32.mrf.mxu0
  %v4296 = vadd.f32 %v4236, %v4295
  %v4297 = vpop.f32.mrf.mxu0
  %4298 = vdwg.mxu0
  %v4299 = vmax.f32 %v4296, 0.0
  %v4300 = vpack.c.bf16 %v4299, %v4299
  %v4301 = vld [vmem:[%s9] sm:$0xf]
  %v4302 = vld [vmem:[%s9 + $0x4] sm:$0xf]
  %v4303 = vld [vmem:[%s9 + $0x8] sm:$0xf]
  %v4304 = vld [vmem:[%s9 + $0xc] sm:$0xf]
  %v4305 = vld [vmem:[%s9 + $0x10] sm:$0xf]
  %v4306 = vld [vmem:[%s9 + $0x14] sm:$0xf]
  %v4307 = vld [vmem:[%s9 + $0x18] sm:$0xf]
  %v4308 = vld [vmem:[%s9 + $0x1c] sm:$0xf]
  %v4309 = vld [vmem:[%s9 + $0x20] sm:$0xf]
  %v4310 = vld [vmem:[%s9 + $0x24] sm:$0xf]
  %v4311 = vld [vmem:[%s9 + $0x28] sm:$0xf]
  %v4312 = vld [vmem:[%s9 + $0x2c] sm:$0xf]
  %v4313 = vld [vmem:[%s9 + $0x30] sm:$0xf]
  %v4314 = vld [vmem:[%s9 + $0x34] sm:$0xf]
  %v4315 = vld [vmem:[%s9 + $0x38] sm:$0xf]
  %v4316 = vld [vmem:[%s9 + $0x3c] sm:$0xf]
  %v4317 = vld [vmem:[%s10] sm:$0x1]
  %v4319 = vperm.slane %v4317, 0
  %v4337 = vunpack.c.l.b16 %v4301
  %v4338 = vunpack.c.l.b16 %v4302
  %v4339 = vunpack.c.l.b16 %v4303
  %v4340 = vunpack.c.l.b16 %v4304
  %v4341 = vunpack.c.l.b16 %v4305
  %v4342 = vunpack.c.l.b16 %v4306
  %v4343 = vunpack.c.l.b16 %v4307
  %v4344 = vunpack.c.l.b16 %v4308
  %v4345 = vunpack.c.l.b16 %v4309
  %v4346 = vunpack.c.l.b16 %v4310
  %v4347 = vunpack.c.l.b16 %v4311
  %v4348 = vunpack.c.l.b16 %v4312
  %v4349 = vunpack.c.l.b16 %v4313
  %v4350 = vunpack.c.l.b16 %v4314
  %v4351 = vunpack.c.l.b16 %v4315
  %v4352 = vunpack.c.l.b16 %v4316
  %v4353 = vpack.c.b16 %v4338, %v4337
  %v4354 = vpack.c.b16 %v4340, %v4339
  %v4355 = vpack.c.b16 %v4342, %v4341
  %v4356 = vpack.c.b16 %v4344, %v4343
  %v4357 = vpack.c.b16 %v4346, %v4345
  %v4358 = vpack.c.b16 %v4348, %v4347
  %v4359 = vpack.c.b16 %v4350, %v4349
  %v4360 = vpack.c.b16 %v4352, %v4351
  %4369 = vmatpush.bf16.msra.mxu0 %v4360
  %4370 = vmatpush.bf16.msra.mxu0 %v4359
  %4371 = vmatpush.bf16.msra.mxu0 %v4358
  %4372 = vmatpush.bf16.msra.mxu0 %v4357
  %4373 = vmatpush.bf16.msra.mxu0 %v4356
  %4374 = vmatpush.bf16.msra.mxu0 %v4355
  %4375 = vmatpush.bf16.msra.mxu0 %v4354
  %4376 = vmatpush.bf16.msra.mxu0 %v4353
  %4377 = vmatmul.bf16.gmra.mxu0 %v4300
  %v4378 = vpop.f32.mrf.mxu0
  %v4379 = vadd.f32 %v4319, %v4378
  %v4380 = vpop.f32.mrf.mxu0
  %4381 = vdwg.mxu0
  %4382 = vst [vmem:[%s11] sm:$0xff] %v4379
  // Predicated region
  $region46: #{lenet_forward.1} parent=0 // pred_check
    _
  $region47: #{lenet_forward.1} parent=0 // pred_check_branch
    %4384 = sbr.rel (0) target = $region49
  $region48: #{lenet_forward.1} parent=0 // pred_region
    _
  $region49: #{lenet_forward.1} parent=0 // pred_fallthru
    _
  // Predicated region
  $region50: #{lenet_forward.1} parent=0 // pred_check
    _
  $region51: #{lenet_forward.1} parent=0 // pred_check_branch
    %4386 = sbr.rel (0) target = $region53
  $region52: #{lenet_forward.1} parent=0 // pred_region
    _
  $region53: #{lenet_forward.1} parent=0 // pred_fallthru
    _

</llo_original>
